<compile_context>
chip_gen: v7x
topology: tpu7x:2x2x1
jax: 0.10.0
libtpu: 0.0.40
codegen_flags: <defaults>
</compile_context>

<pallas_src>
import functools

import jax
import jax.numpy as jnp
import numpy as np
from jax.experimental import pallas as pl
from jax.experimental.pallas import tpu as pltpu

SQRT_HALF = 0.7071067811865476


# ---------------------------------------------------------------------------
# in-kernel math helpers (exp/mul/add/rsqrt only -> clean Mosaic lowering)
# ---------------------------------------------------------------------------
def _erf(x):
    # Abramowitz & Stegun 7.1.26 polynomial erf, |err| < 1.5e-7 (matches
    # PyTorch's exact-erf nn.GELU() to float32 noise).
    sign = jnp.where(x >= 0.0, 1.0, -1.0)
    ax = jnp.abs(x)
    t = 1.0 / (1.0 + 0.3275911 * ax)
    poly = ((((1.061405429 * t - 1.453152027) * t + 1.421413741) * t
             - 0.284496736) * t + 0.254829592) * t
    return sign * (1.0 - poly * jnp.exp(-ax * ax))


def _gelu(x):
    return 0.5 * x * (1.0 + _erf(x * SQRT_HALF))


def _layernorm(x, w, b, eps=1e-5):
    mu = jnp.mean(x, axis=-1, keepdims=True)
    var = jnp.mean((x - mu) ** 2, axis=-1, keepdims=True)
    return (x - mu) * jax.lax.rsqrt(var + eps) * w + b


# ---------------------------------------------------------------------------
# parameter slab packing (trace-time, one-off)
# ---------------------------------------------------------------------------
class _SlabPacker:
    """Packs many small f32 parameter arrays into one (rows, width) VMEM slab.

    Every sub-array starts at an 8-aligned row and at lane 0, so the kernel
    reads it back with a static, free `slab_ref[r0:r0+nr, 0:nc]` slice.
    """

    def __init__(self, width=128):
        self.width = width
        self._parts = []
        self._index = {}
        self._rows = 0

    def add(self, name, arr):
        a = np.asarray(arr, np.float32)
        if a.ndim == 1:
            a = a.reshape(1, -1)
        assert a.ndim == 2 and a.shape[1] <= self.width, (name, a.shape)
        nr, nc = a.shape
        pad_r = (-nr) % 8
        self._parts.append(np.pad(a, ((0, pad_r), (0, self.width - nc))))
        self._index[name] = (self._rows, (nr, nc))
        self._rows += nr + pad_r

    def finalize(self):
        slab = np.concatenate(self._parts, axis=0)
        return jnp.asarray(slab), self._index


def prepare_params(params, cfg, num_patches, batch_per_step):
    """Re-lays out all model parameters into a single (rows, 128) f32 slab."""
    dim, heads, dh = cfg["dim"], cfg["heads"], cfg["dim_head"]
    n = num_patches + 1
    nb = cfg["num_bands"]
    bs = batch_per_step
    tokens = bs * n

    pk = _SlabPacker(width=128)

    # patch embedding weight (bias is folded into addvec below)
    pk.add("patch_w", params["patch_w"])                         # (patch_dim, dim)

    # 0/1 scatter: token row (bi*n + 1 + p)  <-  emb row (bi*num_patches + p)
    S = np.zeros((tokens, bs * num_patches), np.float32)
    for bi in range(bs):
        for p in range(num_patches):
            S[bi * n + 1 + p, bi * num_patches + p] = 1.0
    pk.add("scatter", S)

    # additive tensor: cls+pos at cls rows, pos+patch_bias at patch rows
    pos = np.asarray(params["pos_embedding"], np.float32)[0, :n, :]
    cls = np.asarray(params["cls_token"], np.float32).reshape(dim)
    pb = np.asarray(params["patch_b"], np.float32).reshape(dim)
    addv = np.zeros((tokens, dim), np.float32)
    for bi in range(bs):
        addv[bi * n + 0] = pos[0] + cls
        for p in range(num_patches):
            addv[bi * n + 1 + p] = pos[1 + p] + pb
    pk.add("addvec", addv)

    # same-batch indicator (attention mask + head-LN stats) and batch-sum
    row_b = np.arange(tokens) // n
    pk.add("msum", (row_b[:, None] == row_b[None, :]).astype(np.float32))
    pk.add("bsum", (np.arange(bs)[:, None] == row_b[None, :]).astype(np.float32))

    # mlp_head1 LayerNorm affine, tiled to the token slab
    hlnw = np.asarray(params["head_ln_w"], np.float32).reshape(n, dim)
    hlnb = np.asarray(params["head_ln_b"], np.float32).reshape(n, dim)
    pk.add("hlnw", np.tile(hlnw, (bs, 1)))
    pk.add("hlnb", np.tile(hlnb, (bs, 1)))

    # mlp_head1 Linear, re-laid-out:  head_wr[d, p*nb + band] = W[p*dim + d, band]
    hw = np.asarray(params["head_w"], np.float32).reshape(n, dim, nb)
    pk.add("head_wr", np.transpose(hw, (1, 0, 2)).reshape(dim, n * nb))
    col_p = np.arange(n * nb) // nb
    pk.add("head_sel",
           ((np.arange(tokens) % n)[:, None] == col_p[None, :]).astype(np.float32))
    pk.add("head_g",
           (np.arange(n * nb)[:, None] % nb == np.arange(nb)[None, :]).astype(np.float32))
    pk.add("head_b", np.asarray(params["head_b"], np.float32).reshape(1, nb))

    for l, lp in enumerate(params["layers"]):
        pk.add(f"l{l}_ln1w", np.asarray(lp["ln1_w"]).reshape(1, dim))
        pk.add(f"l{l}_ln1b", np.asarray(lp["ln1_b"]).reshape(1, dim))
        pk.add(f"l{l}_wqkv", lp["wqkv"])                         # (dim, 3*inner)
        pk.add(f"l{l}_wo", lp["wo"])                             # (inner, dim)
        pk.add(f"l{l}_bo", np.asarray(lp["bo"]).reshape(1, dim))
        pk.add(f"l{l}_ln2w", np.asarray(lp["ln2_w"]).reshape(1, dim))
        pk.add(f"l{l}_ln2b", np.asarray(lp["ln2_b"]).reshape(1, dim))
        pk.add(f"l{l}_w1", lp["w1"])                             # (dim, mlp_dim)
        pk.add(f"l{l}_b1", np.asarray(lp["b1"]).reshape(1, -1))
        pk.add(f"l{l}_w2", lp["w2"])                             # (mlp_dim, dim)
        pk.add(f"l{l}_b2", np.asarray(lp["b2"]).reshape(1, dim))

    slab, index = pk.finalize()
    return {"slab": slab, "index": index}


# ---------------------------------------------------------------------------
# the single fused kernel
# ---------------------------------------------------------------------------
def _wrt_fused_kernel(patches_ref, slab_ref, o_ref, *, idx, b_blk, num_steps,
                      num_patches, heads, dim_head, dim, depth, num_bands):
    f32 = jnp.float32
    n = num_patches + 1
    tokens = b_blk * n
    inner = heads * dim_head
    scale = dim_head ** -0.5

    def rd(name):
        r0, (nr, nc) = idx[name]
        return slab_ref[r0:r0 + nr, 0:nc]

    # --- this step's patch rows --------------------------------------------
    rows = b_blk * num_patches
    if num_steps == 1:
        patches = patches_ref[...]
    else:
        i0 = pl.program_id(0) * rows
        patches = patches_ref[pl.ds(i0, rows), :]

    # --- patch embed, scatter into token slab, add cls/pos/bias -------------
    emb = jnp.dot(patches, rd("patch_w"), preferred_element_type=f32)
    x = jnp.dot(rd("scatter"), emb, preferred_element_type=f32) + rd("addvec")
    # dropout p=0.0 -> identity

    msum = rd("msum")                                            # (tokens, tokens)
    if b_blk > 1:
        # 0 for same-batch pairs, -1e30 across batches (kills cross-batch attn)
        attn_bias = jnp.broadcast_to(((msum - 1.0) * 1e30)[None, :, :],
                                     (heads, tokens, tokens))

    # --- transformer encoder, static unroll over depth ----------------------
    for l in range(depth):
        # PreNorm + multi-head self-attention
        xn = _layernorm(x, rd(f"l{l}_ln1w"), rd(f"l{l}_ln1b"))
        qkv = jnp.dot(xn, rd(f"l{l}_wqkv"),
                      preferred_element_type=f32)                # (tokens, 3*inner)
        q = jnp.stack([qkv[:, h * dim_head:(h + 1) * dim_head]
                       for h in range(heads)], axis=0)           # (heads, tokens, dh)
        k = jnp.stack([qkv[:, inner + h * dim_head:inner + (h + 1) * dim_head]
                       for h in range(heads)], axis=0)
        v = jnp.stack([qkv[:, 2 * inner + h * dim_head:2 * inner + (h + 1) * dim_head]
                       for h in range(heads)], axis=0)
        dots = jnp.einsum("hqd,hkd->hqk", q, k,
                          preferred_element_type=f32) * scale    # (heads, tok, tok)
        if b_blk > 1:
            dots = dots + attn_bias
        dots = dots - jnp.max(dots, axis=-1, keepdims=True)
        e = jnp.exp(dots)
        attn = e * pl.reciprocal(jnp.sum(e, axis=-1, keepdims=True), approx=True)
        ctx = jnp.einsum("hqk,hkd->hqd", attn, v,
                         preferred_element_type=f32)             # (heads, tokens, dh)
        ctx_flat = jnp.concatenate([ctx[h] for h in range(heads)],
                                   axis=1)                       # (tokens, inner)
        proj = jnp.dot(ctx_flat, rd(f"l{l}_wo"), preferred_element_type=f32)
        x = x + proj + rd(f"l{l}_bo")

        # PreNorm + feed-forward (Linear -> GELU -> Linear)
        xn2 = _layernorm(x, rd(f"l{l}_ln2w"), rd(f"l{l}_ln2b"))
        h1 = jnp.dot(xn2, rd(f"l{l}_w1"), preferred_element_type=f32) + rd(f"l{l}_b1")
        h1 = _gelu(h1)
        h2 = jnp.dot(h1, rd(f"l{l}_w2"), preferred_element_type=f32) + rd(f"l{l}_b2")
        x = x + h2

    # --- mlp_head1: per-batch LayerNorm over flattened (n*dim) + Linear -----
    inv_cnt = 1.0 / float(n * dim)
    rs = jnp.sum(x, axis=1, keepdims=True)                       # (tokens, 1)
    mu = jnp.dot(msum, rs, preferred_element_type=f32) * inv_cnt # per-batch mean
    d = x - mu
    ss = jnp.sum(d * d, axis=1, keepdims=True)
    var = jnp.dot(msum, ss, preferred_element_type=f32) * inv_cnt
    xh = d * jax.lax.rsqrt(var + 1e-5) * rd("hlnw") + rd("hlnb") # (tokens, dim)
    # flatten(xh_b) @ head_W  via dense matmul + row-gather mask + 0/1 matmuls
    tmp = jnp.dot(xh, rd("head_wr"), preferred_element_type=f32) * rd("head_sel")
    per_b = jnp.dot(rd("bsum"), tmp, preferred_element_type=f32) # (b_blk, n*nb)
    out = jnp.dot(per_b, rd("head_g"), preferred_element_type=f32) + rd("head_b")
    o_ref[:, 0, :] = out                                         # (b_blk, num_bands)


# ---------------------------------------------------------------------------
# full forward pass: patch rearrange (layout glue) + ONE pallas_call
# ---------------------------------------------------------------------------
def wrt_forward(spectra, slab, *, cfg, index, b_step):
    b, c, H, W = spectra.shape
    p1, p2 = cfg["patch_size"]
    hh, ww = H // p1, W // p2
    num_patches = hh * ww
    patch_dim = c * p1 * p2
    nb = cfg["num_bands"]
    steps = b // b_step
    assert steps * b_step == b

    # Rearrange 'b c (h p1) (w p2) -> b (h w) (p1 p2 c)' (pure layout glue).
    x = spectra.reshape(b, c, hh, p1, ww, p2)
    x = jnp.transpose(x, (0, 2, 4, 3, 5, 1))
    patches = x.reshape(b * num_patches, patch_dim)

    kernel = functools.partial(
        _wrt_fused_kernel, idx=index, b_blk=b_step, num_steps=steps,
        num_patches=num_patches, heads=cfg["heads"], dim_head=cfg["dim_head"],
        dim=cfg["dim"], depth=cfg["depth"], num_bands=nb)

    slab_rows = slab.shape[0]
    out = pl.pallas_call(
        kernel,
        grid=(steps,),
        in_specs=[
            pl.BlockSpec((b * num_patches, patch_dim), lambda i: (0, 0)),
            pl.BlockSpec((slab_rows, 128), lambda i: (0, 0)),
        ],
        out_specs=pl.BlockSpec((b_step, 1, nb), lambda i: (i, 0, 0)),
        out_shape=jax.ShapeDtypeStruct((b, 1, nb), jnp.float32),
        compiler_params=pltpu.CompilerParams(
            dimension_semantics=("parallel",)),
    )(patches, slab)
    return out[:, 0, :]


def _batch_per_step(batch):
    """Batch elements per grid step: 1 on v7x (split over 2 TCs), else all."""
    # TODO(synk): revisit once v7x device_kind strings are finalised.
    try:
        kind = jax.devices()[0].device_kind.lower()
    except Exception:
        return batch
    if ("v7" in kind or "7x" in kind) and batch > 1:
        return 1
    return batch


# ---------------------------------------------------------------------------
# pure-JAX reference (mirrors the PyTorch forward)
# ---------------------------------------------------------------------------
def _ref_layernorm(x, w, b, eps=1e-5):
    mu = jnp.mean(x, axis=-1, keepdims=True)
    var = jnp.mean((x - mu) ** 2, axis=-1, keepdims=True)
    return (x - mu) / jnp.sqrt(var + eps) * w + b


def wrt_reference(spectra, params, cfg):
    hp = jax.lax.Precision.HIGHEST
    b, c, H, W = spectra.shape
    p1, p2 = cfg["patch_size"]
    hh, ww = H // p1, W // p2
    dim = cfg["dim"]
    x = spectra.reshape(b, c, hh, p1, ww, p2).transpose(0, 2, 4, 3, 5, 1)
    x = x.reshape(b, hh * ww, c * p1 * p2)
    x = jnp.dot(x, params["patch_w"], precision=hp) + params["patch_b"]
    cls = jnp.broadcast_to(params["cls_token"], (b, 1, dim))
    x = jnp.concatenate([cls, x], axis=1)
    n = x.shape[1]
    x = x + params["pos_embedding"][:, :n]
    heads, dh = cfg["heads"], cfg["dim_head"]
    inner = heads * dh
    scale = dh ** -0.5
    for lp in params["layers"]:
        xn = _ref_layernorm(x, lp["ln1_w"], lp["ln1_b"])
        qkv = jnp.dot(xn, lp["wqkv"], precision=hp)
        q, k, v = jnp.split(qkv, 3, axis=-1)
        rh = lambda t: t.reshape(b, n, heads, dh).transpose(0, 2, 1, 3)
        q, k, v = rh(q), rh(k), rh(v)
        dots = jnp.einsum("bhid,bhjd->bhij", q, k, precision=hp) * scale
        attn = jax.nn.softmax(dots, axis=-1)
        out = jnp.einsum("bhij,bhjd->bhid", attn, v, precision=hp)
        out = out.transpose(0, 2, 1, 3).reshape(b, n, inner)
        x = x + jnp.dot(out, lp["wo"], precision=hp) + lp["bo"]
        xn2 = _ref_layernorm(x, lp["ln2_w"], lp["ln2_b"])
        h1 = jax.nn.gelu(jnp.dot(xn2, lp["w1"], precision=hp) + lp["b1"],
                         approximate=False)
        x = x + jnp.dot(h1, lp["w2"], precision=hp) + lp["b2"]
    xf = x.reshape(b, n * dim)
    xf = _ref_layernorm(xf, params["head_ln_w"], params["head_ln_b"])
    return jnp.dot(xf, params["head_w"], precision=hp) + params["head_b"]


# ---------------------------------------------------------------------------
# deterministic parameter init (shapes follow the PyTorch __init__)
# ---------------------------------------------------------------------------
def init_params(key, *, patch_dim, dim, depth, heads, dim_head, mlp_dim,
                num_patches, num_bands):
    inner = heads * dim_head
    n = num_patches + 1
    keys = iter(jax.random.split(key, 8 + depth * 6))

    def lin(k, fan_in, fan_out):
        return jax.random.normal(k, (fan_in, fan_out), jnp.float32) / np.sqrt(fan_in)

    params = {
        "patch_w": lin(next(keys), patch_dim, dim),
        "patch_b": jnp.zeros((dim,), jnp.float32),
        "pos_embedding": jax.random.normal(next(keys), (1, n, dim), jnp.float32),
        "cls_token": jax.random.normal(next(keys), (1, 1, dim), jnp.float32),
        "head_ln_w": jnp.ones((n * dim,), jnp.float32),
        "head_ln_b": jnp.zeros((n * dim,), jnp.float32),
        "head_w": lin(next(keys), n * dim, num_bands),
        "head_b": jnp.zeros((num_bands,), jnp.float32),
        "layers": [],
    }
    for _ in range(depth):
        params["layers"].append({
            "ln1_w": jnp.ones((dim,), jnp.float32),
            "ln1_b": jnp.zeros((dim,), jnp.float32),
            "wqkv": lin(next(keys), dim, 3 * inner),      # to_qkv (bias=False)
            "wo": lin(next(keys), inner, dim),            # to_out Linear
            "bo": jnp.zeros((dim,), jnp.float32),
            "ln2_w": jnp.ones((dim,), jnp.float32),
            "ln2_b": jnp.zeros((dim,), jnp.float32),
            "w1": lin(next(keys), dim, mlp_dim),
            "b1": jnp.zeros((mlp_dim,), jnp.float32),
            "w2": lin(next(keys), mlp_dim, dim),
            "b2": jnp.zeros((dim,), jnp.float32),
        })
    return params


if __name__ == "__main__":
    # small, forward-consistent configuration
    cfg = dict(spectra_size=(1, 128), patch_size=(1, 32), num_bands=6,
               dim=32, depth=2, heads=4, dim_head=8, mlp_dim=64, channels=1)
    H, W = cfg["spectra_size"]
    p1, p2 = cfg["patch_size"]
    num_patches = (H // p1) * (W // p2)
    patch_dim = cfg["channels"] * p1 * p2
    batch = 2

    key = jax.random.PRNGKey(0)
    pkey, xkey = jax.random.split(key)
    params = init_params(pkey, patch_dim=patch_dim, dim=cfg["dim"],
                         depth=cfg["depth"], heads=cfg["heads"],
                         dim_head=cfg["dim_head"], mlp_dim=cfg["mlp_dim"],
                         num_patches=num_patches, num_bands=cfg["num_bands"])
    spectra = jax.random.normal(xkey, (batch, cfg["channels"], H, W), jnp.float32)

    b_step = _batch_per_step(batch)                        # 1 on v7x, else batch
    prep = prepare_params(params, cfg, num_patches, b_step)  # one-time weight glue
    fwd = jax.jit(functools.partial(wrt_forward, cfg=cfg, index=prep["index"],
                                    b_step=b_step))

    out = jax.block_until_ready(fwd(spectra, prep["slab"]))
    ref = jax.block_until_ready(wrt_reference(spectra, params, cfg))

    assert out.shape == (batch, cfg["num_bands"])
    np.testing.assert_allclose(np.asarray(out), np.asarray(ref),
                               rtol=1e-2, atol=1e-2)
    print("KERNEL_OK")
</pallas_src>

<mosaic_0001>
module attributes {stable_mosaic.version = 11 : i64} {
  func.func @_wrt_fused_kernel(%arg0: i32, %arg1: memref<8x32xf32, #tpu.memory_space<vmem>>, %arg2: memref<640x128xf32, #tpu.memory_space<vmem>>, %arg3: memref<2x1x6xf32, #tpu.memory_space<vmem>>) attributes {dimension_semantics = [#tpu.dimension_semantics<parallel>], iteration_bounds = array<i64: 1>, scalar_prefetch = 0 : i64, scratch_operands = 0 : i64, tpu.core_type = #tpu.core_type<tc>, window_params = [{pipeline_mode = #tpu.pipeline_mode<synchronous>, transform_indices = @transform_0, window_bounds = array<i64: 8, 32>}, {pipeline_mode = #tpu.pipeline_mode<synchronous>, transform_indices = @transform_1, window_bounds = array<i64: 640, 128>}, {transform_indices = @transform_2, window_bounds = array<i64: 2, 1, 6>}]} {
    %c0 = arith.constant 0 : index
    %c0_0 = arith.constant 0 : index
    %0 = vector.load %arg1[%c0, %c0_0] : memref<8x32xf32, #tpu.memory_space<vmem>>, vector<8x32xf32>
    %c0_1 = arith.constant 0 : index
    %c0_2 = arith.constant 0 : index
    %1 = vector.load %arg2[%c0_1, %c0_2] : memref<640x128xf32, #tpu.memory_space<vmem>>, vector<32x32xf32>
    %cst = arith.constant dense<0.000000e+00> : vector<8x32xf32>
    %2 = tpu.matmul %0, %1, %cst {dimension_numbers = #tpu.dot_dimension_numbers<[1], [0], [0], [1], [0, 0, 1, 1], [], []>} : vector<8x32xf32>, vector<32x32xf32>, vector<8x32xf32> -> vector<8x32xf32>
    %c32 = arith.constant 32 : index
    %c0_3 = arith.constant 0 : index
    %3 = vector.load %arg2[%c32, %c0_3] : memref<640x128xf32, #tpu.memory_space<vmem>>, vector<10x8xf32>
    %cst_4 = arith.constant dense<0.000000e+00> : vector<10x32xf32>
    %4 = tpu.matmul %3, %2, %cst_4 {dimension_numbers = #tpu.dot_dimension_numbers<[1], [0], [0], [1], [0, 0, 1, 1], [], []>} : vector<10x8xf32>, vector<8x32xf32>, vector<10x32xf32> -> vector<10x32xf32>
    %c48 = arith.constant 48 : index
    %c0_5 = arith.constant 0 : index
    %5 = vector.load %arg2[%c48, %c0_5] : memref<640x128xf32, #tpu.memory_space<vmem>>, vector<10x32xf32>
    %6 = arith.addf %4, %5 : vector<10x32xf32>
    %c64 = arith.constant 64 : index
    %c0_6 = arith.constant 0 : index
    %7 = vector.load %arg2[%c64, %c0_6] : memref<640x128xf32, #tpu.memory_space<vmem>>, vector<10x10xf32>
    %cst_7 = arith.constant 1.000000e+00 : f32
    %8 = vector.broadcast %cst_7 : f32 to vector<10x10xf32>
    %9 = arith.subf %7, %8 : vector<10x10xf32>
    %cst_8 = arith.constant 1.000000e+30 : f32
    %10 = vector.broadcast %cst_8 : f32 to vector<10x10xf32>
    %11 = arith.mulf %9, %10 : vector<10x10xf32>
    %12 = vector.shape_cast %11 : vector<10x10xf32> to vector<1x10x10xf32>
    %13 = vector.shape_cast %12 : vector<1x10x10xf32> to vector<1x10x10xf32>
    %14 = vector.broadcast %13 : vector<1x10x10xf32> to vector<4x10x10xf32>
    %c208 = arith.constant 208 : index
    %c0_9 = arith.constant 0 : index
    %15 = vector.load %arg2[%c208, %c0_9] : memref<640x128xf32, #tpu.memory_space<vmem>>, vector<1x32xf32>
    %c216 = arith.constant 216 : index
    %c0_10 = arith.constant 0 : index
    %16 = vector.load %arg2[%c216, %c0_10] : memref<640x128xf32, #tpu.memory_space<vmem>>, vector<1x32xf32>
    %cst_11 = arith.constant dense<0.000000e+00> : vector<10xf32>
    %17 = vector.multi_reduction <add>, %6, %cst_11 [1] : vector<10x32xf32> to vector<10xf32>
    %18 = vector.shape_cast %17 : vector<10xf32> to vector<10x1xf32>
    %cst_12 = arith.constant 3.200000e+01 : f32
    %19 = vector.broadcast %cst_12 : f32 to vector<10x1xf32>
    %20 = arith.divf %18, %19 : vector<10x1xf32>
    %21 = vector.broadcast %20 : vector<10x1xf32> to vector<10x32xf32>
    %22 = arith.subf %6, %21 : vector<10x32xf32>
    %23 = arith.mulf %22, %22 : vector<10x32xf32>
    %cst_13 = arith.constant dense<0.000000e+00> : vector<10xf32>
    %24 = vector.multi_reduction <add>, %23, %cst_13 [1] : vector<10x32xf32> to vector<10xf32>
    %25 = vector.shape_cast %24 : vector<10xf32> to vector<10x1xf32>
    %cst_14 = arith.constant 3.200000e+01 : f32
    %26 = vector.broadcast %cst_14 : f32 to vector<10x1xf32>
    %27 = arith.divf %25, %26 : vector<10x1xf32>
    %28 = vector.broadcast %20 : vector<10x1xf32> to vector<10x32xf32>
    %29 = arith.subf %6, %28 : vector<10x32xf32>
    %cst_15 = arith.constant 9.99999974E-6 : f32
    %30 = vector.broadcast %cst_15 : f32 to vector<10x1xf32>
    %31 = arith.addf %27, %30 : vector<10x1xf32>
    %32 = math.rsqrt %31 : vector<10x1xf32>
    %33 = vector.broadcast %32 : vector<10x1xf32> to vector<10x32xf32>
    %34 = arith.mulf %29, %33 : vector<10x32xf32>
    %35 = vector.broadcast %15 : vector<1x32xf32> to vector<10x32xf32>
    %36 = arith.mulf %34, %35 : vector<10x32xf32>
    %37 = vector.broadcast %16 : vector<1x32xf32> to vector<10x32xf32>
    %38 = arith.addf %36, %37 : vector<10x32xf32>
    %c224 = arith.constant 224 : index
    %c0_16 = arith.constant 0 : index
    %39 = vector.load %arg2[%c224, %c0_16] : memref<640x128xf32, #tpu.memory_space<vmem>>, vector<32x96xf32>
    %cst_17 = arith.constant dense<0.000000e+00> : vector<10x96xf32>
    %40 = tpu.matmul %38, %39, %cst_17 {dimension_numbers = #tpu.dot_dimension_numbers<[1], [0], [0], [1], [0, 0, 1, 1], [], []>} : vector<10x32xf32>, vector<32x96xf32>, vector<10x96xf32> -> vector<10x96xf32>
    %41 = vector.extract_strided_slice %40 {offsets = [0, 0], sizes = [10, 8], strides = [1, 1]} : vector<10x96xf32> to vector<10x8xf32>
    %42 = vector.extract_strided_slice %40 {offsets = [0, 8], sizes = [10, 8], strides = [1, 1]} : vector<10x96xf32> to vector<10x8xf32>
    %43 = vector.extract_strided_slice %40 {offsets = [0, 16], sizes = [10, 8], strides = [1, 1]} : vector<10x96xf32> to vector<10x8xf32>
    %44 = vector.extract_strided_slice %40 {offsets = [0, 24], sizes = [10, 8], strides = [1, 1]} : vector<10x96xf32> to vector<10x8xf32>
    %45 = vector.shape_cast %41 : vector<10x8xf32> to vector<1x10x8xf32>
    %46 = vector.shape_cast %42 : vector<10x8xf32> to vector<1x10x8xf32>
    %47 = vector.shape_cast %43 : vector<10x8xf32> to vector<1x10x8xf32>
    %48 = vector.shape_cast %44 : vector<10x8xf32> to vector<1x10x8xf32>
    %49 = tpu.concatenate %45, %46, %47, %48 in 0 : vector<1x10x8xf32>, vector<1x10x8xf32>, vector<1x10x8xf32>, vector<1x10x8xf32> -> vector<4x10x8xf32>
    %50 = vector.extract_strided_slice %40 {offsets = [0, 32], sizes = [10, 8], strides = [1, 1]} : vector<10x96xf32> to vector<10x8xf32>
    %51 = vector.extract_strided_slice %40 {offsets = [0, 40], sizes = [10, 8], strides = [1, 1]} : vector<10x96xf32> to vector<10x8xf32>
    %52 = vector.extract_strided_slice %40 {offsets = [0, 48], sizes = [10, 8], strides = [1, 1]} : vector<10x96xf32> to vector<10x8xf32>
    %53 = vector.extract_strided_slice %40 {offsets = [0, 56], sizes = [10, 8], strides = [1, 1]} : vector<10x96xf32> to vector<10x8xf32>
    %54 = vector.shape_cast %50 : vector<10x8xf32> to vector<1x10x8xf32>
    %55 = vector.shape_cast %51 : vector<10x8xf32> to vector<1x10x8xf32>
    %56 = vector.shape_cast %52 : vector<10x8xf32> to vector<1x10x8xf32>
    %57 = vector.shape_cast %53 : vector<10x8xf32> to vector<1x10x8xf32>
    %58 = tpu.concatenate %54, %55, %56, %57 in 0 : vector<1x10x8xf32>, vector<1x10x8xf32>, vector<1x10x8xf32>, vector<1x10x8xf32> -> vector<4x10x8xf32>
    %59 = vector.extract_strided_slice %40 {offsets = [0, 64], sizes = [10, 8], strides = [1, 1]} : vector<10x96xf32> to vector<10x8xf32>
    %60 = vector.extract_strided_slice %40 {offsets = [0, 72], sizes = [10, 8], strides = [1, 1]} : vector<10x96xf32> to vector<10x8xf32>
    %61 = vector.extract_strided_slice %40 {offsets = [0, 80], sizes = [10, 8], strides = [1, 1]} : vector<10x96xf32> to vector<10x8xf32>
    %62 = vector.extract_strided_slice %40 {offsets = [0, 88], sizes = [10, 8], strides = [1, 1]} : vector<10x96xf32> to vector<10x8xf32>
    %63 = vector.shape_cast %59 : vector<10x8xf32> to vector<1x10x8xf32>
    %64 = vector.shape_cast %60 : vector<10x8xf32> to vector<1x10x8xf32>
    %65 = vector.shape_cast %61 : vector<10x8xf32> to vector<1x10x8xf32>
    %66 = vector.shape_cast %62 : vector<10x8xf32> to vector<1x10x8xf32>
    %67 = tpu.concatenate %63, %64, %65, %66 in 0 : vector<1x10x8xf32>, vector<1x10x8xf32>, vector<1x10x8xf32>, vector<1x10x8xf32> -> vector<4x10x8xf32>
    "tpu.trace_start"() <{level = 10 : i32, message = "hqd,hkd->hqk"}> : () -> ()
    %cst_18 = arith.constant dense<0.000000e+00> : vector<4x10x10xf32>
    %68 = tpu.matmul %49, %58, %cst_18 {dimension_numbers = #tpu.dot_dimension_numbers<[2], [2], [1], [1], [0, 0, 0, 1, 1, 1], [0], [0]>} : vector<4x10x8xf32>, vector<4x10x8xf32>, vector<4x10x10xf32> -> vector<4x10x10xf32>
    "tpu.trace_stop"() : () -> ()
    %cst_19 = arith.constant 0.353553385 : f32
    %69 = vector.broadcast %cst_19 : f32 to vector<4x10x10xf32>
    %70 = arith.mulf %68, %69 : vector<4x10x10xf32>
    %71 = arith.addf %70, %14 : vector<4x10x10xf32>
    %cst_20 = arith.constant dense<0xFF800000> : vector<4x10xf32>
    %72 = vector.multi_reduction <maximumf>, %71, %cst_20 [2] : vector<4x10x10xf32> to vector<4x10xf32>
    %73 = vector.shape_cast %72 : vector<4x10xf32> to vector<4x10x1xf32>
    %74 = vector.broadcast %73 : vector<4x10x1xf32> to vector<4x10x10xf32>
    %75 = arith.subf %71, %74 : vector<4x10x10xf32>
    %76 = math.exp %75 : vector<4x10x10xf32>
    %cst_21 = arith.constant dense<0.000000e+00> : vector<4x10xf32>
    %77 = vector.multi_reduction <add>, %76, %cst_21 [2] : vector<4x10x10xf32> to vector<4x10xf32>
    %78 = vector.shape_cast %77 : vector<4x10xf32> to vector<4x10x1xf32>
    %79 = tpu.reciprocal %78 {approx = true} : vector<4x10x1xf32> -> vector<4x10x1xf32>
    %80 = vector.broadcast %79 : vector<4x10x1xf32> to vector<4x10x10xf32>
    %81 = arith.mulf %76, %80 : vector<4x10x10xf32>
    "tpu.trace_start"() <{level = 10 : i32, message = "hqk,hkd->hqd"}> : () -> ()
    %cst_22 = arith.constant dense<0.000000e+00> : vector<4x10x8xf32>
    %82 = tpu.matmul %81, %67, %cst_22 {dimension_numbers = #tpu.dot_dimension_numbers<[2], [1], [1], [2], [0, 0, 0, 1, 1, 2], [0], [0]>} : vector<4x10x10xf32>, vector<4x10x8xf32>, vector<4x10x8xf32> -> vector<4x10x8xf32>
    "tpu.trace_stop"() : () -> ()
    %83 = vector.extract_strided_slice %82 {offsets = [0, 0, 0], sizes = [1, 10, 8], strides = [1, 1, 1]} : vector<4x10x8xf32> to vector<1x10x8xf32>
    %84 = vector.shape_cast %83 : vector<1x10x8xf32> to vector<10x8xf32>
    %85 = vector.extract_strided_slice %82 {offsets = [1, 0, 0], sizes = [1, 10, 8], strides = [1, 1, 1]} : vector<4x10x8xf32> to vector<1x10x8xf32>
    %86 = vector.shape_cast %85 : vector<1x10x8xf32> to vector<10x8xf32>
    %87 = vector.extract_strided_slice %82 {offsets = [2, 0, 0], sizes = [1, 10, 8], strides = [1, 1, 1]} : vector<4x10x8xf32> to vector<1x10x8xf32>
    %88 = vector.shape_cast %87 : vector<1x10x8xf32> to vector<10x8xf32>
    %89 = vector.extract_strided_slice %82 {offsets = [3, 0, 0], sizes = [1, 10, 8], strides = [1, 1, 1]} : vector<4x10x8xf32> to vector<1x10x8xf32>
    %90 = vector.shape_cast %89 : vector<1x10x8xf32> to vector<10x8xf32>
    %91 = tpu.concatenate %84, %86, %88, %90 in 1 : vector<10x8xf32>, vector<10x8xf32>, vector<10x8xf32>, vector<10x8xf32> -> vector<10x32xf32>
    %c256 = arith.constant 256 : index
    %c0_23 = arith.constant 0 : index
    %92 = vector.load %arg2[%c256, %c0_23] : memref<640x128xf32, #tpu.memory_space<vmem>>, vector<32x32xf32>
    %cst_24 = arith.constant dense<0.000000e+00> : vector<10x32xf32>
    %93 = tpu.matmul %91, %92, %cst_24 {dimension_numbers = #tpu.dot_dimension_numbers<[1], [0], [0], [1], [0, 0, 1, 1], [], []>} : vector<10x32xf32>, vector<32x32xf32>, vector<10x32xf32> -> vector<10x32xf32>
    %94 = arith.addf %6, %93 : vector<10x32xf32>
    %c288 = arith.constant 288 : index
    %c0_25 = arith.constant 0 : index
    %95 = vector.load %arg2[%c288, %c0_25] : memref<640x128xf32, #tpu.memory_space<vmem>>, vector<1x32xf32>
    %96 = vector.broadcast %95 : vector<1x32xf32> to vector<10x32xf32>
    %97 = arith.addf %94, %96 : vector<10x32xf32>
    %c296 = arith.constant 296 : index
    %c0_26 = arith.constant 0 : index
    %98 = vector.load %arg2[%c296, %c0_26] : memref<640x128xf32, #tpu.memory_space<vmem>>, vector<1x32xf32>
    %c304 = arith.constant 304 : index
    %c0_27 = arith.constant 0 : index
    %99 = vector.load %arg2[%c304, %c0_27] : memref<640x128xf32, #tpu.memory_space<vmem>>, vector<1x32xf32>
    %cst_28 = arith.constant dense<0.000000e+00> : vector<10xf32>
    %100 = vector.multi_reduction <add>, %97, %cst_28 [1] : vector<10x32xf32> to vector<10xf32>
    %101 = vector.shape_cast %100 : vector<10xf32> to vector<10x1xf32>
    %cst_29 = arith.constant 3.200000e+01 : f32
    %102 = vector.broadcast %cst_29 : f32 to vector<10x1xf32>
    %103 = arith.divf %101, %102 : vector<10x1xf32>
    %104 = vector.broadcast %103 : vector<10x1xf32> to vector<10x32xf32>
    %105 = arith.subf %97, %104 : vector<10x32xf32>
    %106 = arith.mulf %105, %105 : vector<10x32xf32>
    %cst_30 = arith.constant dense<0.000000e+00> : vector<10xf32>
    %107 = vector.multi_reduction <add>, %106, %cst_30 [1] : vector<10x32xf32> to vector<10xf32>
    %108 = vector.shape_cast %107 : vector<10xf32> to vector<10x1xf32>
    %cst_31 = arith.constant 3.200000e+01 : f32
    %109 = vector.broadcast %cst_31 : f32 to vector<10x1xf32>
    %110 = arith.divf %108, %109 : vector<10x1xf32>
    %111 = vector.broadcast %103 : vector<10x1xf32> to vector<10x32xf32>
    %112 = arith.subf %97, %111 : vector<10x32xf32>
    %cst_32 = arith.constant 9.99999974E-6 : f32
    %113 = vector.broadcast %cst_32 : f32 to vector<10x1xf32>
    %114 = arith.addf %110, %113 : vector<10x1xf32>
    %115 = math.rsqrt %114 : vector<10x1xf32>
    %116 = vector.broadcast %115 : vector<10x1xf32> to vector<10x32xf32>
    %117 = arith.mulf %112, %116 : vector<10x32xf32>
    %118 = vector.broadcast %98 : vector<1x32xf32> to vector<10x32xf32>
    %119 = arith.mulf %117, %118 : vector<10x32xf32>
    %120 = vector.broadcast %99 : vector<1x32xf32> to vector<10x32xf32>
    %121 = arith.addf %119, %120 : vector<10x32xf32>
    %c312 = arith.constant 312 : index
    %c0_33 = arith.constant 0 : index
    %122 = vector.load %arg2[%c312, %c0_33] : memref<640x128xf32, #tpu.memory_space<vmem>>, vector<32x64xf32>
    %cst_34 = arith.constant dense<0.000000e+00> : vector<10x64xf32>
    %123 = tpu.matmul %121, %122, %cst_34 {dimension_numbers = #tpu.dot_dimension_numbers<[1], [0], [0], [1], [0, 0, 1, 1], [], []>} : vector<10x32xf32>, vector<32x64xf32>, vector<10x64xf32> -> vector<10x64xf32>
    %c344 = arith.constant 344 : index
    %c0_35 = arith.constant 0 : index
    %124 = vector.load %arg2[%c344, %c0_35] : memref<640x128xf32, #tpu.memory_space<vmem>>, vector<1x64xf32>
    %125 = vector.broadcast %124 : vector<1x64xf32> to vector<10x64xf32>
    %126 = arith.addf %123, %125 : vector<10x64xf32>
    %cst_36 = arith.constant 5.000000e-01 : f32
    %127 = vector.broadcast %cst_36 : f32 to vector<10x64xf32>
    %128 = arith.mulf %127, %126 : vector<10x64xf32>
    %cst_37 = arith.constant 0.707106769 : f32
    %129 = vector.broadcast %cst_37 : f32 to vector<10x64xf32>
    %130 = arith.mulf %126, %129 : vector<10x64xf32>
    %cst_38 = arith.constant 0.000000e+00 : f32
    %131 = vector.broadcast %cst_38 : f32 to vector<10x64xf32>
    %132 = arith.cmpf oge, %130, %131 : vector<10x64xf32>
    %cst_39 = arith.constant 1.000000e+00 : f32
    %cst_40 = arith.constant -1.000000e+00 : f32
    %133 = vector.broadcast %cst_39 : f32 to vector<10x64xf32>
    %134 = vector.broadcast %cst_40 : f32 to vector<10x64xf32>
    %135 = arith.select %132, %133, %134 : vector<10x64xi1>, vector<10x64xf32>
    %136 = math.absf %130 : vector<10x64xf32>
    %cst_41 = arith.constant 0.327591091 : f32
    %137 = vector.broadcast %cst_41 : f32 to vector<10x64xf32>
    %138 = arith.mulf %137, %136 : vector<10x64xf32>
    %cst_42 = arith.constant 1.000000e+00 : f32
    %139 = vector.broadcast %cst_42 : f32 to vector<10x64xf32>
    %140 = arith.addf %139, %138 : vector<10x64xf32>
    %cst_43 = arith.constant 1.000000e+00 : f32
    %141 = vector.broadcast %cst_43 : f32 to vector<10x64xf32>
    %142 = arith.divf %141, %140 : vector<10x64xf32>
    %cst_44 = arith.constant 1.06140542 : f32
    %143 = vector.broadcast %cst_44 : f32 to vector<10x64xf32>
    %144 = arith.mulf %143, %142 : vector<10x64xf32>
    %cst_45 = arith.constant 1.45315206 : f32
    %145 = vector.broadcast %cst_45 : f32 to vector<10x64xf32>
    %146 = arith.subf %144, %145 : vector<10x64xf32>
    %147 = arith.mulf %146, %142 : vector<10x64xf32>
    %cst_46 = arith.constant 1.42141378 : f32
    %148 = vector.broadcast %cst_46 : f32 to vector<10x64xf32>
    %149 = arith.addf %147, %148 : vector<10x64xf32>
    %150 = arith.mulf %149, %142 : vector<10x64xf32>
    %cst_47 = arith.constant 0.284496725 : f32
    %151 = vector.broadcast %cst_47 : f32 to vector<10x64xf32>
    %152 = arith.subf %150, %151 : vector<10x64xf32>
    %153 = arith.mulf %152, %142 : vector<10x64xf32>
    %cst_48 = arith.constant 0.254829586 : f32
    %154 = vector.broadcast %cst_48 : f32 to vector<10x64xf32>
    %155 = arith.addf %153, %154 : vector<10x64xf32>
    %156 = arith.mulf %155, %142 : vector<10x64xf32>
    %cst_49 = arith.constant 0.000000e+00 : f32
    %157 = vector.broadcast %cst_49 : f32 to vector<10x64xf32>
    %158 = arith.subf %157, %136 : vector<10x64xf32>
    %159 = arith.mulf %158, %136 : vector<10x64xf32>
    %160 = math.exp %159 : vector<10x64xf32>
    %161 = arith.mulf %156, %160 : vector<10x64xf32>
    %cst_50 = arith.constant 1.000000e+00 : f32
    %162 = vector.broadcast %cst_50 : f32 to vector<10x64xf32>
    %163 = arith.subf %162, %161 : vector<10x64xf32>
    %164 = arith.mulf %135, %163 : vector<10x64xf32>
    %cst_51 = arith.constant 1.000000e+00 : f32
    %165 = vector.broadcast %cst_51 : f32 to vector<10x64xf32>
    %166 = arith.addf %165, %164 : vector<10x64xf32>
    %167 = arith.mulf %128, %166 : vector<10x64xf32>
    %c352 = arith.constant 352 : index
    %c0_52 = arith.constant 0 : index
    %168 = vector.load %arg2[%c352, %c0_52] : memref<640x128xf32, #tpu.memory_space<vmem>>, vector<64x32xf32>
    %cst_53 = arith.constant dense<0.000000e+00> : vector<10x32xf32>
    %169 = tpu.matmul %167, %168, %cst_53 {dimension_numbers = #tpu.dot_dimension_numbers<[1], [0], [0], [1], [0, 0, 1, 1], [], []>} : vector<10x64xf32>, vector<64x32xf32>, vector<10x32xf32> -> vector<10x32xf32>
    %c416 = arith.constant 416 : index
    %c0_54 = arith.constant 0 : index
    %170 = vector.load %arg2[%c416, %c0_54] : memref<640x128xf32, #tpu.memory_space<vmem>>, vector<1x32xf32>
    %171 = vector.broadcast %170 : vector<1x32xf32> to vector<10x32xf32>
    %172 = arith.addf %169, %171 : vector<10x32xf32>
    %173 = arith.addf %97, %172 : vector<10x32xf32>
    %c424 = arith.constant 424 : index
    %c0_55 = arith.constant 0 : index
    %174 = vector.load %arg2[%c424, %c0_55] : memref<640x128xf32, #tpu.memory_space<vmem>>, vector<1x32xf32>
    %c432 = arith.constant 432 : index
    %c0_56 = arith.constant 0 : index
    %175 = vector.load %arg2[%c432, %c0_56] : memref<640x128xf32, #tpu.memory_space<vmem>>, vector<1x32xf32>
    %cst_57 = arith.constant dense<0.000000e+00> : vector<10xf32>
    %176 = vector.multi_reduction <add>, %173, %cst_57 [1] : vector<10x32xf32> to vector<10xf32>
    %177 = vector.shape_cast %176 : vector<10xf32> to vector<10x1xf32>
    %cst_58 = arith.constant 3.200000e+01 : f32
    %178 = vector.broadcast %cst_58 : f32 to vector<10x1xf32>
    %179 = arith.divf %177, %178 : vector<10x1xf32>
    %180 = vector.broadcast %179 : vector<10x1xf32> to vector<10x32xf32>
    %181 = arith.subf %173, %180 : vector<10x32xf32>
    %182 = arith.mulf %181, %181 : vector<10x32xf32>
    %cst_59 = arith.constant dense<0.000000e+00> : vector<10xf32>
    %183 = vector.multi_reduction <add>, %182, %cst_59 [1] : vector<10x32xf32> to vector<10xf32>
    %184 = vector.shape_cast %183 : vector<10xf32> to vector<10x1xf32>
    %cst_60 = arith.constant 3.200000e+01 : f32
    %185 = vector.broadcast %cst_60 : f32 to vector<10x1xf32>
    %186 = arith.divf %184, %185 : vector<10x1xf32>
    %187 = vector.broadcast %179 : vector<10x1xf32> to vector<10x32xf32>
    %188 = arith.subf %173, %187 : vector<10x32xf32>
    %cst_61 = arith.constant 9.99999974E-6 : f32
    %189 = vector.broadcast %cst_61 : f32 to vector<10x1xf32>
    %190 = arith.addf %186, %189 : vector<10x1xf32>
    %191 = math.rsqrt %190 : vector<10x1xf32>
    %192 = vector.broadcast %191 : vector<10x1xf32> to vector<10x32xf32>
    %193 = arith.mulf %188, %192 : vector<10x32xf32>
    %194 = vector.broadcast %174 : vector<1x32xf32> to vector<10x32xf32>
    %195 = arith.mulf %193, %194 : vector<10x32xf32>
    %196 = vector.broadcast %175 : vector<1x32xf32> to vector<10x32xf32>
    %197 = arith.addf %195, %196 : vector<10x32xf32>
    %c440 = arith.constant 440 : index
    %c0_62 = arith.constant 0 : index
    %198 = vector.load %arg2[%c440, %c0_62] : memref<640x128xf32, #tpu.memory_space<vmem>>, vector<32x96xf32>
    %cst_63 = arith.constant dense<0.000000e+00> : vector<10x96xf32>
    %199 = tpu.matmul %197, %198, %cst_63 {dimension_numbers = #tpu.dot_dimension_numbers<[1], [0], [0], [1], [0, 0, 1, 1], [], []>} : vector<10x32xf32>, vector<32x96xf32>, vector<10x96xf32> -> vector<10x96xf32>
    %200 = vector.extract_strided_slice %199 {offsets = [0, 0], sizes = [10, 8], strides = [1, 1]} : vector<10x96xf32> to vector<10x8xf32>
    %201 = vector.extract_strided_slice %199 {offsets = [0, 8], sizes = [10, 8], strides = [1, 1]} : vector<10x96xf32> to vector<10x8xf32>
    %202 = vector.extract_strided_slice %199 {offsets = [0, 16], sizes = [10, 8], strides = [1, 1]} : vector<10x96xf32> to vector<10x8xf32>
    %203 = vector.extract_strided_slice %199 {offsets = [0, 24], sizes = [10, 8], strides = [1, 1]} : vector<10x96xf32> to vector<10x8xf32>
    %204 = vector.shape_cast %200 : vector<10x8xf32> to vector<1x10x8xf32>
    %205 = vector.shape_cast %201 : vector<10x8xf32> to vector<1x10x8xf32>
    %206 = vector.shape_cast %202 : vector<10x8xf32> to vector<1x10x8xf32>
    %207 = vector.shape_cast %203 : vector<10x8xf32> to vector<1x10x8xf32>
    %208 = tpu.concatenate %204, %205, %206, %207 in 0 : vector<1x10x8xf32>, vector<1x10x8xf32>, vector<1x10x8xf32>, vector<1x10x8xf32> -> vector<4x10x8xf32>
    %209 = vector.extract_strided_slice %199 {offsets = [0, 32], sizes = [10, 8], strides = [1, 1]} : vector<10x96xf32> to vector<10x8xf32>
    %210 = vector.extract_strided_slice %199 {offsets = [0, 40], sizes = [10, 8], strides = [1, 1]} : vector<10x96xf32> to vector<10x8xf32>
    %211 = vector.extract_strided_slice %199 {offsets = [0, 48], sizes = [10, 8], strides = [1, 1]} : vector<10x96xf32> to vector<10x8xf32>
    %212 = vector.extract_strided_slice %199 {offsets = [0, 56], sizes = [10, 8], strides = [1, 1]} : vector<10x96xf32> to vector<10x8xf32>
    %213 = vector.shape_cast %209 : vector<10x8xf32> to vector<1x10x8xf32>
    %214 = vector.shape_cast %210 : vector<10x8xf32> to vector<1x10x8xf32>
    %215 = vector.shape_cast %211 : vector<10x8xf32> to vector<1x10x8xf32>
    %216 = vector.shape_cast %212 : vector<10x8xf32> to vector<1x10x8xf32>
    %217 = tpu.concatenate %213, %214, %215, %216 in 0 : vector<1x10x8xf32>, vector<1x10x8xf32>, vector<1x10x8xf32>, vector<1x10x8xf32> -> vector<4x10x8xf32>
    %218 = vector.extract_strided_slice %199 {offsets = [0, 64], sizes = [10, 8], strides = [1, 1]} : vector<10x96xf32> to vector<10x8xf32>
    %219 = vector.extract_strided_slice %199 {offsets = [0, 72], sizes = [10, 8], strides = [1, 1]} : vector<10x96xf32> to vector<10x8xf32>
    %220 = vector.extract_strided_slice %199 {offsets = [0, 80], sizes = [10, 8], strides = [1, 1]} : vector<10x96xf32> to vector<10x8xf32>
    %221 = vector.extract_strided_slice %199 {offsets = [0, 88], sizes = [10, 8], strides = [1, 1]} : vector<10x96xf32> to vector<10x8xf32>
    %222 = vector.shape_cast %218 : vector<10x8xf32> to vector<1x10x8xf32>
    %223 = vector.shape_cast %219 : vector<10x8xf32> to vector<1x10x8xf32>
    %224 = vector.shape_cast %220 : vector<10x8xf32> to vector<1x10x8xf32>
    %225 = vector.shape_cast %221 : vector<10x8xf32> to vector<1x10x8xf32>
    %226 = tpu.concatenate %222, %223, %224, %225 in 0 : vector<1x10x8xf32>, vector<1x10x8xf32>, vector<1x10x8xf32>, vector<1x10x8xf32> -> vector<4x10x8xf32>
    "tpu.trace_start"() <{level = 10 : i32, message = "hqd,hkd->hqk"}> : () -> ()
    %cst_64 = arith.constant dense<0.000000e+00> : vector<4x10x10xf32>
    %227 = tpu.matmul %208, %217, %cst_64 {dimension_numbers = #tpu.dot_dimension_numbers<[2], [2], [1], [1], [0, 0, 0, 1, 1, 1], [0], [0]>} : vector<4x10x8xf32>, vector<4x10x8xf32>, vector<4x10x10xf32> -> vector<4x10x10xf32>
    "tpu.trace_stop"() : () -> ()
    %cst_65 = arith.constant 0.353553385 : f32
    %228 = vector.broadcast %cst_65 : f32 to vector<4x10x10xf32>
    %229 = arith.mulf %227, %228 : vector<4x10x10xf32>
    %230 = arith.addf %229, %14 : vector<4x10x10xf32>
    %cst_66 = arith.constant dense<0xFF800000> : vector<4x10xf32>
    %231 = vector.multi_reduction <maximumf>, %230, %cst_66 [2] : vector<4x10x10xf32> to vector<4x10xf32>
    %232 = vector.shape_cast %231 : vector<4x10xf32> to vector<4x10x1xf32>
    %233 = vector.broadcast %232 : vector<4x10x1xf32> to vector<4x10x10xf32>
    %234 = arith.subf %230, %233 : vector<4x10x10xf32>
    %235 = math.exp %234 : vector<4x10x10xf32>
    %cst_67 = arith.constant dense<0.000000e+00> : vector<4x10xf32>
    %236 = vector.multi_reduction <add>, %235, %cst_67 [2] : vector<4x10x10xf32> to vector<4x10xf32>
    %237 = vector.shape_cast %236 : vector<4x10xf32> to vector<4x10x1xf32>
    %238 = tpu.reciprocal %237 {approx = true} : vector<4x10x1xf32> -> vector<4x10x1xf32>
    %239 = vector.broadcast %238 : vector<4x10x1xf32> to vector<4x10x10xf32>
    %240 = arith.mulf %235, %239 : vector<4x10x10xf32>
    "tpu.trace_start"() <{level = 10 : i32, message = "hqk,hkd->hqd"}> : () -> ()
    %cst_68 = arith.constant dense<0.000000e+00> : vector<4x10x8xf32>
    %241 = tpu.matmul %240, %226, %cst_68 {dimension_numbers = #tpu.dot_dimension_numbers<[2], [1], [1], [2], [0, 0, 0, 1, 1, 2], [0], [0]>} : vector<4x10x10xf32>, vector<4x10x8xf32>, vector<4x10x8xf32> -> vector<4x10x8xf32>
    "tpu.trace_stop"() : () -> ()
    %242 = vector.extract_strided_slice %241 {offsets = [0, 0, 0], sizes = [1, 10, 8], strides = [1, 1, 1]} : vector<4x10x8xf32> to vector<1x10x8xf32>
    %243 = vector.shape_cast %242 : vector<1x10x8xf32> to vector<10x8xf32>
    %244 = vector.extract_strided_slice %241 {offsets = [1, 0, 0], sizes = [1, 10, 8], strides = [1, 1, 1]} : vector<4x10x8xf32> to vector<1x10x8xf32>
    %245 = vector.shape_cast %244 : vector<1x10x8xf32> to vector<10x8xf32>
    %246 = vector.extract_strided_slice %241 {offsets = [2, 0, 0], sizes = [1, 10, 8], strides = [1, 1, 1]} : vector<4x10x8xf32> to vector<1x10x8xf32>
    %247 = vector.shape_cast %246 : vector<1x10x8xf32> to vector<10x8xf32>
    %248 = vector.extract_strided_slice %241 {offsets = [3, 0, 0], sizes = [1, 10, 8], strides = [1, 1, 1]} : vector<4x10x8xf32> to vector<1x10x8xf32>
    %249 = vector.shape_cast %248 : vector<1x10x8xf32> to vector<10x8xf32>
    %250 = tpu.concatenate %243, %245, %247, %249 in 1 : vector<10x8xf32>, vector<10x8xf32>, vector<10x8xf32>, vector<10x8xf32> -> vector<10x32xf32>
    %c472 = arith.constant 472 : index
    %c0_69 = arith.constant 0 : index
    %251 = vector.load %arg2[%c472, %c0_69] : memref<640x128xf32, #tpu.memory_space<vmem>>, vector<32x32xf32>
    %cst_70 = arith.constant dense<0.000000e+00> : vector<10x32xf32>
    %252 = tpu.matmul %250, %251, %cst_70 {dimension_numbers = #tpu.dot_dimension_numbers<[1], [0], [0], [1], [0, 0, 1, 1], [], []>} : vector<10x32xf32>, vector<32x32xf32>, vector<10x32xf32> -> vector<10x32xf32>
    %253 = arith.addf %173, %252 : vector<10x32xf32>
    %c504 = arith.constant 504 : index
    %c0_71 = arith.constant 0 : index
    %254 = vector.load %arg2[%c504, %c0_71] : memref<640x128xf32, #tpu.memory_space<vmem>>, vector<1x32xf32>
    %255 = vector.broadcast %254 : vector<1x32xf32> to vector<10x32xf32>
    %256 = arith.addf %253, %255 : vector<10x32xf32>
    %c512 = arith.constant 512 : index
    %c0_72 = arith.constant 0 : index
    %257 = vector.load %arg2[%c512, %c0_72] : memref<640x128xf32, #tpu.memory_space<vmem>>, vector<1x32xf32>
    %c520 = arith.constant 520 : index
    %c0_73 = arith.constant 0 : index
    %258 = vector.load %arg2[%c520, %c0_73] : memref<640x128xf32, #tpu.memory_space<vmem>>, vector<1x32xf32>
    %cst_74 = arith.constant dense<0.000000e+00> : vector<10xf32>
    %259 = vector.multi_reduction <add>, %256, %cst_74 [1] : vector<10x32xf32> to vector<10xf32>
    %260 = vector.shape_cast %259 : vector<10xf32> to vector<10x1xf32>
    %cst_75 = arith.constant 3.200000e+01 : f32
    %261 = vector.broadcast %cst_75 : f32 to vector<10x1xf32>
    %262 = arith.divf %260, %261 : vector<10x1xf32>
    %263 = vector.broadcast %262 : vector<10x1xf32> to vector<10x32xf32>
    %264 = arith.subf %256, %263 : vector<10x32xf32>
    %265 = arith.mulf %264, %264 : vector<10x32xf32>
    %cst_76 = arith.constant dense<0.000000e+00> : vector<10xf32>
    %266 = vector.multi_reduction <add>, %265, %cst_76 [1] : vector<10x32xf32> to vector<10xf32>
    %267 = vector.shape_cast %266 : vector<10xf32> to vector<10x1xf32>
    %cst_77 = arith.constant 3.200000e+01 : f32
    %268 = vector.broadcast %cst_77 : f32 to vector<10x1xf32>
    %269 = arith.divf %267, %268 : vector<10x1xf32>
    %270 = vector.broadcast %262 : vector<10x1xf32> to vector<10x32xf32>
    %271 = arith.subf %256, %270 : vector<10x32xf32>
    %cst_78 = arith.constant 9.99999974E-6 : f32
    %272 = vector.broadcast %cst_78 : f32 to vector<10x1xf32>
    %273 = arith.addf %269, %272 : vector<10x1xf32>
    %274 = math.rsqrt %273 : vector<10x1xf32>
    %275 = vector.broadcast %274 : vector<10x1xf32> to vector<10x32xf32>
    %276 = arith.mulf %271, %275 : vector<10x32xf32>
    %277 = vector.broadcast %257 : vector<1x32xf32> to vector<10x32xf32>
    %278 = arith.mulf %276, %277 : vector<10x32xf32>
    %279 = vector.broadcast %258 : vector<1x32xf32> to vector<10x32xf32>
    %280 = arith.addf %278, %279 : vector<10x32xf32>
    %c528 = arith.constant 528 : index
    %c0_79 = arith.constant 0 : index
    %281 = vector.load %arg2[%c528, %c0_79] : memref<640x128xf32, #tpu.memory_space<vmem>>, vector<32x64xf32>
    %cst_80 = arith.constant dense<0.000000e+00> : vector<10x64xf32>
    %282 = tpu.matmul %280, %281, %cst_80 {dimension_numbers = #tpu.dot_dimension_numbers<[1], [0], [0], [1], [0, 0, 1, 1], [], []>} : vector<10x32xf32>, vector<32x64xf32>, vector<10x64xf32> -> vector<10x64xf32>
    %c560 = arith.constant 560 : index
    %c0_81 = arith.constant 0 : index
    %283 = vector.load %arg2[%c560, %c0_81] : memref<640x128xf32, #tpu.memory_space<vmem>>, vector<1x64xf32>
    %284 = vector.broadcast %283 : vector<1x64xf32> to vector<10x64xf32>
    %285 = arith.addf %282, %284 : vector<10x64xf32>
    %cst_82 = arith.constant 5.000000e-01 : f32
    %286 = vector.broadcast %cst_82 : f32 to vector<10x64xf32>
    %287 = arith.mulf %286, %285 : vector<10x64xf32>
    %cst_83 = arith.constant 0.707106769 : f32
    %288 = vector.broadcast %cst_83 : f32 to vector<10x64xf32>
    %289 = arith.mulf %285, %288 : vector<10x64xf32>
    %cst_84 = arith.constant 0.000000e+00 : f32
    %290 = vector.broadcast %cst_84 : f32 to vector<10x64xf32>
    %291 = arith.cmpf oge, %289, %290 : vector<10x64xf32>
    %cst_85 = arith.constant 1.000000e+00 : f32
    %cst_86 = arith.constant -1.000000e+00 : f32
    %292 = vector.broadcast %cst_85 : f32 to vector<10x64xf32>
    %293 = vector.broadcast %cst_86 : f32 to vector<10x64xf32>
    %294 = arith.select %291, %292, %293 : vector<10x64xi1>, vector<10x64xf32>
    %295 = math.absf %289 : vector<10x64xf32>
    %cst_87 = arith.constant 0.327591091 : f32
    %296 = vector.broadcast %cst_87 : f32 to vector<10x64xf32>
    %297 = arith.mulf %296, %295 : vector<10x64xf32>
    %cst_88 = arith.constant 1.000000e+00 : f32
    %298 = vector.broadcast %cst_88 : f32 to vector<10x64xf32>
    %299 = arith.addf %298, %297 : vector<10x64xf32>
    %cst_89 = arith.constant 1.000000e+00 : f32
    %300 = vector.broadcast %cst_89 : f32 to vector<10x64xf32>
    %301 = arith.divf %300, %299 : vector<10x64xf32>
    %cst_90 = arith.constant 1.06140542 : f32
    %302 = vector.broadcast %cst_90 : f32 to vector<10x64xf32>
    %303 = arith.mulf %302, %301 : vector<10x64xf32>
    %cst_91 = arith.constant 1.45315206 : f32
    %304 = vector.broadcast %cst_91 : f32 to vector<10x64xf32>
    %305 = arith.subf %303, %304 : vector<10x64xf32>
    %306 = arith.mulf %305, %301 : vector<10x64xf32>
    %cst_92 = arith.constant 1.42141378 : f32
    %307 = vector.broadcast %cst_92 : f32 to vector<10x64xf32>
    %308 = arith.addf %306, %307 : vector<10x64xf32>
    %309 = arith.mulf %308, %301 : vector<10x64xf32>
    %cst_93 = arith.constant 0.284496725 : f32
    %310 = vector.broadcast %cst_93 : f32 to vector<10x64xf32>
    %311 = arith.subf %309, %310 : vector<10x64xf32>
    %312 = arith.mulf %311, %301 : vector<10x64xf32>
    %cst_94 = arith.constant 0.254829586 : f32
    %313 = vector.broadcast %cst_94 : f32 to vector<10x64xf32>
    %314 = arith.addf %312, %313 : vector<10x64xf32>
    %315 = arith.mulf %314, %301 : vector<10x64xf32>
    %cst_95 = arith.constant 0.000000e+00 : f32
    %316 = vector.broadcast %cst_95 : f32 to vector<10x64xf32>
    %317 = arith.subf %316, %295 : vector<10x64xf32>
    %318 = arith.mulf %317, %295 : vector<10x64xf32>
    %319 = math.exp %318 : vector<10x64xf32>
    %320 = arith.mulf %315, %319 : vector<10x64xf32>
    %cst_96 = arith.constant 1.000000e+00 : f32
    %321 = vector.broadcast %cst_96 : f32 to vector<10x64xf32>
    %322 = arith.subf %321, %320 : vector<10x64xf32>
    %323 = arith.mulf %294, %322 : vector<10x64xf32>
    %cst_97 = arith.constant 1.000000e+00 : f32
    %324 = vector.broadcast %cst_97 : f32 to vector<10x64xf32>
    %325 = arith.addf %324, %323 : vector<10x64xf32>
    %326 = arith.mulf %287, %325 : vector<10x64xf32>
    %c568 = arith.constant 568 : index
    %c0_98 = arith.constant 0 : index
    %327 = vector.load %arg2[%c568, %c0_98] : memref<640x128xf32, #tpu.memory_space<vmem>>, vector<64x32xf32>
    %cst_99 = arith.constant dense<0.000000e+00> : vector<10x32xf32>
    %328 = tpu.matmul %326, %327, %cst_99 {dimension_numbers = #tpu.dot_dimension_numbers<[1], [0], [0], [1], [0, 0, 1, 1], [], []>} : vector<10x64xf32>, vector<64x32xf32>, vector<10x32xf32> -> vector<10x32xf32>
    %c632 = arith.constant 632 : index
    %c0_100 = arith.constant 0 : index
    %329 = vector.load %arg2[%c632, %c0_100] : memref<640x128xf32, #tpu.memory_space<vmem>>, vector<1x32xf32>
    %330 = vector.broadcast %329 : vector<1x32xf32> to vector<10x32xf32>
    %331 = arith.addf %328, %330 : vector<10x32xf32>
    %332 = arith.addf %256, %331 : vector<10x32xf32>
    %cst_101 = arith.constant dense<0.000000e+00> : vector<10xf32>
    %333 = vector.multi_reduction <add>, %332, %cst_101 [1] : vector<10x32xf32> to vector<10xf32>
    %334 = vector.shape_cast %333 : vector<10xf32> to vector<10x1xf32>
    %cst_102 = arith.constant dense<0.000000e+00> : vector<10x1xf32>
    %335 = tpu.matmul %7, %334, %cst_102 {dimension_numbers = #tpu.dot_dimension_numbers<[1], [0], [0], [1], [0, 0, 1, 1], [], []>} : vector<10x10xf32>, vector<10x1xf32>, vector<10x1xf32> -> vector<10x1xf32>
    %cst_103 = arith.constant 6.250000e-03 : f32
    %336 = vector.broadcast %cst_103 : f32 to vector<10x1xf32>
    %337 = arith.mulf %335, %336 : vector<10x1xf32>
    %338 = vector.broadcast %337 : vector<10x1xf32> to vector<10x32xf32>
    %339 = arith.subf %332, %338 : vector<10x32xf32>
    %340 = arith.mulf %339, %339 : vector<10x32xf32>
    %cst_104 = arith.constant dense<0.000000e+00> : vector<10xf32>
    %341 = vector.multi_reduction <add>, %340, %cst_104 [1] : vector<10x32xf32> to vector<10xf32>
    %342 = vector.shape_cast %341 : vector<10xf32> to vector<10x1xf32>
    %cst_105 = arith.constant dense<0.000000e+00> : vector<10x1xf32>
    %343 = tpu.matmul %7, %342, %cst_105 {dimension_numbers = #tpu.dot_dimension_numbers<[1], [0], [0], [1], [0, 0, 1, 1], [], []>} : vector<10x10xf32>, vector<10x1xf32>, vector<10x1xf32> -> vector<10x1xf32>
    %cst_106 = arith.constant 6.250000e-03 : f32
    %344 = vector.broadcast %cst_106 : f32 to vector<10x1xf32>
    %345 = arith.mulf %343, %344 : vector<10x1xf32>
    %cst_107 = arith.constant 9.99999974E-6 : f32
    %346 = vector.broadcast %cst_107 : f32 to vector<10x1xf32>
    %347 = arith.addf %345, %346 : vector<10x1xf32>
    %348 = math.rsqrt %347 : vector<10x1xf32>
    %349 = vector.broadcast %348 : vector<10x1xf32> to vector<10x32xf32>
    %350 = arith.mulf %339, %349 : vector<10x32xf32>
    %c88 = arith.constant 88 : index
    %c0_108 = arith.constant 0 : index
    %351 = vector.load %arg2[%c88, %c0_108] : memref<640x128xf32, #tpu.memory_space<vmem>>, vector<10x32xf32>
    %352 = arith.mulf %350, %351 : vector<10x32xf32>
    %c104 = arith.constant 104 : index
    %c0_109 = arith.constant 0 : index
    %353 = vector.load %arg2[%c104, %c0_109] : memref<640x128xf32, #tpu.memory_space<vmem>>, vector<10x32xf32>
    %354 = arith.addf %352, %353 : vector<10x32xf32>
    %c120 = arith.constant 120 : index
    %c0_110 = arith.constant 0 : index
    %355 = vector.load %arg2[%c120, %c0_110] : memref<640x128xf32, #tpu.memory_space<vmem>>, vector<32x30xf32>
    %cst_111 = arith.constant dense<0.000000e+00> : vector<10x30xf32>
    %356 = tpu.matmul %354, %355, %cst_111 {dimension_numbers = #tpu.dot_dimension_numbers<[1], [0], [0], [1], [0, 0, 1, 1], [], []>} : vector<10x32xf32>, vector<32x30xf32>, vector<10x30xf32> -> vector<10x30xf32>
    %c152 = arith.constant 152 : index
    %c0_112 = arith.constant 0 : index
    %357 = vector.load %arg2[%c152, %c0_112] : memref<640x128xf32, #tpu.memory_space<vmem>>, vector<10x30xf32>
    %358 = arith.mulf %356, %357 : vector<10x30xf32>
    %c80 = arith.constant 80 : index
    %c0_113 = arith.constant 0 : index
    %359 = vector.load %arg2[%c80, %c0_113] : memref<640x128xf32, #tpu.memory_space<vmem>>, vector<2x10xf32>
    %cst_114 = arith.constant dense<0.000000e+00> : vector<2x30xf32>
    %360 = tpu.matmul %359, %358, %cst_114 {dimension_numbers = #tpu.dot_dimension_numbers<[1], [0], [0], [1], [0, 0, 1, 1], [], []>} : vector<2x10xf32>, vector<10x30xf32>, vector<2x30xf32> -> vector<2x30xf32>
    %c168 = arith.constant 168 : index
    %c0_115 = arith.constant 0 : index
    %361 = vector.load %arg2[%c168, %c0_115] : memref<640x128xf32, #tpu.memory_space<vmem>>, vector<30x6xf32>
    %cst_116 = arith.constant dense<0.000000e+00> : vector<2x6xf32>
    %362 = tpu.matmul %360, %361, %cst_116 {dimension_numbers = #tpu.dot_dimension_numbers<[1], [0], [0], [1], [0, 0, 1, 1], [], []>} : vector<2x30xf32>, vector<30x6xf32>, vector<2x6xf32> -> vector<2x6xf32>
    %c200 = arith.constant 200 : index
    %c0_117 = arith.constant 0 : index
    %363 = vector.load %arg2[%c200, %c0_117] : memref<640x128xf32, #tpu.memory_space<vmem>>, vector<1x6xf32>
    %364 = vector.broadcast %363 : vector<1x6xf32> to vector<2x6xf32>
    %365 = arith.addf %362, %364 : vector<2x6xf32>
    %c0_118 = arith.constant 0 : index
    %c0_119 = arith.constant 0 : index
    %c0_120 = arith.constant 0 : index
    %366 = vector.load %arg3[%c0_118, %c0_119, %c0_120] : memref<2x1x6xf32, #tpu.memory_space<vmem>>, vector<2x1x6xf32>
    %367 = vector.shape_cast %366 : vector<2x1x6xf32> to vector<2x6xf32>
    %368 = vector.shape_cast %365 : vector<2x6xf32> to vector<2x1x6xf32>
    tpu.vector_store %arg3[%c0_118, %c0_119, %c0_120], %368 {strides = array<i32>} : memref<2x1x6xf32, #tpu.memory_space<vmem>>, vector<2x1x6xf32>,
    return
  }
  func.func @transform_0(%arg0: i32) -> (i32, i32) {
    %c0_i32 = arith.constant 0 : i32
    %c0_i32_0 = arith.constant 0 : i32
    %c0_i32_1 = arith.constant 0 : i32
    return %c0_i32, %c0_i32_0 : i32, i32
  }
  func.func @transform_1(%arg0: i32) -> (i32, i32) {
    %c0_i32 = arith.constant 0 : i32
    %c0_i32_0 = arith.constant 0 : i32
    %c0_i32_1 = arith.constant 0 : i32
    return %c0_i32, %c0_i32_0 : i32, i32
  }
  func.func @transform_2(%arg0: i32) -> (i32, i32, i32) {
    %c0_i32 = arith.constant 0 : i32
    %c0_i32_0 = arith.constant 0 : i32
    %c0_i32_1 = arith.constant 0 : i32
    return %arg0, %c0_i32, %c0_i32_0 : i32, i32, i32
  }
}

</mosaic_0001>

<llo_original>
// kernel: wrt_forward.1
$region0: #{wrt_forward.1}
  #allocation0 [shape = 'u32[]', space=smem, size = 0x4, offset = 0x4, fixed_abs, tag = 'smem constant byte address 0x4 - core index']
  #allocation1 [shape = 'u32[144,128]{1,0:T(1,128)}', space=vmem, size = 0x12000, scoped, tag = 'internal scratch']
  %s0 = inlined_call_operand.vmem [shape: f32[8,32], index: 0, kind: input, shape index: {}]
  %s1 = inlined_call_operand.hbm [shape: f32[640,128], index: 1, kind: input, shape index: {}]
  %s2 = inlined_call_operand.hbm [shape: f32[2,1,6], index: 2, kind: output, shape index: {}]
  %s3 = sld [smem:[#allocation0]]
  $region22: #{wrt_forward.1} parent=0
    _
  %s5 = ssub.s32 1, %s3
  %s6 = scalar_select 0, %s5, %s3
  $region1: #{wrt_forward.1} parent=0
    #allocation2 [shape = 'u8[327680]{0}', space=vmem, size = 0x50000, scoped, tag = 'input window, operand 1, single buffered']
    #allocation3 [shape = 's32[1]{0}', space=sflag, size = 0x4, scoped, tag = 'scoped memory for wrt_forward.1']
    #allocation4 [shape = 's32[1]{0}', space=sflag, size = 0x4, scoped, tag = 'scoped memory for wrt_forward.1']
    #allocation5 [shape = 'u8[1024]{0}', space=vmem, size = 0x400, scoped, tag = 'output window, operand 0, single buffered']
    %7 = vsyncpa [#allocation3], 0
    %8 = vsyncpa [#allocation4], 0
    // Predicated region
    $region2: #{wrt_forward.1} parent=1 // pred_check
      _
    $region3: #{wrt_forward.1} parent=1 // pred_check_branch
      %10 = sbr.rel (0) target = $region5
    $region4: #{wrt_forward.1} parent=1 // pred_region
      _
    $region5: #{wrt_forward.1} parent=1 // pred_fallthru
      _
    // Predicated region
    $region6: #{wrt_forward.1} parent=1 // pred_check
      _
    $region7: #{wrt_forward.1} parent=1 // pred_check_branch
      %12 = sbr.rel (0) target = $region9
    $region8: #{wrt_forward.1} parent=1 // pred_region
      %s14 = ssub.s32 10240, 10240
      %15 = vsyncadd [#allocation3], %s14
      %s16 = sshll.u32 [#allocation2], 4
      %s17 = int_to_ptr.vmem [resolvable:$true] %s16
      %22 = dma.hbm_to_vmem [thread:$0]  %s1, 10240, %s17, [#allocation3], 128, 128, 8
    $region9: #{wrt_forward.1} parent=1 // pred_fallthru
      _
    // Predicated region
    $region10: #{wrt_forward.1} parent=1 // pred_check
      _
    $region11: #{wrt_forward.1} parent=1 // pred_check_branch
      %24 = sbr.rel (0) target = $region13
    $region12: #{wrt_forward.1} parent=1 // pred_region
      %25 = dma.done [#allocation3], 10240
    $region13: #{wrt_forward.1} parent=1 // pred_fallthru
      _
    %v26 = vld [vmem:[%s0] sm:$0xff]
    %v27 = vld [vmem:[#allocation2] sm:$0xff]
    %v28 = vld [vmem:[#allocation2 + $0x8] sm:$0xff]
    %v29 = vld [vmem:[#allocation2 + $0x10] sm:$0xff]
    %v30 = vld [vmem:[#allocation2 + $0x18] sm:$0xff]
    %vm31 = vcmask 261120
    %v33 = vsel %vm31, %v26, 0
    %35 = vmatprep.subr.mxu0 0.0
    %36 = vmatpush1.msra.mxu0 %v27
    %37 = vmatprep.subr.mxu0 0.0
    %38 = vmatpush1.msra.mxu0 %v28
    %39 = vmatprep.subr.mxu0 0.0
    %40 = vmatpush1.msra.mxu0 %v29
    %41 = vmatprep.subr.mxu0 0.0
    %42 = vmatpush1.msra.mxu0 %v30
    %43 = vmatprep.subr.mxu0 0.0
    %44 = vmatpush1.msra.mxu0 0.0
    %45 = vmatprep.subr.mxu0 0.0
    %46 = vmatpush1.msra.mxu0 0.0
    %47 = vmatprep.subr.mxu0 0.0
    %48 = vmatpush1.msra.mxu0 0.0
    %49 = vmatprep.subr.mxu0 0.0
    %50 = vmatpush1.msra.mxu0 0.0
    %51 = vmatprep.subr.mxu0 0.0
    %52 = vmatpush1.msra.mxu0 0.0
    %53 = vmatprep.subr.mxu0 0.0
    %54 = vmatpush1.msra.mxu0 0.0
    %55 = vmatprep.subr.mxu0 0.0
    %56 = vmatpush1.msra.mxu0 0.0
    %57 = vmatprep.subr.mxu0 0.0
    %58 = vmatpush1.msra.mxu0 0.0
    %59 = vmatprep.subr.mxu0 0.0
    %60 = vmatpush1.msra.mxu0 0.0
    %61 = vmatprep.subr.mxu0 0.0
    %62 = vmatpush1.msra.mxu0 0.0
    %63 = vmatprep.subr.mxu0 0.0
    %64 = vmatpush1.msra.mxu0 0.0
    %65 = vmatprep.subr.mxu0 0.0
    %66 = vmatpush1.msra.mxu0 0.0
    %67 = vmatprep.subr.mxu0 0.0
    %68 = vmatpush1.msra.mxu0 0.0
    %69 = vmatprep.subr.mxu0 0.0
    %70 = vmatpush1.msra.mxu0 0.0
    %71 = vmatprep.subr.mxu0 0.0
    %72 = vmatpush1.msra.mxu0 0.0
    %73 = vmatprep.subr.mxu0 0.0
    %74 = vmatpush1.msra.mxu0 0.0
    %75 = vmatprep.subr.mxu0 0.0
    %76 = vmatpush1.msra.mxu0 0.0
    %77 = vmatprep.subr.mxu0 0.0
    %78 = vmatpush1.msra.mxu0 0.0
    %79 = vmatprep.subr.mxu0 0.0
    %80 = vmatpush1.msra.mxu0 0.0
    %81 = vmatprep.subr.mxu0 0.0
    %82 = vmatpush1.msra.mxu0 0.0
    %83 = vmatprep.subr.mxu0 0.0
    %84 = vmatpush1.msra.mxu0 0.0
    %85 = vmatprep.subr.mxu0 0.0
    %86 = vmatpush1.msra.mxu0 0.0
    %87 = vmatprep.subr.mxu0 0.0
    %88 = vmatpush1.msra.mxu0 0.0
    %89 = vmatprep.subr.mxu0 0.0
    %90 = vmatpush1.msra.mxu0 0.0
    %91 = vmatprep.subr.mxu0 0.0
    %92 = vmatpush1.msra.mxu0 0.0
    %93 = vmatprep.subr.mxu0 0.0
    %94 = vmatpush1.msra.mxu0 0.0
    %95 = vmatprep.subr.mxu0 0.0
    %96 = vmatpush1.msra.mxu0 0.0
    %97 = vmatprep.subr.mxu0 0.0
    %98 = vmatpush1.msra.mxu0 0.0
    %99 = vmatprep.mubr.f32.mxu0 0.0
    %100 = vmatmul.mubr.f32.gmra.mrb[0].mxu0 %v33
    %v101 = vpop.f32.mrb[0].mxu0
    %v102 = vadd.f32 0.0, %v101
    %v103 = vpop.f32.mrb[0].mxu0
    %104 = vdwg.mxu0
    %v105 = vld [vmem:[#allocation2 + $0x20] sm:$0xff]
    %v106 = vld [vmem:[#allocation2 + $0x28] sm:$0x3]
    %v107 = vld [vmem:[#allocation2 + $0x30] sm:$0xff]
    %v108 = vld [vmem:[#allocation2 + $0x38] sm:$0x3]
    %vm109 = vcmask 64512
    %v111 = vsel %vm109, %v105, 0
    %v114 = vsel %vm109, %v106, 0
    %116 = vmatprep.subr.mxu0 0.0
    %117 = vmatpush1.msra.mxu0 %v102
    %118 = vmatprep.subr.mxu0 0.0
    %119 = vmatpush1.msra.mxu0 0.0
    %120 = vmatprep.subr.mxu0 0.0
    %121 = vmatpush1.msra.mxu0 0.0
    %122 = vmatprep.subr.mxu0 0.0
    %123 = vmatpush1.msra.mxu0 0.0
    %124 = vmatprep.subr.mxu0 0.0
    %125 = vmatpush1.msra.mxu0 0.0
    %126 = vmatprep.subr.mxu0 0.0
    %127 = vmatpush1.msra.mxu0 0.0
    %128 = vmatprep.subr.mxu0 0.0
    %129 = vmatpush1.msra.mxu0 0.0
    %130 = vmatprep.subr.mxu0 0.0
    %131 = vmatpush1.msra.mxu0 0.0
    %132 = vmatprep.subr.mxu0 0.0
    %133 = vmatpush1.msra.mxu0 0.0
    %134 = vmatprep.subr.mxu0 0.0
    %135 = vmatpush1.msra.mxu0 0.0
    %136 = vmatprep.subr.mxu0 0.0
    %137 = vmatpush1.msra.mxu0 0.0
    %138 = vmatprep.subr.mxu0 0.0
    %139 = vmatpush1.msra.mxu0 0.0
    %140 = vmatprep.subr.mxu0 0.0
    %141 = vmatpush1.msra.mxu0 0.0
    %142 = vmatprep.subr.mxu0 0.0
    %143 = vmatpush1.msra.mxu0 0.0
    %144 = vmatprep.subr.mxu0 0.0
    %145 = vmatpush1.msra.mxu0 0.0
    %146 = vmatprep.subr.mxu0 0.0
    %147 = vmatpush1.msra.mxu0 0.0
    %148 = vmatprep.subr.mxu0 0.0
    %149 = vmatpush1.msra.mxu0 0.0
    %150 = vmatprep.subr.mxu0 0.0
    %151 = vmatpush1.msra.mxu0 0.0
    %152 = vmatprep.subr.mxu0 0.0
    %153 = vmatpush1.msra.mxu0 0.0
    %154 = vmatprep.subr.mxu0 0.0
    %155 = vmatpush1.msra.mxu0 0.0
    %156 = vmatprep.subr.mxu0 0.0
    %157 = vmatpush1.msra.mxu0 0.0
    %158 = vmatprep.subr.mxu0 0.0
    %159 = vmatpush1.msra.mxu0 0.0
    %160 = vmatprep.subr.mxu0 0.0
    %161 = vmatpush1.msra.mxu0 0.0
    %162 = vmatprep.subr.mxu0 0.0
    %163 = vmatpush1.msra.mxu0 0.0
    %164 = vmatprep.subr.mxu0 0.0
    %165 = vmatpush1.msra.mxu0 0.0
    %166 = vmatprep.subr.mxu0 0.0
    %167 = vmatpush1.msra.mxu0 0.0
    %168 = vmatprep.subr.mxu0 0.0
    %169 = vmatpush1.msra.mxu0 0.0
    %170 = vmatprep.subr.mxu0 0.0
    %171 = vmatpush1.msra.mxu0 0.0
    %172 = vmatprep.subr.mxu0 0.0
    %173 = vmatpush1.msra.mxu0 0.0
    %174 = vmatprep.subr.mxu0 0.0
    %175 = vmatpush1.msra.mxu0 0.0
    %176 = vmatprep.subr.mxu0 0.0
    %177 = vmatpush1.msra.mxu0 0.0
    %178 = vmatprep.subr.mxu0 0.0
    %179 = vmatpush1.msra.mxu0 0.0
    %180 = vmatprep.mubr.f32.mxu0 0.0
    %181 = vmatmul.mubr.f32.gmra.mrb[0].mxu0 %v111
    %v182 = vpop.f32.mrb[0].mxu0
    %v183 = vadd.f32 %v107, %v182
    %v184 = vpop.f32.mrb[0].mxu0
    %185 = vmatprep.mubr.f32.mxu0 0.0
    %186 = vmatmul.mubr.f32.gmra.mrb[0].mxu0 %v114
    %v187 = vpop.f32.mrb[0].mxu0
    %v188 = vadd.f32 %v108, %v187
    %v189 = vpop.f32.mrb[0].mxu0
    %190 = vdwg.mxu0
    %v191 = vld [vmem:[#allocation2 + $0x40] sm:$0xff]
    %v192 = vld [vmem:[#allocation2 + $0x48] sm:$0x3]
    %v193 = vsub.f32 %v191, 1.0
    %v194 = vsub.f32 %v192, 1.0
    %v195 = vmul.f32 %v193, 1e+30
    %v196 = vmul.f32 %v194, 1e+30
    %v197 = vld [vmem:[#allocation2 + $0xd0] sm:$0x1]
    %v198 = vld [vmem:[#allocation2 + $0xd8] sm:$0x1]
    %v199 = vsel %vm31, %v183, 0.0
    %200 = vadd.xlane.f32.xlu0 %v199
    %v201 = vpop.xlane.xlu0 %200
    %vm202 = vcmask 254976
    %v203 = vsel %vm202, %v188, 0.0
    %204 = vadd.xlane.f32.xlu0 %v203
    %v205 = vpop.xlane.xlu0 %204
    %v206 = vrcp.pop 32.0
    %v207 = vmul.f32 %v201, %v206
    %v208 = vmul.f32 %v205, %v206
    %v209 = vsub.f32 %v183, %v207
    %v210 = vsub.f32 %v188, %v208
    %v211 = vmul.f32 %v209, %v209
    %v212 = vmul.f32 %v210, %v210
    %v213 = vsel %vm31, %v211, 0.0
    %214 = vadd.xlane.f32.xlu0 %v213
    %v215 = vpop.xlane.xlu0 %214
    %v216 = vsel %vm202, %v212, 0.0
    %217 = vadd.xlane.f32.xlu0 %v216
    %v218 = vpop.xlane.xlu0 %217
    %v219 = vmul.f32 %v215, %v206
    %v220 = vmul.f32 %v218, %v206
    %v221 = vadd.f32 %v219, 1e-05
    %v222 = vadd.f32 %v220, 1e-05
    %v223 = vrsqrt.pop %v221
    %v224 = vrsqrt.pop %v222
    %v225 = vmul.f32 %v209, %v223
    %v226 = vmul.f32 %v210, %v224
    %v227 = vlaneseq
    %v228 = vshrl.u32 %v227, 7
    %v229 = vsub.s32 0, %v228
    %v230 = vrot.slane %v197, %v229
    %v231 = vmul.f32 %v225, %v230
    %v232 = vmul.f32 %v226, %v230
    %v233 = vlaneseq
    %v234 = vshrl.u32 %v233, 7
    %v235 = vsub.s32 0, %v234
    %v236 = vrot.slane %v198, %v235
    %v237 = vadd.f32 %v231, %v236
    %v238 = vadd.f32 %v232, %v236
    %v239 = vld [vmem:[#allocation2 + $0xe0] sm:$0xff]
    %v240 = vld [vmem:[#allocation2 + $0xe8] sm:$0xff]
    %v241 = vld [vmem:[#allocation2 + $0xf0] sm:$0xff]
    %v242 = vld [vmem:[#allocation2 + $0xf8] sm:$0xff]
    %v244 = vsel %vm31, %v237, 0
    %v247 = vsel %vm31, %v238, 0
    %249 = vmatprep.subr.mxu0 0.0
    %250 = vmatpush1.msra.mxu0 %v239
    %251 = vmatprep.subr.mxu0 0.0
    %252 = vmatpush1.msra.mxu0 %v240
    %253 = vmatprep.subr.mxu0 0.0
    %254 = vmatpush1.msra.mxu0 %v241
    %255 = vmatprep.subr.mxu0 0.0
    %256 = vmatpush1.msra.mxu0 %v242
    %257 = vmatprep.subr.mxu0 0.0
    %258 = vmatpush1.msra.mxu0 0.0
    %259 = vmatprep.subr.mxu0 0.0
    %260 = vmatpush1.msra.mxu0 0.0
    %261 = vmatprep.subr.mxu0 0.0
    %262 = vmatpush1.msra.mxu0 0.0
    %263 = vmatprep.subr.mxu0 0.0
    %264 = vmatpush1.msra.mxu0 0.0
    %265 = vmatprep.subr.mxu0 0.0
    %266 = vmatpush1.msra.mxu0 0.0
    %267 = vmatprep.subr.mxu0 0.0
    %268 = vmatpush1.msra.mxu0 0.0
    %269 = vmatprep.subr.mxu0 0.0
    %270 = vmatpush1.msra.mxu0 0.0
    %271 = vmatprep.subr.mxu0 0.0
    %272 = vmatpush1.msra.mxu0 0.0
    %273 = vmatprep.subr.mxu0 0.0
    %274 = vmatpush1.msra.mxu0 0.0
    %275 = vmatprep.subr.mxu0 0.0
    %276 = vmatpush1.msra.mxu0 0.0
    %277 = vmatprep.subr.mxu0 0.0
    %278 = vmatpush1.msra.mxu0 0.0
    %279 = vmatprep.subr.mxu0 0.0
    %280 = vmatpush1.msra.mxu0 0.0
    %281 = vmatprep.subr.mxu0 0.0
    %282 = vmatpush1.msra.mxu0 0.0
    %283 = vmatprep.subr.mxu0 0.0
    %284 = vmatpush1.msra.mxu0 0.0
    %285 = vmatprep.subr.mxu0 0.0
    %286 = vmatpush1.msra.mxu0 0.0
    %287 = vmatprep.subr.mxu0 0.0
    %288 = vmatpush1.msra.mxu0 0.0
    %289 = vmatprep.subr.mxu0 0.0
    %290 = vmatpush1.msra.mxu0 0.0
    %291 = vmatprep.subr.mxu0 0.0
    %292 = vmatpush1.msra.mxu0 0.0
    %293 = vmatprep.subr.mxu0 0.0
    %294 = vmatpush1.msra.mxu0 0.0
    %295 = vmatprep.subr.mxu0 0.0
    %296 = vmatpush1.msra.mxu0 0.0
    %297 = vmatprep.subr.mxu0 0.0
    %298 = vmatpush1.msra.mxu0 0.0
    %299 = vmatprep.subr.mxu0 0.0
    %300 = vmatpush1.msra.mxu0 0.0
    %301 = vmatprep.subr.mxu0 0.0
    %302 = vmatpush1.msra.mxu0 0.0
    %303 = vmatprep.subr.mxu0 0.0
    %304 = vmatpush1.msra.mxu0 0.0
    %305 = vmatprep.subr.mxu0 0.0
    %306 = vmatpush1.msra.mxu0 0.0
    %307 = vmatprep.subr.mxu0 0.0
    %308 = vmatpush1.msra.mxu0 0.0
    %309 = vmatprep.subr.mxu0 0.0
    %310 = vmatpush1.msra.mxu0 0.0
    %311 = vmatprep.subr.mxu0 0.0
    %312 = vmatpush1.msra.mxu0 0.0
    %313 = vmatprep.mubr.f32.mxu0 0.0
    %314 = vmatmul.mubr.f32.gmra.mrb[0].mxu0 %v244
    %v315 = vpop.f32.mrb[0].mxu0
    %v316 = vadd.f32 0.0, %v315
    %v317 = vpop.f32.mrb[0].mxu0
    %318 = vmatprep.mubr.f32.mxu0 0.0
    %319 = vmatmul.mubr.f32.gmra.mrb[0].mxu0 %v247
    %v320 = vpop.f32.mrb[0].mxu0
    %v321 = vadd.f32 0.0, %v320
    %v322 = vpop.f32.mrb[0].mxu0
    %323 = vdwg.mxu0
    %326 = vrot.lane.b32.xlu0 %v316, 120
    %v327 = vpop.permute.xlu0 %326
    %328 = vrot.lane.b32.xlu0 %v321, 120
    %v329 = vpop.permute.xlu0 %328
    %330 = vrot.lane.b32.xlu0 %v316, 112
    %v331 = vpop.permute.xlu0 %330
    %332 = vrot.lane.b32.xlu0 %v321, 112
    %v333 = vpop.permute.xlu0 %332
    %334 = vrot.lane.b32.xlu0 %v316, 104
    %v335 = vpop.permute.xlu0 %334
    %336 = vrot.lane.b32.xlu0 %v321, 104
    %v337 = vpop.permute.xlu0 %336
    %338 = vrot.lane.b32.xlu0 %v316, 96
    %v339 = vpop.permute.xlu0 %338
    %340 = vrot.lane.b32.xlu0 %v321, 96
    %v341 = vpop.permute.xlu0 %340
    %v342 = vsel %vm109, %v316, 0
    %v344 = vsel %vm109, %v321, 0
    %v346 = vsel %vm109, %v339, 0
    %v348 = vsel %vm109, %v341, 0
    %350 = vmatprep.subr.mxu0 0.0
    %351 = vmatpush1.xpose.msra.mxu0 %v346
    %352 = vmatprep.subr.mxu0 0.0
    %353 = vmatpush1.xpose.msra.mxu0 %v348
    %354 = vmatprep.subr.mxu0 0.0
    %355 = vmatpush1.xpose.msra.mxu0 0.0
    %356 = vmatprep.subr.mxu0 0.0
    %357 = vmatpush1.xpose.msra.mxu0 0.0
    %358 = vmatprep.subr.mxu0 0.0
    %359 = vmatpush1.xpose.msra.mxu0 0.0
    %360 = vmatprep.subr.mxu0 0.0
    %361 = vmatpush1.xpose.msra.mxu0 0.0
    %362 = vmatprep.subr.mxu0 0.0
    %363 = vmatpush1.xpose.msra.mxu0 0.0
    %364 = vmatprep.subr.mxu0 0.0
    %365 = vmatpush1.xpose.msra.mxu0 0.0
    %366 = vmatprep.subr.mxu0 0.0
    %367 = vmatpush1.xpose.msra.mxu0 0.0
    %368 = vmatprep.subr.mxu0 0.0
    %369 = vmatpush1.xpose.msra.mxu0 0.0
    %370 = vmatprep.subr.mxu0 0.0
    %371 = vmatpush1.xpose.msra.mxu0 0.0
    %372 = vmatprep.subr.mxu0 0.0
    %373 = vmatpush1.xpose.msra.mxu0 0.0
    %374 = vmatprep.subr.mxu0 0.0
    %375 = vmatpush1.xpose.msra.mxu0 0.0
    %376 = vmatprep.subr.mxu0 0.0
    %377 = vmatpush1.xpose.msra.mxu0 0.0
    %378 = vmatprep.subr.mxu0 0.0
    %379 = vmatpush1.xpose.msra.mxu0 0.0
    %380 = vmatprep.subr.mxu0 0.0
    %381 = vmatpush1.xpose.msra.mxu0 0.0
    %382 = vmatprep.subr.mxu0 0.0
    %383 = vmatpush1.xpose.msra.mxu0 0.0
    %384 = vmatprep.subr.mxu0 0.0
    %385 = vmatpush1.xpose.msra.mxu0 0.0
    %386 = vmatprep.subr.mxu0 0.0
    %387 = vmatpush1.xpose.msra.mxu0 0.0
    %388 = vmatprep.subr.mxu0 0.0
    %389 = vmatpush1.xpose.msra.mxu0 0.0
    %390 = vmatprep.subr.mxu0 0.0
    %391 = vmatpush1.xpose.msra.mxu0 0.0
    %392 = vmatprep.subr.mxu0 0.0
    %393 = vmatpush1.xpose.msra.mxu0 0.0
    %394 = vmatprep.subr.mxu0 0.0
    %395 = vmatpush1.xpose.msra.mxu0 0.0
    %396 = vmatprep.subr.mxu0 0.0
    %397 = vmatpush1.xpose.msra.mxu0 0.0
    %398 = vmatprep.subr.mxu0 0.0
    %399 = vmatpush1.xpose.msra.mxu0 0.0
    %400 = vmatprep.subr.mxu0 0.0
    %401 = vmatpush1.xpose.msra.mxu0 0.0
    %402 = vmatprep.subr.mxu0 0.0
    %403 = vmatpush1.xpose.msra.mxu0 0.0
    %404 = vmatprep.subr.mxu0 0.0
    %405 = vmatpush1.xpose.msra.mxu0 0.0
    %406 = vmatprep.subr.mxu0 0.0
    %407 = vmatpush1.xpose.msra.mxu0 0.0
    %408 = vmatprep.subr.mxu0 0.0
    %409 = vmatpush1.xpose.msra.mxu0 0.0
    %410 = vmatprep.subr.mxu0 0.0
    %411 = vmatpush1.xpose.msra.mxu0 0.0
    %412 = vmatprep.subr.mxu0 0.0
    %413 = vmatpush1.xpose.msra.mxu0 0.0
    %414 = vmatprep.mubr.f32.mxu0 0.0
    %415 = vmatmul.mubr.f32.gmra.mrb[0].mxu0 %v342
    %v416 = vpop.f32.mrb[0].mxu0
    %v417 = vadd.f32 0.0, %v416
    %v418 = vpop.f32.mrb[0].mxu0
    %419 = vmatprep.mubr.f32.mxu0 0.0
    %420 = vmatmul.mubr.f32.gmra.mrb[0].mxu0 %v344
    %v421 = vpop.f32.mrb[0].mxu0
    %v422 = vadd.f32 0.0, %v421
    %v423 = vpop.f32.mrb[0].mxu0
    %424 = vdwg.mxu0
    %425 = vrot.lane.b32.xlu0 %v327, 96
    %v426 = vpop.permute.xlu0 %425
    %427 = vrot.lane.b32.xlu0 %v329, 96
    %v428 = vpop.permute.xlu0 %427
    %v429 = vsel %vm109, %v327, 0
    %v431 = vsel %vm109, %v329, 0
    %v433 = vsel %vm109, %v426, 0
    %v435 = vsel %vm109, %v428, 0
    %437 = vmatprep.subr.mxu0 0.0
    %438 = vmatpush1.xpose.msra.mxu0 %v433
    %439 = vmatprep.subr.mxu0 0.0
    %440 = vmatpush1.xpose.msra.mxu0 %v435
    %441 = vmatprep.subr.mxu0 0.0
    %442 = vmatpush1.xpose.msra.mxu0 0.0
    %443 = vmatprep.subr.mxu0 0.0
    %444 = vmatpush1.xpose.msra.mxu0 0.0
    %445 = vmatprep.subr.mxu0 0.0
    %446 = vmatpush1.xpose.msra.mxu0 0.0
    %447 = vmatprep.subr.mxu0 0.0
    %448 = vmatpush1.xpose.msra.mxu0 0.0
    %449 = vmatprep.subr.mxu0 0.0
    %450 = vmatpush1.xpose.msra.mxu0 0.0
    %451 = vmatprep.subr.mxu0 0.0
    %452 = vmatpush1.xpose.msra.mxu0 0.0
    %453 = vmatprep.subr.mxu0 0.0
    %454 = vmatpush1.xpose.msra.mxu0 0.0
    %455 = vmatprep.subr.mxu0 0.0
    %456 = vmatpush1.xpose.msra.mxu0 0.0
    %457 = vmatprep.subr.mxu0 0.0
    %458 = vmatpush1.xpose.msra.mxu0 0.0
    %459 = vmatprep.subr.mxu0 0.0
    %460 = vmatpush1.xpose.msra.mxu0 0.0
    %461 = vmatprep.subr.mxu0 0.0
    %462 = vmatpush1.xpose.msra.mxu0 0.0
    %463 = vmatprep.subr.mxu0 0.0
    %464 = vmatpush1.xpose.msra.mxu0 0.0
    %465 = vmatprep.subr.mxu0 0.0
    %466 = vmatpush1.xpose.msra.mxu0 0.0
    %467 = vmatprep.subr.mxu0 0.0
    %468 = vmatpush1.xpose.msra.mxu0 0.0
    %469 = vmatprep.subr.mxu0 0.0
    %470 = vmatpush1.xpose.msra.mxu0 0.0
    %471 = vmatprep.subr.mxu0 0.0
    %472 = vmatpush1.xpose.msra.mxu0 0.0
    %473 = vmatprep.subr.mxu0 0.0
    %474 = vmatpush1.xpose.msra.mxu0 0.0
    %475 = vmatprep.subr.mxu0 0.0
    %476 = vmatpush1.xpose.msra.mxu0 0.0
    %477 = vmatprep.subr.mxu0 0.0
    %478 = vmatpush1.xpose.msra.mxu0 0.0
    %479 = vmatprep.subr.mxu0 0.0
    %480 = vmatpush1.xpose.msra.mxu0 0.0
    %481 = vmatprep.subr.mxu0 0.0
    %482 = vmatpush1.xpose.msra.mxu0 0.0
    %483 = vmatprep.subr.mxu0 0.0
    %484 = vmatpush1.xpose.msra.mxu0 0.0
    %485 = vmatprep.subr.mxu0 0.0
    %486 = vmatpush1.xpose.msra.mxu0 0.0
    %487 = vmatprep.subr.mxu0 0.0
    %488 = vmatpush1.xpose.msra.mxu0 0.0
    %489 = vmatprep.subr.mxu0 0.0
    %490 = vmatpush1.xpose.msra.mxu0 0.0
    %491 = vmatprep.subr.mxu0 0.0
    %492 = vmatpush1.xpose.msra.mxu0 0.0
    %493 = vmatprep.subr.mxu0 0.0
    %494 = vmatpush1.xpose.msra.mxu0 0.0
    %495 = vmatprep.subr.mxu0 0.0
    %496 = vmatpush1.xpose.msra.mxu0 0.0
    %497 = vmatprep.subr.mxu0 0.0
    %498 = vmatpush1.xpose.msra.mxu0 0.0
    %499 = vmatprep.subr.mxu0 0.0
    %500 = vmatpush1.xpose.msra.mxu0 0.0
    %501 = vmatprep.mubr.f32.mxu0 0.0
    %502 = vmatmul.mubr.f32.gmra.mrb[0].mxu0 %v429
    %v503 = vpop.f32.mrb[0].mxu0
    %v504 = vadd.f32 0.0, %v503
    %v505 = vpop.f32.mrb[0].mxu0
    %506 = vmatprep.mubr.f32.mxu0 0.0
    %507 = vmatmul.mubr.f32.gmra.mrb[0].mxu0 %v431
    %v508 = vpop.f32.mrb[0].mxu0
    %v509 = vadd.f32 0.0, %v508
    %v510 = vpop.f32.mrb[0].mxu0
    %511 = vdwg.mxu0
    %512 = vrot.lane.b32.xlu0 %v331, 96
    %v513 = vpop.permute.xlu0 %512
    %514 = vrot.lane.b32.xlu0 %v333, 96
    %v515 = vpop.permute.xlu0 %514
    %v516 = vsel %vm109, %v331, 0
    %v518 = vsel %vm109, %v333, 0
    %v520 = vsel %vm109, %v513, 0
    %v522 = vsel %vm109, %v515, 0
    %524 = vmatprep.subr.mxu0 0.0
    %525 = vmatpush1.xpose.msra.mxu0 %v520
    %526 = vmatprep.subr.mxu0 0.0
    %527 = vmatpush1.xpose.msra.mxu0 %v522
    %528 = vmatprep.subr.mxu0 0.0
    %529 = vmatpush1.xpose.msra.mxu0 0.0
    %530 = vmatprep.subr.mxu0 0.0
    %531 = vmatpush1.xpose.msra.mxu0 0.0
    %532 = vmatprep.subr.mxu0 0.0
    %533 = vmatpush1.xpose.msra.mxu0 0.0
    %534 = vmatprep.subr.mxu0 0.0
    %535 = vmatpush1.xpose.msra.mxu0 0.0
    %536 = vmatprep.subr.mxu0 0.0
    %537 = vmatpush1.xpose.msra.mxu0 0.0
    %538 = vmatprep.subr.mxu0 0.0
    %539 = vmatpush1.xpose.msra.mxu0 0.0
    %540 = vmatprep.subr.mxu0 0.0
    %541 = vmatpush1.xpose.msra.mxu0 0.0
    %542 = vmatprep.subr.mxu0 0.0
    %543 = vmatpush1.xpose.msra.mxu0 0.0
    %544 = vmatprep.subr.mxu0 0.0
    %545 = vmatpush1.xpose.msra.mxu0 0.0
    %546 = vmatprep.subr.mxu0 0.0
    %547 = vmatpush1.xpose.msra.mxu0 0.0
    %548 = vmatprep.subr.mxu0 0.0
    %549 = vmatpush1.xpose.msra.mxu0 0.0
    %550 = vmatprep.subr.mxu0 0.0
    %551 = vmatpush1.xpose.msra.mxu0 0.0
    %552 = vmatprep.subr.mxu0 0.0
    %553 = vmatpush1.xpose.msra.mxu0 0.0
    %554 = vmatprep.subr.mxu0 0.0
    %555 = vmatpush1.xpose.msra.mxu0 0.0
    %556 = vmatprep.subr.mxu0 0.0
    %557 = vmatpush1.xpose.msra.mxu0 0.0
    %558 = vmatprep.subr.mxu0 0.0
    %559 = vmatpush1.xpose.msra.mxu0 0.0
    %560 = vmatprep.subr.mxu0 0.0
    %561 = vmatpush1.xpose.msra.mxu0 0.0
    %562 = vmatprep.subr.mxu0 0.0
    %563 = vmatpush1.xpose.msra.mxu0 0.0
    %564 = vmatprep.subr.mxu0 0.0
    %565 = vmatpush1.xpose.msra.mxu0 0.0
    %566 = vmatprep.subr.mxu0 0.0
    %567 = vmatpush1.xpose.msra.mxu0 0.0
    %568 = vmatprep.subr.mxu0 0.0
    %569 = vmatpush1.xpose.msra.mxu0 0.0
    %570 = vmatprep.subr.mxu0 0.0
    %571 = vmatpush1.xpose.msra.mxu0 0.0
    %572 = vmatprep.subr.mxu0 0.0
    %573 = vmatpush1.xpose.msra.mxu0 0.0
    %574 = vmatprep.subr.mxu0 0.0
    %575 = vmatpush1.xpose.msra.mxu0 0.0
    %576 = vmatprep.subr.mxu0 0.0
    %577 = vmatpush1.xpose.msra.mxu0 0.0
    %578 = vmatprep.subr.mxu0 0.0
    %579 = vmatpush1.xpose.msra.mxu0 0.0
    %580 = vmatprep.subr.mxu0 0.0
    %581 = vmatpush1.xpose.msra.mxu0 0.0
    %582 = vmatprep.subr.mxu0 0.0
    %583 = vmatpush1.xpose.msra.mxu0 0.0
    %584 = vmatprep.subr.mxu0 0.0
    %585 = vmatpush1.xpose.msra.mxu0 0.0
    %586 = vmatprep.subr.mxu0 0.0
    %587 = vmatpush1.xpose.msra.mxu0 0.0
    %588 = vmatprep.mubr.f32.mxu0 0.0
    %589 = vmatmul.mubr.f32.gmra.mrb[0].mxu0 %v516
    %v590 = vpop.f32.mrb[0].mxu0
    %v591 = vadd.f32 0.0, %v590
    %v592 = vpop.f32.mrb[0].mxu0
    %593 = vmatprep.mubr.f32.mxu0 0.0
    %594 = vmatmul.mubr.f32.gmra.mrb[0].mxu0 %v518
    %v595 = vpop.f32.mrb[0].mxu0
    %v596 = vadd.f32 0.0, %v595
    %v597 = vpop.f32.mrb[0].mxu0
    %598 = vdwg.mxu0
    %599 = vrot.lane.b32.xlu0 %v335, 96
    %v600 = vpop.permute.xlu0 %599
    %601 = vrot.lane.b32.xlu0 %v337, 96
    %v602 = vpop.permute.xlu0 %601
    %v603 = vsel %vm109, %v335, 0
    %v605 = vsel %vm109, %v337, 0
    %v607 = vsel %vm109, %v600, 0
    %v609 = vsel %vm109, %v602, 0
    %611 = vmatprep.subr.mxu0 0.0
    %612 = vmatpush1.xpose.msra.mxu0 %v607
    %613 = vmatprep.subr.mxu0 0.0
    %614 = vmatpush1.xpose.msra.mxu0 %v609
    %615 = vmatprep.subr.mxu0 0.0
    %616 = vmatpush1.xpose.msra.mxu0 0.0
    %617 = vmatprep.subr.mxu0 0.0
    %618 = vmatpush1.xpose.msra.mxu0 0.0
    %619 = vmatprep.subr.mxu0 0.0
    %620 = vmatpush1.xpose.msra.mxu0 0.0
    %621 = vmatprep.subr.mxu0 0.0
    %622 = vmatpush1.xpose.msra.mxu0 0.0
    %623 = vmatprep.subr.mxu0 0.0
    %624 = vmatpush1.xpose.msra.mxu0 0.0
    %625 = vmatprep.subr.mxu0 0.0
    %626 = vmatpush1.xpose.msra.mxu0 0.0
    %627 = vmatprep.subr.mxu0 0.0
    %628 = vmatpush1.xpose.msra.mxu0 0.0
    %629 = vmatprep.subr.mxu0 0.0
    %630 = vmatpush1.xpose.msra.mxu0 0.0
    %631 = vmatprep.subr.mxu0 0.0
    %632 = vmatpush1.xpose.msra.mxu0 0.0
    %633 = vmatprep.subr.mxu0 0.0
    %634 = vmatpush1.xpose.msra.mxu0 0.0
    %635 = vmatprep.subr.mxu0 0.0
    %636 = vmatpush1.xpose.msra.mxu0 0.0
    %637 = vmatprep.subr.mxu0 0.0
    %638 = vmatpush1.xpose.msra.mxu0 0.0
    %639 = vmatprep.subr.mxu0 0.0
    %640 = vmatpush1.xpose.msra.mxu0 0.0
    %641 = vmatprep.subr.mxu0 0.0
    %642 = vmatpush1.xpose.msra.mxu0 0.0
    %643 = vmatprep.subr.mxu0 0.0
    %644 = vmatpush1.xpose.msra.mxu0 0.0
    %645 = vmatprep.subr.mxu0 0.0
    %646 = vmatpush1.xpose.msra.mxu0 0.0
    %647 = vmatprep.subr.mxu0 0.0
    %648 = vmatpush1.xpose.msra.mxu0 0.0
    %649 = vmatprep.subr.mxu0 0.0
    %650 = vmatpush1.xpose.msra.mxu0 0.0
    %651 = vmatprep.subr.mxu0 0.0
    %652 = vmatpush1.xpose.msra.mxu0 0.0
    %653 = vmatprep.subr.mxu0 0.0
    %654 = vmatpush1.xpose.msra.mxu0 0.0
    %655 = vmatprep.subr.mxu0 0.0
    %656 = vmatpush1.xpose.msra.mxu0 0.0
    %657 = vmatprep.subr.mxu0 0.0
    %658 = vmatpush1.xpose.msra.mxu0 0.0
    %659 = vmatprep.subr.mxu0 0.0
    %660 = vmatpush1.xpose.msra.mxu0 0.0
    %661 = vmatprep.subr.mxu0 0.0
    %662 = vmatpush1.xpose.msra.mxu0 0.0
    %663 = vmatprep.subr.mxu0 0.0
    %664 = vmatpush1.xpose.msra.mxu0 0.0
    %665 = vmatprep.subr.mxu0 0.0
    %666 = vmatpush1.xpose.msra.mxu0 0.0
    %667 = vmatprep.subr.mxu0 0.0
    %668 = vmatpush1.xpose.msra.mxu0 0.0
    %669 = vmatprep.subr.mxu0 0.0
    %670 = vmatpush1.xpose.msra.mxu0 0.0
    %671 = vmatprep.subr.mxu0 0.0
    %672 = vmatpush1.xpose.msra.mxu0 0.0
    %673 = vmatprep.subr.mxu0 0.0
    %674 = vmatpush1.xpose.msra.mxu0 0.0
    %675 = vmatprep.mubr.f32.mxu0 0.0
    %676 = vmatmul.mubr.f32.gmra.mrb[0].mxu0 %v603
    %v677 = vpop.f32.mrb[0].mxu0
    %v678 = vadd.f32 0.0, %v677
    %v679 = vpop.f32.mrb[0].mxu0
    %680 = vmatprep.mubr.f32.mxu0 0.0
    %681 = vmatmul.mubr.f32.gmra.mrb[0].mxu0 %v605
    %v682 = vpop.f32.mrb[0].mxu0
    %v683 = vadd.f32 0.0, %v682
    %v684 = vpop.f32.mrb[0].mxu0
    %685 = vdwg.mxu0
    %v686 = vmul.f32 %v417, 0.35355338
    %v687 = vmul.f32 %v422, 0.35355338
    %v688 = vmul.f32 %v504, 0.35355338
    %v689 = vmul.f32 %v509, 0.35355338
    %v690 = vmul.f32 %v591, 0.35355338
    %v691 = vmul.f32 %v596, 0.35355338
    %v692 = vmul.f32 %v678, 0.35355338
    %v693 = vmul.f32 %v683, 0.35355338
    %v694 = vadd.f32 %v686, %v195
    %v695 = vadd.f32 %v687, %v196
    %v696 = vadd.f32 %v688, %v195
    %v697 = vadd.f32 %v689, %v196
    %v698 = vadd.f32 %v690, %v195
    %v699 = vadd.f32 %v691, %v196
    %v700 = vadd.f32 %v692, %v195
    %v701 = vadd.f32 %v693, %v196
    %vm702 = vcmask 80896
    %v703 = vsel %vm702, %v694, -inf
    %704 = vmax.xlane.f32.xlu0 %v703
    %v705 = vpop.xlane.xlu0 %704
    %vm706 = vcmask 74752
    %v707 = vsel %vm706, %v695, -inf
    %708 = vmax.xlane.f32.xlu0 %v707
    %v709 = vpop.xlane.xlu0 %708
    %v710 = vsel %vm702, %v696, -inf
    %711 = vmax.xlane.f32.xlu0 %v710
    %v712 = vpop.xlane.xlu0 %711
    %v713 = vsel %vm706, %v697, -inf
    %714 = vmax.xlane.f32.xlu0 %v713
    %v715 = vpop.xlane.xlu0 %714
    %v716 = vsel %vm702, %v698, -inf
    %717 = vmax.xlane.f32.xlu0 %v716
    %v718 = vpop.xlane.xlu0 %717
    %v719 = vsel %vm706, %v699, -inf
    %720 = vmax.xlane.f32.xlu0 %v719
    %v721 = vpop.xlane.xlu0 %720
    %v722 = vsel %vm702, %v700, -inf
    %723 = vmax.xlane.f32.xlu0 %v722
    %v724 = vpop.xlane.xlu0 %723
    %v725 = vsel %vm706, %v701, -inf
    %726 = vmax.xlane.f32.xlu0 %v725
    %v727 = vpop.xlane.xlu0 %726
    %v728 = vsub.f32 %v694, %v705
    %v729 = vsub.f32 %v695, %v709
    %v730 = vsub.f32 %v696, %v712
    %v731 = vsub.f32 %v697, %v715
    %v732 = vsub.f32 %v698, %v718
    %v733 = vsub.f32 %v699, %v721
    %v734 = vsub.f32 %v700, %v724
    %v735 = vsub.f32 %v701, %v727
    %v736 = vmul.f32 %v728, 1.442695
    %v737 = vpow.pop %v736
    %v738 = vmul.f32 %v729, 1.442695
    %v739 = vpow.pop %v738
    %v740 = vmul.f32 %v730, 1.442695
    %v741 = vpow.pop %v740
    %v742 = vmul.f32 %v731, 1.442695
    %v743 = vpow.pop %v742
    %v744 = vmul.f32 %v732, 1.442695
    %v745 = vpow.pop %v744
    %v746 = vmul.f32 %v733, 1.442695
    %v747 = vpow.pop %v746
    %v748 = vmul.f32 %v734, 1.442695
    %v749 = vpow.pop %v748
    %v750 = vmul.f32 %v735, 1.442695
    %v751 = vpow.pop %v750
    %v752 = vsel %vm702, %v737, 0.0
    %753 = vadd.xlane.f32.xlu0 %v752
    %v754 = vpop.xlane.xlu0 %753
    %v755 = vsel %vm706, %v739, 0.0
    %756 = vadd.xlane.f32.xlu0 %v755
    %v757 = vpop.xlane.xlu0 %756
    %v758 = vsel %vm702, %v741, 0.0
    %759 = vadd.xlane.f32.xlu0 %v758
    %v760 = vpop.xlane.xlu0 %759
    %v761 = vsel %vm706, %v743, 0.0
    %762 = vadd.xlane.f32.xlu0 %v761
    %v763 = vpop.xlane.xlu0 %762
    %v764 = vsel %vm702, %v745, 0.0
    %765 = vadd.xlane.f32.xlu0 %v764
    %v766 = vpop.xlane.xlu0 %765
    %v767 = vsel %vm706, %v747, 0.0
    %768 = vadd.xlane.f32.xlu0 %v767
    %v769 = vpop.xlane.xlu0 %768
    %v770 = vsel %vm702, %v749, 0.0
    %771 = vadd.xlane.f32.xlu0 %v770
    %v772 = vpop.xlane.xlu0 %771
    %v773 = vsel %vm706, %v751, 0.0
    %774 = vadd.xlane.f32.xlu0 %v773
    %v775 = vpop.xlane.xlu0 %774
    %v776 = vrcp.pop %v754
    %v777 = vrcp.pop %v757
    %v778 = vrcp.pop %v760
    %v779 = vrcp.pop %v763
    %v780 = vrcp.pop %v766
    %v781 = vrcp.pop %v769
    %v782 = vrcp.pop %v772
    %v783 = vrcp.pop %v775
    %v784 = vmul.f32 %v737, %v776
    %v785 = vmul.f32 %v739, %v777
    %v786 = vmul.f32 %v741, %v778
    %v787 = vmul.f32 %v743, %v779
    %v788 = vmul.f32 %v745, %v780
    %v789 = vmul.f32 %v747, %v781
    %v790 = vmul.f32 %v749, %v782
    %v791 = vmul.f32 %v751, %v783
    %792 = vrot.lane.b32.xlu0 %v316, 64
    %v793 = vpop.permute.xlu0 %792
    %794 = vrot.lane.b32.xlu0 %v321, 64
    %v795 = vpop.permute.xlu0 %794
    %v798 = vsel %vm702, %v784, 0
    %v801 = vsel %vm702, %v785, 0
    %vm803 = vcmask 1041408
    %v804 = vsel %vm803, %v795, 0
    %806 = vmatprep.subr.mxu0 0.0
    %807 = vmatpush1.msra.mxu0 %v793
    %808 = vmatprep.subr.mxu0 0.0
    %809 = vmatpush1.msra.mxu0 %v804
    %810 = vmatprep.subr.mxu0 0.0
    %811 = vmatpush1.msra.mxu0 0.0
    %812 = vmatprep.subr.mxu0 0.0
    %813 = vmatpush1.msra.mxu0 0.0
    %814 = vmatprep.subr.mxu0 0.0
    %815 = vmatpush1.msra.mxu0 0.0
    %816 = vmatprep.subr.mxu0 0.0
    %817 = vmatpush1.msra.mxu0 0.0
    %818 = vmatprep.subr.mxu0 0.0
    %819 = vmatpush1.msra.mxu0 0.0
    %820 = vmatprep.subr.mxu0 0.0
    %821 = vmatpush1.msra.mxu0 0.0
    %822 = vmatprep.subr.mxu0 0.0
    %823 = vmatpush1.msra.mxu0 0.0
    %824 = vmatprep.subr.mxu0 0.0
    %825 = vmatpush1.msra.mxu0 0.0
    %826 = vmatprep.subr.mxu0 0.0
    %827 = vmatpush1.msra.mxu0 0.0
    %828 = vmatprep.subr.mxu0 0.0
    %829 = vmatpush1.msra.mxu0 0.0
    %830 = vmatprep.subr.mxu0 0.0
    %831 = vmatpush1.msra.mxu0 0.0
    %832 = vmatprep.subr.mxu0 0.0
    %833 = vmatpush1.msra.mxu0 0.0
    %834 = vmatprep.subr.mxu0 0.0
    %835 = vmatpush1.msra.mxu0 0.0
    %836 = vmatprep.subr.mxu0 0.0
    %837 = vmatpush1.msra.mxu0 0.0
    %838 = vmatprep.subr.mxu0 0.0
    %839 = vmatpush1.msra.mxu0 0.0
    %840 = vmatprep.subr.mxu0 0.0
    %841 = vmatpush1.msra.mxu0 0.0
    %842 = vmatprep.subr.mxu0 0.0
    %843 = vmatpush1.msra.mxu0 0.0
    %844 = vmatprep.subr.mxu0 0.0
    %845 = vmatpush1.msra.mxu0 0.0
    %846 = vmatprep.subr.mxu0 0.0
    %847 = vmatpush1.msra.mxu0 0.0
    %848 = vmatprep.subr.mxu0 0.0
    %849 = vmatpush1.msra.mxu0 0.0
    %850 = vmatprep.subr.mxu0 0.0
    %851 = vmatpush1.msra.mxu0 0.0
    %852 = vmatprep.subr.mxu0 0.0
    %853 = vmatpush1.msra.mxu0 0.0
    %854 = vmatprep.subr.mxu0 0.0
    %855 = vmatpush1.msra.mxu0 0.0
    %856 = vmatprep.subr.mxu0 0.0
    %857 = vmatpush1.msra.mxu0 0.0
    %858 = vmatprep.subr.mxu0 0.0
    %859 = vmatpush1.msra.mxu0 0.0
    %860 = vmatprep.subr.mxu0 0.0
    %861 = vmatpush1.msra.mxu0 0.0
    %862 = vmatprep.subr.mxu0 0.0
    %863 = vmatpush1.msra.mxu0 0.0
    %864 = vmatprep.subr.mxu0 0.0
    %865 = vmatpush1.msra.mxu0 0.0
    %866 = vmatprep.subr.mxu0 0.0
    %867 = vmatpush1.msra.mxu0 0.0
    %868 = vmatprep.subr.mxu0 0.0
    %869 = vmatpush1.msra.mxu0 0.0
    %870 = vmatprep.mubr.f32.mxu0 0.0
    %871 = vmatmul.mubr.f32.gmra.mrb[0].mxu0 %v798
    %v872 = vpop.f32.mrb[0].mxu0
    %v873 = vadd.f32 0.0, %v872
    %v874 = vpop.f32.mrb[0].mxu0
    %875 = vmatprep.mubr.f32.mxu0 0.0
    %876 = vmatmul.mubr.f32.gmra.mrb[0].mxu0 %v801
    %v877 = vpop.f32.mrb[0].mxu0
    %v878 = vadd.f32 0.0, %v877
    %v879 = vpop.f32.mrb[0].mxu0
    %880 = vdwg.mxu0
    %881 = vrot.lane.b32.xlu0 %v327, 64
    %v882 = vpop.permute.xlu0 %881
    %883 = vrot.lane.b32.xlu0 %v329, 64
    %v884 = vpop.permute.xlu0 %883
    %v887 = vsel %vm702, %v786, 0
    %v890 = vsel %vm702, %v787, 0
    %v892 = vsel %vm803, %v884, 0
    %894 = vmatprep.subr.mxu0 0.0
    %895 = vmatpush1.msra.mxu0 %v882
    %896 = vmatprep.subr.mxu0 0.0
    %897 = vmatpush1.msra.mxu0 %v892
    %898 = vmatprep.subr.mxu0 0.0
    %899 = vmatpush1.msra.mxu0 0.0
    %900 = vmatprep.subr.mxu0 0.0
    %901 = vmatpush1.msra.mxu0 0.0
    %902 = vmatprep.subr.mxu0 0.0
    %903 = vmatpush1.msra.mxu0 0.0
    %904 = vmatprep.subr.mxu0 0.0
    %905 = vmatpush1.msra.mxu0 0.0
    %906 = vmatprep.subr.mxu0 0.0
    %907 = vmatpush1.msra.mxu0 0.0
    %908 = vmatprep.subr.mxu0 0.0
    %909 = vmatpush1.msra.mxu0 0.0
    %910 = vmatprep.subr.mxu0 0.0
    %911 = vmatpush1.msra.mxu0 0.0
    %912 = vmatprep.subr.mxu0 0.0
    %913 = vmatpush1.msra.mxu0 0.0
    %914 = vmatprep.subr.mxu0 0.0
    %915 = vmatpush1.msra.mxu0 0.0
    %916 = vmatprep.subr.mxu0 0.0
    %917 = vmatpush1.msra.mxu0 0.0
    %918 = vmatprep.subr.mxu0 0.0
    %919 = vmatpush1.msra.mxu0 0.0
    %920 = vmatprep.subr.mxu0 0.0
    %921 = vmatpush1.msra.mxu0 0.0
    %922 = vmatprep.subr.mxu0 0.0
    %923 = vmatpush1.msra.mxu0 0.0
    %924 = vmatprep.subr.mxu0 0.0
    %925 = vmatpush1.msra.mxu0 0.0
    %926 = vmatprep.subr.mxu0 0.0
    %927 = vmatpush1.msra.mxu0 0.0
    %928 = vmatprep.subr.mxu0 0.0
    %929 = vmatpush1.msra.mxu0 0.0
    %930 = vmatprep.subr.mxu0 0.0
    %931 = vmatpush1.msra.mxu0 0.0
    %932 = vmatprep.subr.mxu0 0.0
    %933 = vmatpush1.msra.mxu0 0.0
    %934 = vmatprep.subr.mxu0 0.0
    %935 = vmatpush1.msra.mxu0 0.0
    %936 = vmatprep.subr.mxu0 0.0
    %937 = vmatpush1.msra.mxu0 0.0
    %938 = vmatprep.subr.mxu0 0.0
    %939 = vmatpush1.msra.mxu0 0.0
    %940 = vmatprep.subr.mxu0 0.0
    %941 = vmatpush1.msra.mxu0 0.0
    %942 = vmatprep.subr.mxu0 0.0
    %943 = vmatpush1.msra.mxu0 0.0
    %944 = vmatprep.subr.mxu0 0.0
    %945 = vmatpush1.msra.mxu0 0.0
    %946 = vmatprep.subr.mxu0 0.0
    %947 = vmatpush1.msra.mxu0 0.0
    %948 = vmatprep.subr.mxu0 0.0
    %949 = vmatpush1.msra.mxu0 0.0
    %950 = vmatprep.subr.mxu0 0.0
    %951 = vmatpush1.msra.mxu0 0.0
    %952 = vmatprep.subr.mxu0 0.0
    %953 = vmatpush1.msra.mxu0 0.0
    %954 = vmatprep.subr.mxu0 0.0
    %955 = vmatpush1.msra.mxu0 0.0
    %956 = vmatprep.subr.mxu0 0.0
    %957 = vmatpush1.msra.mxu0 0.0
    %958 = vmatprep.mubr.f32.mxu0 0.0
    %959 = vmatmul.mubr.f32.gmra.mrb[0].mxu0 %v887
    %v960 = vpop.f32.mrb[0].mxu0
    %v961 = vadd.f32 0.0, %v960
    %v962 = vpop.f32.mrb[0].mxu0
    %963 = vmatprep.mubr.f32.mxu0 0.0
    %964 = vmatmul.mubr.f32.gmra.mrb[0].mxu0 %v890
    %v965 = vpop.f32.mrb[0].mxu0
    %v966 = vadd.f32 0.0, %v965
    %v967 = vpop.f32.mrb[0].mxu0
    %968 = vdwg.mxu0
    %969 = vrot.lane.b32.xlu0 %v331, 64
    %v970 = vpop.permute.xlu0 %969
    %971 = vrot.lane.b32.xlu0 %v333, 64
    %v972 = vpop.permute.xlu0 %971
    %v975 = vsel %vm702, %v788, 0
    %v978 = vsel %vm702, %v789, 0
    %v980 = vsel %vm803, %v972, 0
    %982 = vmatprep.subr.mxu0 0.0
    %983 = vmatpush1.msra.mxu0 %v970
    %984 = vmatprep.subr.mxu0 0.0
    %985 = vmatpush1.msra.mxu0 %v980
    %986 = vmatprep.subr.mxu0 0.0
    %987 = vmatpush1.msra.mxu0 0.0
    %988 = vmatprep.subr.mxu0 0.0
    %989 = vmatpush1.msra.mxu0 0.0
    %990 = vmatprep.subr.mxu0 0.0
    %991 = vmatpush1.msra.mxu0 0.0
    %992 = vmatprep.subr.mxu0 0.0
    %993 = vmatpush1.msra.mxu0 0.0
    %994 = vmatprep.subr.mxu0 0.0
    %995 = vmatpush1.msra.mxu0 0.0
    %996 = vmatprep.subr.mxu0 0.0
    %997 = vmatpush1.msra.mxu0 0.0
    %998 = vmatprep.subr.mxu0 0.0
    %999 = vmatpush1.msra.mxu0 0.0
    %1000 = vmatprep.subr.mxu0 0.0
    %1001 = vmatpush1.msra.mxu0 0.0
    %1002 = vmatprep.subr.mxu0 0.0
    %1003 = vmatpush1.msra.mxu0 0.0
    %1004 = vmatprep.subr.mxu0 0.0
    %1005 = vmatpush1.msra.mxu0 0.0
    %1006 = vmatprep.subr.mxu0 0.0
    %1007 = vmatpush1.msra.mxu0 0.0
    %1008 = vmatprep.subr.mxu0 0.0
    %1009 = vmatpush1.msra.mxu0 0.0
    %1010 = vmatprep.subr.mxu0 0.0
    %1011 = vmatpush1.msra.mxu0 0.0
    %1012 = vmatprep.subr.mxu0 0.0
    %1013 = vmatpush1.msra.mxu0 0.0
    %1014 = vmatprep.subr.mxu0 0.0
    %1015 = vmatpush1.msra.mxu0 0.0
    %1016 = vmatprep.subr.mxu0 0.0
    %1017 = vmatpush1.msra.mxu0 0.0
    %1018 = vmatprep.subr.mxu0 0.0
    %1019 = vmatpush1.msra.mxu0 0.0
    %1020 = vmatprep.subr.mxu0 0.0
    %1021 = vmatpush1.msra.mxu0 0.0
    %1022 = vmatprep.subr.mxu0 0.0
    %1023 = vmatpush1.msra.mxu0 0.0
    %1024 = vmatprep.subr.mxu0 0.0
    %1025 = vmatpush1.msra.mxu0 0.0
    %1026 = vmatprep.subr.mxu0 0.0
    %1027 = vmatpush1.msra.mxu0 0.0
    %1028 = vmatprep.subr.mxu0 0.0
    %1029 = vmatpush1.msra.mxu0 0.0
    %1030 = vmatprep.subr.mxu0 0.0
    %1031 = vmatpush1.msra.mxu0 0.0
    %1032 = vmatprep.subr.mxu0 0.0
    %1033 = vmatpush1.msra.mxu0 0.0
    %1034 = vmatprep.subr.mxu0 0.0
    %1035 = vmatpush1.msra.mxu0 0.0
    %1036 = vmatprep.subr.mxu0 0.0
    %1037 = vmatpush1.msra.mxu0 0.0
    %1038 = vmatprep.subr.mxu0 0.0
    %1039 = vmatpush1.msra.mxu0 0.0
    %1040 = vmatprep.subr.mxu0 0.0
    %1041 = vmatpush1.msra.mxu0 0.0
    %1042 = vmatprep.subr.mxu0 0.0
    %1043 = vmatpush1.msra.mxu0 0.0
    %1044 = vmatprep.subr.mxu0 0.0
    %1045 = vmatpush1.msra.mxu0 0.0
    %1046 = vmatprep.mubr.f32.mxu0 0.0
    %1047 = vmatmul.mubr.f32.gmra.mrb[0].mxu0 %v975
    %v1048 = vpop.f32.mrb[0].mxu0
    %v1049 = vadd.f32 0.0, %v1048
    %v1050 = vpop.f32.mrb[0].mxu0
    %1051 = vmatprep.mubr.f32.mxu0 0.0
    %1052 = vmatmul.mubr.f32.gmra.mrb[0].mxu0 %v978
    %v1053 = vpop.f32.mrb[0].mxu0
    %v1054 = vadd.f32 0.0, %v1053
    %v1055 = vpop.f32.mrb[0].mxu0
    %1056 = vdwg.mxu0
    %1057 = vrot.lane.b32.xlu0 %v335, 64
    %v1058 = vpop.permute.xlu0 %1057
    %1059 = vrot.lane.b32.xlu0 %v337, 64
    %v1060 = vpop.permute.xlu0 %1059
    %v1063 = vsel %vm702, %v790, 0
    %v1066 = vsel %vm702, %v791, 0
    %v1068 = vsel %vm803, %v1060, 0
    %1070 = vmatprep.subr.mxu0 0.0
    %1071 = vmatpush1.msra.mxu0 %v1058
    %1072 = vmatprep.subr.mxu0 0.0
    %1073 = vmatpush1.msra.mxu0 %v1068
    %1074 = vmatprep.subr.mxu0 0.0
    %1075 = vmatpush1.msra.mxu0 0.0
    %1076 = vmatprep.subr.mxu0 0.0
    %1077 = vmatpush1.msra.mxu0 0.0
    %1078 = vmatprep.subr.mxu0 0.0
    %1079 = vmatpush1.msra.mxu0 0.0
    %1080 = vmatprep.subr.mxu0 0.0
    %1081 = vmatpush1.msra.mxu0 0.0
    %1082 = vmatprep.subr.mxu0 0.0
    %1083 = vmatpush1.msra.mxu0 0.0
    %1084 = vmatprep.subr.mxu0 0.0
    %1085 = vmatpush1.msra.mxu0 0.0
    %1086 = vmatprep.subr.mxu0 0.0
    %1087 = vmatpush1.msra.mxu0 0.0
    %1088 = vmatprep.subr.mxu0 0.0
    %1089 = vmatpush1.msra.mxu0 0.0
    %1090 = vmatprep.subr.mxu0 0.0
    %1091 = vmatpush1.msra.mxu0 0.0
    %1092 = vmatprep.subr.mxu0 0.0
    %1093 = vmatpush1.msra.mxu0 0.0
    %1094 = vmatprep.subr.mxu0 0.0
    %1095 = vmatpush1.msra.mxu0 0.0
    %1096 = vmatprep.subr.mxu0 0.0
    %1097 = vmatpush1.msra.mxu0 0.0
    %1098 = vmatprep.subr.mxu0 0.0
    %1099 = vmatpush1.msra.mxu0 0.0
    %1100 = vmatprep.subr.mxu0 0.0
    %1101 = vmatpush1.msra.mxu0 0.0
    %1102 = vmatprep.subr.mxu0 0.0
    %1103 = vmatpush1.msra.mxu0 0.0
    %1104 = vmatprep.subr.mxu0 0.0
    %1105 = vmatpush1.msra.mxu0 0.0
    %1106 = vmatprep.subr.mxu0 0.0
    %1107 = vmatpush1.msra.mxu0 0.0
    %1108 = vmatprep.subr.mxu0 0.0
    %1109 = vmatpush1.msra.mxu0 0.0
    %1110 = vmatprep.subr.mxu0 0.0
    %1111 = vmatpush1.msra.mxu0 0.0
    %1112 = vmatprep.subr.mxu0 0.0
    %1113 = vmatpush1.msra.mxu0 0.0
    %1114 = vmatprep.subr.mxu0 0.0
    %1115 = vmatpush1.msra.mxu0 0.0
    %1116 = vmatprep.subr.mxu0 0.0
    %1117 = vmatpush1.msra.mxu0 0.0
    %1118 = vmatprep.subr.mxu0 0.0
    %1119 = vmatpush1.msra.mxu0 0.0
    %1120 = vmatprep.subr.mxu0 0.0
    %1121 = vmatpush1.msra.mxu0 0.0
    %1122 = vmatprep.subr.mxu0 0.0
    %1123 = vmatpush1.msra.mxu0 0.0
    %1124 = vmatprep.subr.mxu0 0.0
    %1125 = vmatpush1.msra.mxu0 0.0
    %1126 = vmatprep.subr.mxu0 0.0
    %1127 = vmatpush1.msra.mxu0 0.0
    %1128 = vmatprep.subr.mxu0 0.0
    %1129 = vmatpush1.msra.mxu0 0.0
    %1130 = vmatprep.subr.mxu0 0.0
    %1131 = vmatpush1.msra.mxu0 0.0
    %1132 = vmatprep.subr.mxu0 0.0
    %1133 = vmatpush1.msra.mxu0 0.0
    %1134 = vmatprep.mubr.f32.mxu0 0.0
    %1135 = vmatmul.mubr.f32.gmra.mrb[0].mxu0 %v1063
    %v1136 = vpop.f32.mrb[0].mxu0
    %v1137 = vadd.f32 0.0, %v1136
    %v1138 = vpop.f32.mrb[0].mxu0
    %1139 = vmatprep.mubr.f32.mxu0 0.0
    %1140 = vmatmul.mubr.f32.gmra.mrb[0].mxu0 %v1066
    %v1141 = vpop.f32.mrb[0].mxu0
    %v1142 = vadd.f32 0.0, %v1141
    %v1143 = vpop.f32.mrb[0].mxu0
    %1144 = vdwg.mxu0
    %1147 = vrot.lane.b32.xlu0 %v961, 8
    %v1148 = vpop.permute.xlu0 %1147
    %1149 = vrot.lane.b32.xlu0 %v966, 8
    %v1150 = vpop.permute.xlu0 %1149
    %1155 = vrot.lane.b32.xlu0 %v1049, 16
    %v1156 = vpop.permute.xlu0 %1155
    %1157 = vrot.lane.b32.xlu0 %v1054, 16
    %v1158 = vpop.permute.xlu0 %1157
    %1163 = vrot.lane.b32.xlu0 %v1137, 24
    %v1164 = vpop.permute.xlu0 %1163
    %1165 = vrot.lane.b32.xlu0 %v1142, 24
    %v1166 = vpop.permute.xlu0 %1165
    %v1169 = vsel %vm109, %v873, %v1148
    %v1170 = vsel %vm109, %v878, %v1150
    %vm1171 = vcmask 130048
    %v1172 = vsel %vm1171, %v1169, %v1156
    %v1173 = vsel %vm1171, %v1170, %v1158
    %vm1174 = vcmask 195584
    %v1175 = vsel %vm1174, %v1172, %v1164
    %v1176 = vsel %vm1174, %v1173, %v1166
    %v1177 = vld [vmem:[#allocation2 + $0x100] sm:$0xff]
    %v1178 = vld [vmem:[#allocation2 + $0x108] sm:$0xff]
    %v1179 = vld [vmem:[#allocation2 + $0x110] sm:$0xff]
    %v1180 = vld [vmem:[#allocation2 + $0x118] sm:$0xff]
    %v1182 = vsel %vm31, %v1175, 0
    %v1185 = vsel %vm31, %v1176, 0
    %1187 = vmatprep.subr.mxu0 0.0
    %1188 = vmatpush1.msra.mxu0 %v1177
    %1189 = vmatprep.subr.mxu0 0.0
    %1190 = vmatpush1.msra.mxu0 %v1178
    %1191 = vmatprep.subr.mxu0 0.0
    %1192 = vmatpush1.msra.mxu0 %v1179
    %1193 = vmatprep.subr.mxu0 0.0
    %1194 = vmatpush1.msra.mxu0 %v1180
    %1195 = vmatprep.subr.mxu0 0.0
    %1196 = vmatpush1.msra.mxu0 0.0
    %1197 = vmatprep.subr.mxu0 0.0
    %1198 = vmatpush1.msra.mxu0 0.0
    %1199 = vmatprep.subr.mxu0 0.0
    %1200 = vmatpush1.msra.mxu0 0.0
    %1201 = vmatprep.subr.mxu0 0.0
    %1202 = vmatpush1.msra.mxu0 0.0
    %1203 = vmatprep.subr.mxu0 0.0
    %1204 = vmatpush1.msra.mxu0 0.0
    %1205 = vmatprep.subr.mxu0 0.0
    %1206 = vmatpush1.msra.mxu0 0.0
    %1207 = vmatprep.subr.mxu0 0.0
    %1208 = vmatpush1.msra.mxu0 0.0
    %1209 = vmatprep.subr.mxu0 0.0
    %1210 = vmatpush1.msra.mxu0 0.0
    %1211 = vmatprep.subr.mxu0 0.0
    %1212 = vmatpush1.msra.mxu0 0.0
    %1213 = vmatprep.subr.mxu0 0.0
    %1214 = vmatpush1.msra.mxu0 0.0
    %1215 = vmatprep.subr.mxu0 0.0
    %1216 = vmatpush1.msra.mxu0 0.0
    %1217 = vmatprep.subr.mxu0 0.0
    %1218 = vmatpush1.msra.mxu0 0.0
    %1219 = vmatprep.subr.mxu0 0.0
    %1220 = vmatpush1.msra.mxu0 0.0
    %1221 = vmatprep.subr.mxu0 0.0
    %1222 = vmatpush1.msra.mxu0 0.0
    %1223 = vmatprep.subr.mxu0 0.0
    %1224 = vmatpush1.msra.mxu0 0.0
    %1225 = vmatprep.subr.mxu0 0.0
    %1226 = vmatpush1.msra.mxu0 0.0
    %1227 = vmatprep.subr.mxu0 0.0
    %1228 = vmatpush1.msra.mxu0 0.0
    %1229 = vmatprep.subr.mxu0 0.0
    %1230 = vmatpush1.msra.mxu0 0.0
    %1231 = vmatprep.subr.mxu0 0.0
    %1232 = vmatpush1.msra.mxu0 0.0
    %1233 = vmatprep.subr.mxu0 0.0
    %1234 = vmatpush1.msra.mxu0 0.0
    %1235 = vmatprep.subr.mxu0 0.0
    %1236 = vmatpush1.msra.mxu0 0.0
    %1237 = vmatprep.subr.mxu0 0.0
    %1238 = vmatpush1.msra.mxu0 0.0
    %1239 = vmatprep.subr.mxu0 0.0
    %1240 = vmatpush1.msra.mxu0 0.0
    %1241 = vmatprep.subr.mxu0 0.0
    %1242 = vmatpush1.msra.mxu0 0.0
    %1243 = vmatprep.subr.mxu0 0.0
    %1244 = vmatpush1.msra.mxu0 0.0
    %1245 = vmatprep.subr.mxu0 0.0
    %1246 = vmatpush1.msra.mxu0 0.0
    %1247 = vmatprep.subr.mxu0 0.0
    %1248 = vmatpush1.msra.mxu0 0.0
    %1249 = vmatprep.subr.mxu0 0.0
    %1250 = vmatpush1.msra.mxu0 0.0
    %1251 = vmatprep.mubr.f32.mxu0 0.0
    %1252 = vmatmul.mubr.f32.gmra.mrb[0].mxu0 %v1182
    %v1253 = vpop.f32.mrb[0].mxu0
    %v1254 = vadd.f32 0.0, %v1253
    %v1255 = vpop.f32.mrb[0].mxu0
    %1256 = vmatprep.mubr.f32.mxu0 0.0
    %1257 = vmatmul.mubr.f32.gmra.mrb[0].mxu0 %v1185
    %v1258 = vpop.f32.mrb[0].mxu0
    %v1259 = vadd.f32 0.0, %v1258
    %v1260 = vpop.f32.mrb[0].mxu0
    %1261 = vdwg.mxu0
    %v1262 = vadd.f32 %v183, %v1254
    %v1263 = vadd.f32 %v188, %v1259
    %v1264 = vld [vmem:[#allocation2 + $0x120] sm:$0x1]
    %v1265 = vlaneseq
    %v1266 = vshrl.u32 %v1265, 7
    %v1267 = vsub.s32 0, %v1266
    %v1268 = vrot.slane %v1264, %v1267
    %v1269 = vadd.f32 %v1262, %v1268
    %v1270 = vadd.f32 %v1263, %v1268
    %v1271 = vld [vmem:[#allocation2 + $0x128] sm:$0x1]
    %v1272 = vld [vmem:[#allocation2 + $0x130] sm:$0x1]
    %v1273 = vsel %vm31, %v1269, 0.0
    %1274 = vadd.xlane.f32.xlu0 %v1273
    %v1275 = vpop.xlane.xlu0 %1274
    %v1276 = vsel %vm202, %v1270, 0.0
    %1277 = vadd.xlane.f32.xlu0 %v1276
    %v1278 = vpop.xlane.xlu0 %1277
    %v1279 = vmul.f32 %v1275, %v206
    %v1280 = vmul.f32 %v1278, %v206
    %v1281 = vsub.f32 %v1269, %v1279
    %v1282 = vsub.f32 %v1270, %v1280
    %v1283 = vmul.f32 %v1281, %v1281
    %v1284 = vmul.f32 %v1282, %v1282
    %v1285 = vsel %vm31, %v1283, 0.0
    %1286 = vadd.xlane.f32.xlu0 %v1285
    %v1287 = vpop.xlane.xlu0 %1286
    %v1288 = vsel %vm202, %v1284, 0.0
    %1289 = vadd.xlane.f32.xlu0 %v1288
    %v1290 = vpop.xlane.xlu0 %1289
    %v1291 = vmul.f32 %v1287, %v206
    %v1292 = vmul.f32 %v1290, %v206
    %v1293 = vadd.f32 %v1291, 1e-05
    %v1294 = vadd.f32 %v1292, 1e-05
    %v1295 = vrsqrt.pop %v1293
    %v1296 = vrsqrt.pop %v1294
    %v1297 = vmul.f32 %v1281, %v1295
    %v1298 = vmul.f32 %v1282, %v1296
    %v1299 = vlaneseq
    %v1300 = vshrl.u32 %v1299, 7
    %v1301 = vsub.s32 0, %v1300
    %v1302 = vrot.slane %v1271, %v1301
    %v1303 = vmul.f32 %v1297, %v1302
    %v1304 = vmul.f32 %v1298, %v1302
    %v1305 = vlaneseq
    %v1306 = vshrl.u32 %v1305, 7
    %v1307 = vsub.s32 0, %v1306
    %v1308 = vrot.slane %v1272, %v1307
    %v1309 = vadd.f32 %v1303, %v1308
    %v1310 = vadd.f32 %v1304, %v1308
    %v1311 = vld [vmem:[#allocation2 + $0x138] sm:$0xff]
    %v1312 = vld [vmem:[#allocation2 + $0x140] sm:$0xff]
    %v1313 = vld [vmem:[#allocation2 + $0x148] sm:$0xff]
    %v1314 = vld [vmem:[#allocation2 + $0x150] sm:$0xff]
    %v1315 = vld [vmem:[#allocation2 + $0x158] sm:$0x1]
    %v1316 = vlaneseq
    %v1317 = vshrl.u32 %v1316, 7
    %v1318 = vsub.s32 0, %v1317
    %v1319 = vrot.slane %v1315, %v1318
    %v1321 = vsel %vm31, %v1309, 0
    %v1324 = vsel %vm31, %v1310, 0
    %1326 = vmatprep.subr.mxu0 0.0
    %1327 = vmatpush1.msra.mxu0 %v1311
    %1328 = vmatprep.subr.mxu0 0.0
    %1329 = vmatpush1.msra.mxu0 %v1312
    %1330 = vmatprep.subr.mxu0 0.0
    %1331 = vmatpush1.msra.mxu0 %v1313
    %1332 = vmatprep.subr.mxu0 0.0
    %1333 = vmatpush1.msra.mxu0 %v1314
    %1334 = vmatprep.subr.mxu0 0.0
    %1335 = vmatpush1.msra.mxu0 0.0
    %1336 = vmatprep.subr.mxu0 0.0
    %1337 = vmatpush1.msra.mxu0 0.0
    %1338 = vmatprep.subr.mxu0 0.0
    %1339 = vmatpush1.msra.mxu0 0.0
    %1340 = vmatprep.subr.mxu0 0.0
    %1341 = vmatpush1.msra.mxu0 0.0
    %1342 = vmatprep.subr.mxu0 0.0
    %1343 = vmatpush1.msra.mxu0 0.0
    %1344 = vmatprep.subr.mxu0 0.0
    %1345 = vmatpush1.msra.mxu0 0.0
    %1346 = vmatprep.subr.mxu0 0.0
    %1347 = vmatpush1.msra.mxu0 0.0
    %1348 = vmatprep.subr.mxu0 0.0
    %1349 = vmatpush1.msra.mxu0 0.0
    %1350 = vmatprep.subr.mxu0 0.0
    %1351 = vmatpush1.msra.mxu0 0.0
    %1352 = vmatprep.subr.mxu0 0.0
    %1353 = vmatpush1.msra.mxu0 0.0
    %1354 = vmatprep.subr.mxu0 0.0
    %1355 = vmatpush1.msra.mxu0 0.0
    %1356 = vmatprep.subr.mxu0 0.0
    %1357 = vmatpush1.msra.mxu0 0.0
    %1358 = vmatprep.subr.mxu0 0.0
    %1359 = vmatpush1.msra.mxu0 0.0
    %1360 = vmatprep.subr.mxu0 0.0
    %1361 = vmatpush1.msra.mxu0 0.0
    %1362 = vmatprep.subr.mxu0 0.0
    %1363 = vmatpush1.msra.mxu0 0.0
    %1364 = vmatprep.subr.mxu0 0.0
    %1365 = vmatpush1.msra.mxu0 0.0
    %1366 = vmatprep.subr.mxu0 0.0
    %1367 = vmatpush1.msra.mxu0 0.0
    %1368 = vmatprep.subr.mxu0 0.0
    %1369 = vmatpush1.msra.mxu0 0.0
    %1370 = vmatprep.subr.mxu0 0.0
    %1371 = vmatpush1.msra.mxu0 0.0
    %1372 = vmatprep.subr.mxu0 0.0
    %1373 = vmatpush1.msra.mxu0 0.0
    %1374 = vmatprep.subr.mxu0 0.0
    %1375 = vmatpush1.msra.mxu0 0.0
    %1376 = vmatprep.subr.mxu0 0.0
    %1377 = vmatpush1.msra.mxu0 0.0
    %1378 = vmatprep.subr.mxu0 0.0
    %1379 = vmatpush1.msra.mxu0 0.0
    %1380 = vmatprep.subr.mxu0 0.0
    %1381 = vmatpush1.msra.mxu0 0.0
    %1382 = vmatprep.subr.mxu0 0.0
    %1383 = vmatpush1.msra.mxu0 0.0
    %1384 = vmatprep.subr.mxu0 0.0
    %1385 = vmatpush1.msra.mxu0 0.0
    %1386 = vmatprep.subr.mxu0 0.0
    %1387 = vmatpush1.msra.mxu0 0.0
    %1388 = vmatprep.subr.mxu0 0.0
    %1389 = vmatpush1.msra.mxu0 0.0
    %1390 = vmatprep.mubr.f32.mxu0 0.0
    %1391 = vmatmul.mubr.f32.gmra.mrb[0].mxu0 %v1321
    %v1392 = vpop.f32.mrb[0].mxu0
    %v1393 = vadd.f32 %v1319, %v1392
    %v1394 = vpop.f32.mrb[0].mxu0
    %1395 = vmatprep.mubr.f32.mxu0 0.0
    %1396 = vmatmul.mubr.f32.gmra.mrb[0].mxu0 %v1324
    %v1397 = vpop.f32.mrb[0].mxu0
    %v1398 = vadd.f32 %v1319, %v1397
    %v1399 = vpop.f32.mrb[0].mxu0
    %1400 = vdwg.mxu0
    %v1401 = vmul.f32 %v1393, 0.5
    %v1402 = vmul.f32 %v1398, 0.5
    %v1403 = vmul.f32 %v1393, 0.70710677
    %v1404 = vmul.f32 %v1398, 0.70710677
    %vm1405 = vcmp.ge.f32.partialorder %v1403, 0.0
    %vm1406 = vcmp.ge.f32.partialorder %v1404, 0.0
    %v1407 = vsel %vm1405, 1.0, -1.0
    %v1408 = vsel %vm1406, 1.0, -1.0
    %v1409 = vand.u32 2147483647, %v1403
    %v1410 = vand.u32 2147483647, %v1404
    %v1411 = vmul.f32 %v1409, 0.3275911
    %v1412 = vmul.f32 %v1410, 0.3275911
    %v1413 = vadd.f32 %v1411, 1.0
    %v1414 = vadd.f32 %v1412, 1.0
    %v1415 = vrcp.pop %v1413
    %v1416 = vmul.f32 1.0, %v1415
    %v1417 = vrcp.pop %v1414
    %v1418 = vmul.f32 1.0, %v1417
    %v1419 = vmul.f32 %v1416, 1.0614054
    %v1420 = vmul.f32 %v1418, 1.0614054
    %v1421 = vsub.f32 %v1419, 1.4531521
    %v1422 = vsub.f32 %v1420, 1.4531521
    %v1423 = vmul.f32 %v1421, %v1416
    %v1424 = vmul.f32 %v1422, %v1418
    %v1425 = vadd.f32 %v1423, 1.4214138
    %v1426 = vadd.f32 %v1424, 1.4214138
    %v1427 = vmul.f32 %v1425, %v1416
    %v1428 = vmul.f32 %v1426, %v1418
    %v1429 = vsub.f32 %v1427, 0.28449672
    %v1430 = vsub.f32 %v1428, 0.28449672
    %v1431 = vmul.f32 %v1429, %v1416
    %v1432 = vmul.f32 %v1430, %v1418
    %v1433 = vadd.f32 %v1431, 0.2548296
    %v1434 = vadd.f32 %v1432, 0.2548296
    %v1435 = vmul.f32 %v1433, %v1416
    %v1436 = vmul.f32 %v1434, %v1418
    %v1437 = vsub.f32 0.0, %v1409
    %v1438 = vsub.f32 0.0, %v1410
    %v1439 = vmul.f32 %v1437, %v1409
    %v1440 = vmul.f32 %v1438, %v1410
    %v1441 = vmul.f32 %v1439, 1.442695
    %v1442 = vpow.pop %v1441
    %v1443 = vmul.f32 %v1440, 1.442695
    %v1444 = vpow.pop %v1443
    %v1445 = vmul.f32 %v1435, %v1442
    %v1446 = vmul.f32 %v1436, %v1444
    %v1447 = vsub.f32 1.0, %v1445
    %v1448 = vsub.f32 1.0, %v1446
    %v1449 = vmul.f32 %v1407, %v1447
    %v1450 = vmul.f32 %v1408, %v1448
    %v1451 = vadd.f32 %v1449, 1.0
    %v1452 = vadd.f32 %v1450, 1.0
    %v1453 = vmul.f32 %v1401, %v1451
    %v1454 = vmul.f32 %v1402, %v1452
    %v1455 = vld [vmem:[#allocation2 + $0x160] sm:$0xff]
    %v1456 = vld [vmem:[#allocation2 + $0x168] sm:$0xff]
    %v1457 = vld [vmem:[#allocation2 + $0x170] sm:$0xff]
    %v1458 = vld [vmem:[#allocation2 + $0x178] sm:$0xff]
    %v1459 = vld [vmem:[#allocation2 + $0x180] sm:$0xff]
    %v1460 = vld [vmem:[#allocation2 + $0x188] sm:$0xff]
    %v1461 = vld [vmem:[#allocation2 + $0x190] sm:$0xff]
    %v1462 = vld [vmem:[#allocation2 + $0x198] sm:$0xff]
    %v1463 = vld [vmem:[#allocation2 + $0x1a0] sm:$0x1]
    %v1464 = vlaneseq
    %v1465 = vshrl.u32 %v1464, 7
    %v1466 = vsub.s32 0, %v1465
    %v1467 = vrot.slane %v1463, %v1466
    %vm1468 = vcmask 523264
    %v1470 = vsel %vm1468, %v1453, 0
    %v1473 = vsel %vm1468, %v1454, 0
    %1475 = vmatprep.subr.mxu0 0.0
    %1476 = vmatpush1.msra.mxu0 %v1455
    %1477 = vmatprep.subr.mxu0 0.0
    %1478 = vmatpush1.msra.mxu0 %v1456
    %1479 = vmatprep.subr.mxu0 0.0
    %1480 = vmatpush1.msra.mxu0 %v1457
    %1481 = vmatprep.subr.mxu0 0.0
    %1482 = vmatpush1.msra.mxu0 %v1458
    %1483 = vmatprep.subr.mxu0 0.0
    %1484 = vmatpush1.msra.mxu0 %v1459
    %1485 = vmatprep.subr.mxu0 0.0
    %1486 = vmatpush1.msra.mxu0 %v1460
    %1487 = vmatprep.subr.mxu0 0.0
    %1488 = vmatpush1.msra.mxu0 %v1461
    %1489 = vmatprep.subr.mxu0 0.0
    %1490 = vmatpush1.msra.mxu0 %v1462
    %1491 = vmatprep.subr.mxu0 0.0
    %1492 = vmatpush1.msra.mxu0 0.0
    %1493 = vmatprep.subr.mxu0 0.0
    %1494 = vmatpush1.msra.mxu0 0.0
    %1495 = vmatprep.subr.mxu0 0.0
    %1496 = vmatpush1.msra.mxu0 0.0
    %1497 = vmatprep.subr.mxu0 0.0
    %1498 = vmatpush1.msra.mxu0 0.0
    %1499 = vmatprep.subr.mxu0 0.0
    %1500 = vmatpush1.msra.mxu0 0.0
    %1501 = vmatprep.subr.mxu0 0.0
    %1502 = vmatpush1.msra.mxu0 0.0
    %1503 = vmatprep.subr.mxu0 0.0
    %1504 = vmatpush1.msra.mxu0 0.0
    %1505 = vmatprep.subr.mxu0 0.0
    %1506 = vmatpush1.msra.mxu0 0.0
    %1507 = vmatprep.subr.mxu0 0.0
    %1508 = vmatpush1.msra.mxu0 0.0
    %1509 = vmatprep.subr.mxu0 0.0
    %1510 = vmatpush1.msra.mxu0 0.0
    %1511 = vmatprep.subr.mxu0 0.0
    %1512 = vmatpush1.msra.mxu0 0.0
    %1513 = vmatprep.subr.mxu0 0.0
    %1514 = vmatpush1.msra.mxu0 0.0
    %1515 = vmatprep.subr.mxu0 0.0
    %1516 = vmatpush1.msra.mxu0 0.0
    %1517 = vmatprep.subr.mxu0 0.0
    %1518 = vmatpush1.msra.mxu0 0.0
    %1519 = vmatprep.subr.mxu0 0.0
    %1520 = vmatpush1.msra.mxu0 0.0
    %1521 = vmatprep.subr.mxu0 0.0
    %1522 = vmatpush1.msra.mxu0 0.0
    %1523 = vmatprep.subr.mxu0 0.0
    %1524 = vmatpush1.msra.mxu0 0.0
    %1525 = vmatprep.subr.mxu0 0.0
    %1526 = vmatpush1.msra.mxu0 0.0
    %1527 = vmatprep.subr.mxu0 0.0
    %1528 = vmatpush1.msra.mxu0 0.0
    %1529 = vmatprep.subr.mxu0 0.0
    %1530 = vmatpush1.msra.mxu0 0.0
    %1531 = vmatprep.subr.mxu0 0.0
    %1532 = vmatpush1.msra.mxu0 0.0
    %1533 = vmatprep.subr.mxu0 0.0
    %1534 = vmatpush1.msra.mxu0 0.0
    %1535 = vmatprep.subr.mxu0 0.0
    %1536 = vmatpush1.msra.mxu0 0.0
    %1537 = vmatprep.subr.mxu0 0.0
    %1538 = vmatpush1.msra.mxu0 0.0
    %1539 = vmatprep.mubr.f32.mxu0 0.0
    %1540 = vmatmul.mubr.f32.gmra.mrb[0].mxu0 %v1470
    %v1541 = vpop.f32.mrb[0].mxu0
    %v1542 = vadd.f32 %v1467, %v1541
    %v1543 = vpop.f32.mrb[0].mxu0
    %1544 = vmatprep.mubr.f32.mxu0 0.0
    %1545 = vmatmul.mubr.f32.gmra.mrb[0].mxu0 %v1473
    %v1546 = vpop.f32.mrb[0].mxu0
    %v1547 = vadd.f32 %v1467, %v1546
    %v1548 = vpop.f32.mrb[0].mxu0
    %1549 = vdwg.mxu0
    %v1550 = vadd.f32 %v1269, %v1542
    %v1551 = vadd.f32 %v1270, %v1547
    %v1552 = vld [vmem:[#allocation2 + $0x1a8] sm:$0x1]
    %v1553 = vld [vmem:[#allocation2 + $0x1b0] sm:$0x1]
    %v1554 = vsel %vm31, %v1550, 0.0
    %1555 = vadd.xlane.f32.xlu0 %v1554
    %v1556 = vpop.xlane.xlu0 %1555
    %v1557 = vsel %vm202, %v1551, 0.0
    %1558 = vadd.xlane.f32.xlu0 %v1557
    %v1559 = vpop.xlane.xlu0 %1558
    %v1560 = vmul.f32 %v1556, %v206
    %v1561 = vmul.f32 %v1559, %v206
    %v1562 = vsub.f32 %v1550, %v1560
    %v1563 = vsub.f32 %v1551, %v1561
    %v1564 = vmul.f32 %v1562, %v1562
    %v1565 = vmul.f32 %v1563, %v1563
    %v1566 = vsel %vm31, %v1564, 0.0
    %1567 = vadd.xlane.f32.xlu0 %v1566
    %v1568 = vpop.xlane.xlu0 %1567
    %v1569 = vsel %vm202, %v1565, 0.0
    %1570 = vadd.xlane.f32.xlu0 %v1569
    %v1571 = vpop.xlane.xlu0 %1570
    %v1572 = vmul.f32 %v1568, %v206
    %v1573 = vmul.f32 %v1571, %v206
    %v1574 = vadd.f32 %v1572, 1e-05
    %v1575 = vadd.f32 %v1573, 1e-05
    %v1576 = vrsqrt.pop %v1574
    %v1577 = vrsqrt.pop %v1575
    %v1578 = vmul.f32 %v1562, %v1576
    %v1579 = vmul.f32 %v1563, %v1577
    %v1580 = vlaneseq
    %v1581 = vshrl.u32 %v1580, 7
    %v1582 = vsub.s32 0, %v1581
    %v1583 = vrot.slane %v1552, %v1582
    %v1584 = vmul.f32 %v1578, %v1583
    %v1585 = vmul.f32 %v1579, %v1583
    %v1586 = vlaneseq
    %v1587 = vshrl.u32 %v1586, 7
    %v1588 = vsub.s32 0, %v1587
    %v1589 = vrot.slane %v1553, %v1588
    %v1590 = vadd.f32 %v1584, %v1589
    %v1591 = vadd.f32 %v1585, %v1589
    %v1592 = vld [vmem:[#allocation2 + $0x1b8] sm:$0xff]
    %v1593 = vld [vmem:[#allocation2 + $0x1c0] sm:$0xff]
    %v1594 = vld [vmem:[#allocation2 + $0x1c8] sm:$0xff]
    %v1595 = vld [vmem:[#allocation2 + $0x1d0] sm:$0xff]
    %v1597 = vsel %vm31, %v1590, 0
    %v1600 = vsel %vm31, %v1591, 0
    %1602 = vmatprep.subr.mxu0 0.0
    %1603 = vmatpush1.msra.mxu0 %v1592
    %1604 = vmatprep.subr.mxu0 0.0
    %1605 = vmatpush1.msra.mxu0 %v1593
    %1606 = vmatprep.subr.mxu0 0.0
    %1607 = vmatpush1.msra.mxu0 %v1594
    %1608 = vmatprep.subr.mxu0 0.0
    %1609 = vmatpush1.msra.mxu0 %v1595
    %1610 = vmatprep.subr.mxu0 0.0
    %1611 = vmatpush1.msra.mxu0 0.0
    %1612 = vmatprep.subr.mxu0 0.0
    %1613 = vmatpush1.msra.mxu0 0.0
    %1614 = vmatprep.subr.mxu0 0.0
    %1615 = vmatpush1.msra.mxu0 0.0
    %1616 = vmatprep.subr.mxu0 0.0
    %1617 = vmatpush1.msra.mxu0 0.0
    %1618 = vmatprep.subr.mxu0 0.0
    %1619 = vmatpush1.msra.mxu0 0.0
    %1620 = vmatprep.subr.mxu0 0.0
    %1621 = vmatpush1.msra.mxu0 0.0
    %1622 = vmatprep.subr.mxu0 0.0
    %1623 = vmatpush1.msra.mxu0 0.0
    %1624 = vmatprep.subr.mxu0 0.0
    %1625 = vmatpush1.msra.mxu0 0.0
    %1626 = vmatprep.subr.mxu0 0.0
    %1627 = vmatpush1.msra.mxu0 0.0
    %1628 = vmatprep.subr.mxu0 0.0
    %1629 = vmatpush1.msra.mxu0 0.0
    %1630 = vmatprep.subr.mxu0 0.0
    %1631 = vmatpush1.msra.mxu0 0.0
    %1632 = vmatprep.subr.mxu0 0.0
    %1633 = vmatpush1.msra.mxu0 0.0
    %1634 = vmatprep.subr.mxu0 0.0
    %1635 = vmatpush1.msra.mxu0 0.0
    %1636 = vmatprep.subr.mxu0 0.0
    %1637 = vmatpush1.msra.mxu0 0.0
    %1638 = vmatprep.subr.mxu0 0.0
    %1639 = vmatpush1.msra.mxu0 0.0
    %1640 = vmatprep.subr.mxu0 0.0
    %1641 = vmatpush1.msra.mxu0 0.0
    %1642 = vmatprep.subr.mxu0 0.0
    %1643 = vmatpush1.msra.mxu0 0.0
    %1644 = vmatprep.subr.mxu0 0.0
    %1645 = vmatpush1.msra.mxu0 0.0
    %1646 = vmatprep.subr.mxu0 0.0
    %1647 = vmatpush1.msra.mxu0 0.0
    %1648 = vmatprep.subr.mxu0 0.0
    %1649 = vmatpush1.msra.mxu0 0.0
    %1650 = vmatprep.subr.mxu0 0.0
    %1651 = vmatpush1.msra.mxu0 0.0
    %1652 = vmatprep.subr.mxu0 0.0
    %1653 = vmatpush1.msra.mxu0 0.0
    %1654 = vmatprep.subr.mxu0 0.0
    %1655 = vmatpush1.msra.mxu0 0.0
    %1656 = vmatprep.subr.mxu0 0.0
    %1657 = vmatpush1.msra.mxu0 0.0
    %1658 = vmatprep.subr.mxu0 0.0
    %1659 = vmatpush1.msra.mxu0 0.0
    %1660 = vmatprep.subr.mxu0 0.0
    %1661 = vmatpush1.msra.mxu0 0.0
    %1662 = vmatprep.subr.mxu0 0.0
    %1663 = vmatpush1.msra.mxu0 0.0
    %1664 = vmatprep.subr.mxu0 0.0
    %1665 = vmatpush1.msra.mxu0 0.0
    %1666 = vmatprep.mubr.f32.mxu0 0.0
    %1667 = vmatmul.mubr.f32.gmra.mrb[0].mxu0 %v1597
    %v1668 = vpop.f32.mrb[0].mxu0
    %v1669 = vadd.f32 0.0, %v1668
    %v1670 = vpop.f32.mrb[0].mxu0
    %1671 = vmatprep.mubr.f32.mxu0 0.0
    %1672 = vmatmul.mubr.f32.gmra.mrb[0].mxu0 %v1600
    %v1673 = vpop.f32.mrb[0].mxu0
    %v1674 = vadd.f32 0.0, %v1673
    %v1675 = vpop.f32.mrb[0].mxu0
    %1676 = vdwg.mxu0
    %1679 = vrot.lane.b32.xlu0 %v1669, 120
    %v1680 = vpop.permute.xlu0 %1679
    %1681 = vrot.lane.b32.xlu0 %v1674, 120
    %v1682 = vpop.permute.xlu0 %1681
    %1683 = vrot.lane.b32.xlu0 %v1669, 112
    %v1684 = vpop.permute.xlu0 %1683
    %1685 = vrot.lane.b32.xlu0 %v1674, 112
    %v1686 = vpop.permute.xlu0 %1685
    %1687 = vrot.lane.b32.xlu0 %v1669, 104
    %v1688 = vpop.permute.xlu0 %1687
    %1689 = vrot.lane.b32.xlu0 %v1674, 104
    %v1690 = vpop.permute.xlu0 %1689
    %1691 = vrot.lane.b32.xlu0 %v1669, 96
    %v1692 = vpop.permute.xlu0 %1691
    %1693 = vrot.lane.b32.xlu0 %v1674, 96
    %v1694 = vpop.permute.xlu0 %1693
    %v1695 = vsel %vm109, %v1669, 0
    %v1697 = vsel %vm109, %v1674, 0
    %v1699 = vsel %vm109, %v1692, 0
    %v1701 = vsel %vm109, %v1694, 0
    %1703 = vmatprep.subr.mxu0 0.0
    %1704 = vmatpush1.xpose.msra.mxu0 %v1699
    %1705 = vmatprep.subr.mxu0 0.0
    %1706 = vmatpush1.xpose.msra.mxu0 %v1701
    %1707 = vmatprep.subr.mxu0 0.0
    %1708 = vmatpush1.xpose.msra.mxu0 0.0
    %1709 = vmatprep.subr.mxu0 0.0
    %1710 = vmatpush1.xpose.msra.mxu0 0.0
    %1711 = vmatprep.subr.mxu0 0.0
    %1712 = vmatpush1.xpose.msra.mxu0 0.0
    %1713 = vmatprep.subr.mxu0 0.0
    %1714 = vmatpush1.xpose.msra.mxu0 0.0
    %1715 = vmatprep.subr.mxu0 0.0
    %1716 = vmatpush1.xpose.msra.mxu0 0.0
    %1717 = vmatprep.subr.mxu0 0.0
    %1718 = vmatpush1.xpose.msra.mxu0 0.0
    %1719 = vmatprep.subr.mxu0 0.0
    %1720 = vmatpush1.xpose.msra.mxu0 0.0
    %1721 = vmatprep.subr.mxu0 0.0
    %1722 = vmatpush1.xpose.msra.mxu0 0.0
    %1723 = vmatprep.subr.mxu0 0.0
    %1724 = vmatpush1.xpose.msra.mxu0 0.0
    %1725 = vmatprep.subr.mxu0 0.0
    %1726 = vmatpush1.xpose.msra.mxu0 0.0
    %1727 = vmatprep.subr.mxu0 0.0
    %1728 = vmatpush1.xpose.msra.mxu0 0.0
    %1729 = vmatprep.subr.mxu0 0.0
    %1730 = vmatpush1.xpose.msra.mxu0 0.0
    %1731 = vmatprep.subr.mxu0 0.0
    %1732 = vmatpush1.xpose.msra.mxu0 0.0
    %1733 = vmatprep.subr.mxu0 0.0
    %1734 = vmatpush1.xpose.msra.mxu0 0.0
    %1735 = vmatprep.subr.mxu0 0.0
    %1736 = vmatpush1.xpose.msra.mxu0 0.0
    %1737 = vmatprep.subr.mxu0 0.0
    %1738 = vmatpush1.xpose.msra.mxu0 0.0
    %1739 = vmatprep.subr.mxu0 0.0
    %1740 = vmatpush1.xpose.msra.mxu0 0.0
    %1741 = vmatprep.subr.mxu0 0.0
    %1742 = vmatpush1.xpose.msra.mxu0 0.0
    %1743 = vmatprep.subr.mxu0 0.0
    %1744 = vmatpush1.xpose.msra.mxu0 0.0
    %1745 = vmatprep.subr.mxu0 0.0
    %1746 = vmatpush1.xpose.msra.mxu0 0.0
    %1747 = vmatprep.subr.mxu0 0.0
    %1748 = vmatpush1.xpose.msra.mxu0 0.0
    %1749 = vmatprep.subr.mxu0 0.0
    %1750 = vmatpush1.xpose.msra.mxu0 0.0
    %1751 = vmatprep.subr.mxu0 0.0
    %1752 = vmatpush1.xpose.msra.mxu0 0.0
    %1753 = vmatprep.subr.mxu0 0.0
    %1754 = vmatpush1.xpose.msra.mxu0 0.0
    %1755 = vmatprep.subr.mxu0 0.0
    %1756 = vmatpush1.xpose.msra.mxu0 0.0
    %1757 = vmatprep.subr.mxu0 0.0
    %1758 = vmatpush1.xpose.msra.mxu0 0.0
    %1759 = vmatprep.subr.mxu0 0.0
    %1760 = vmatpush1.xpose.msra.mxu0 0.0
    %1761 = vmatprep.subr.mxu0 0.0
    %1762 = vmatpush1.xpose.msra.mxu0 0.0
    %1763 = vmatprep.subr.mxu0 0.0
    %1764 = vmatpush1.xpose.msra.mxu0 0.0
    %1765 = vmatprep.subr.mxu0 0.0
    %1766 = vmatpush1.xpose.msra.mxu0 0.0
    %1767 = vmatprep.mubr.f32.mxu0 0.0
    %1768 = vmatmul.mubr.f32.gmra.mrb[0].mxu0 %v1695
    %v1769 = vpop.f32.mrb[0].mxu0
    %v1770 = vadd.f32 0.0, %v1769
    %v1771 = vpop.f32.mrb[0].mxu0
    %1772 = vmatprep.mubr.f32.mxu0 0.0
    %1773 = vmatmul.mubr.f32.gmra.mrb[0].mxu0 %v1697
    %v1774 = vpop.f32.mrb[0].mxu0
    %v1775 = vadd.f32 0.0, %v1774
    %v1776 = vpop.f32.mrb[0].mxu0
    %1777 = vdwg.mxu0
    %1778 = vrot.lane.b32.xlu0 %v1680, 96
    %v1779 = vpop.permute.xlu0 %1778
    %1780 = vrot.lane.b32.xlu0 %v1682, 96
    %v1781 = vpop.permute.xlu0 %1780
    %v1782 = vsel %vm109, %v1680, 0
    %v1784 = vsel %vm109, %v1682, 0
    %v1786 = vsel %vm109, %v1779, 0
    %v1788 = vsel %vm109, %v1781, 0
    %1790 = vmatprep.subr.mxu0 0.0
    %1791 = vmatpush1.xpose.msra.mxu0 %v1786
    %1792 = vmatprep.subr.mxu0 0.0
    %1793 = vmatpush1.xpose.msra.mxu0 %v1788
    %1794 = vmatprep.subr.mxu0 0.0
    %1795 = vmatpush1.xpose.msra.mxu0 0.0
    %1796 = vmatprep.subr.mxu0 0.0
    %1797 = vmatpush1.xpose.msra.mxu0 0.0
    %1798 = vmatprep.subr.mxu0 0.0
    %1799 = vmatpush1.xpose.msra.mxu0 0.0
    %1800 = vmatprep.subr.mxu0 0.0
    %1801 = vmatpush1.xpose.msra.mxu0 0.0
    %1802 = vmatprep.subr.mxu0 0.0
    %1803 = vmatpush1.xpose.msra.mxu0 0.0
    %1804 = vmatprep.subr.mxu0 0.0
    %1805 = vmatpush1.xpose.msra.mxu0 0.0
    %1806 = vmatprep.subr.mxu0 0.0
    %1807 = vmatpush1.xpose.msra.mxu0 0.0
    %1808 = vmatprep.subr.mxu0 0.0
    %1809 = vmatpush1.xpose.msra.mxu0 0.0
    %1810 = vmatprep.subr.mxu0 0.0
    %1811 = vmatpush1.xpose.msra.mxu0 0.0
    %1812 = vmatprep.subr.mxu0 0.0
    %1813 = vmatpush1.xpose.msra.mxu0 0.0
    %1814 = vmatprep.subr.mxu0 0.0
    %1815 = vmatpush1.xpose.msra.mxu0 0.0
    %1816 = vmatprep.subr.mxu0 0.0
    %1817 = vmatpush1.xpose.msra.mxu0 0.0
    %1818 = vmatprep.subr.mxu0 0.0
    %1819 = vmatpush1.xpose.msra.mxu0 0.0
    %1820 = vmatprep.subr.mxu0 0.0
    %1821 = vmatpush1.xpose.msra.mxu0 0.0
    %1822 = vmatprep.subr.mxu0 0.0
    %1823 = vmatpush1.xpose.msra.mxu0 0.0
    %1824 = vmatprep.subr.mxu0 0.0
    %1825 = vmatpush1.xpose.msra.mxu0 0.0
    %1826 = vmatprep.subr.mxu0 0.0
    %1827 = vmatpush1.xpose.msra.mxu0 0.0
    %1828 = vmatprep.subr.mxu0 0.0
    %1829 = vmatpush1.xpose.msra.mxu0 0.0
    %1830 = vmatprep.subr.mxu0 0.0
    %1831 = vmatpush1.xpose.msra.mxu0 0.0
    %1832 = vmatprep.subr.mxu0 0.0
    %1833 = vmatpush1.xpose.msra.mxu0 0.0
    %1834 = vmatprep.subr.mxu0 0.0
    %1835 = vmatpush1.xpose.msra.mxu0 0.0
    %1836 = vmatprep.subr.mxu0 0.0
    %1837 = vmatpush1.xpose.msra.mxu0 0.0
    %1838 = vmatprep.subr.mxu0 0.0
    %1839 = vmatpush1.xpose.msra.mxu0 0.0
    %1840 = vmatprep.subr.mxu0 0.0
    %1841 = vmatpush1.xpose.msra.mxu0 0.0
    %1842 = vmatprep.subr.mxu0 0.0
    %1843 = vmatpush1.xpose.msra.mxu0 0.0
    %1844 = vmatprep.subr.mxu0 0.0
    %1845 = vmatpush1.xpose.msra.mxu0 0.0
    %1846 = vmatprep.subr.mxu0 0.0
    %1847 = vmatpush1.xpose.msra.mxu0 0.0
    %1848 = vmatprep.subr.mxu0 0.0
    %1849 = vmatpush1.xpose.msra.mxu0 0.0
    %1850 = vmatprep.subr.mxu0 0.0
    %1851 = vmatpush1.xpose.msra.mxu0 0.0
    %1852 = vmatprep.subr.mxu0 0.0
    %1853 = vmatpush1.xpose.msra.mxu0 0.0
    %1854 = vmatprep.mubr.f32.mxu0 0.0
    %1855 = vmatmul.mubr.f32.gmra.mrb[0].mxu0 %v1782
    %v1856 = vpop.f32.mrb[0].mxu0
    %v1857 = vadd.f32 0.0, %v1856
    %v1858 = vpop.f32.mrb[0].mxu0
    %1859 = vmatprep.mubr.f32.mxu0 0.0
    %1860 = vmatmul.mubr.f32.gmra.mrb[0].mxu0 %v1784
    %v1861 = vpop.f32.mrb[0].mxu0
    %v1862 = vadd.f32 0.0, %v1861
    %v1863 = vpop.f32.mrb[0].mxu0
    %1864 = vdwg.mxu0
    %1865 = vrot.lane.b32.xlu0 %v1684, 96
    %v1866 = vpop.permute.xlu0 %1865
    %1867 = vrot.lane.b32.xlu0 %v1686, 96
    %v1868 = vpop.permute.xlu0 %1867
    %v1869 = vsel %vm109, %v1684, 0
    %v1871 = vsel %vm109, %v1686, 0
    %v1873 = vsel %vm109, %v1866, 0
    %v1875 = vsel %vm109, %v1868, 0
    %1877 = vmatprep.subr.mxu0 0.0
    %1878 = vmatpush1.xpose.msra.mxu0 %v1873
    %1879 = vmatprep.subr.mxu0 0.0
    %1880 = vmatpush1.xpose.msra.mxu0 %v1875
    %1881 = vmatprep.subr.mxu0 0.0
    %1882 = vmatpush1.xpose.msra.mxu0 0.0
    %1883 = vmatprep.subr.mxu0 0.0
    %1884 = vmatpush1.xpose.msra.mxu0 0.0
    %1885 = vmatprep.subr.mxu0 0.0
    %1886 = vmatpush1.xpose.msra.mxu0 0.0
    %1887 = vmatprep.subr.mxu0 0.0
    %1888 = vmatpush1.xpose.msra.mxu0 0.0
    %1889 = vmatprep.subr.mxu0 0.0
    %1890 = vmatpush1.xpose.msra.mxu0 0.0
    %1891 = vmatprep.subr.mxu0 0.0
    %1892 = vmatpush1.xpose.msra.mxu0 0.0
    %1893 = vmatprep.subr.mxu0 0.0
    %1894 = vmatpush1.xpose.msra.mxu0 0.0
    %1895 = vmatprep.subr.mxu0 0.0
    %1896 = vmatpush1.xpose.msra.mxu0 0.0
    %1897 = vmatprep.subr.mxu0 0.0
    %1898 = vmatpush1.xpose.msra.mxu0 0.0
    %1899 = vmatprep.subr.mxu0 0.0
    %1900 = vmatpush1.xpose.msra.mxu0 0.0
    %1901 = vmatprep.subr.mxu0 0.0
    %1902 = vmatpush1.xpose.msra.mxu0 0.0
    %1903 = vmatprep.subr.mxu0 0.0
    %1904 = vmatpush1.xpose.msra.mxu0 0.0
    %1905 = vmatprep.subr.mxu0 0.0
    %1906 = vmatpush1.xpose.msra.mxu0 0.0
    %1907 = vmatprep.subr.mxu0 0.0
    %1908 = vmatpush1.xpose.msra.mxu0 0.0
    %1909 = vmatprep.subr.mxu0 0.0
    %1910 = vmatpush1.xpose.msra.mxu0 0.0
    %1911 = vmatprep.subr.mxu0 0.0
    %1912 = vmatpush1.xpose.msra.mxu0 0.0
    %1913 = vmatprep.subr.mxu0 0.0
    %1914 = vmatpush1.xpose.msra.mxu0 0.0
    %1915 = vmatprep.subr.mxu0 0.0
    %1916 = vmatpush1.xpose.msra.mxu0 0.0
    %1917 = vmatprep.subr.mxu0 0.0
    %1918 = vmatpush1.xpose.msra.mxu0 0.0
    %1919 = vmatprep.subr.mxu0 0.0
    %1920 = vmatpush1.xpose.msra.mxu0 0.0
    %1921 = vmatprep.subr.mxu0 0.0
    %1922 = vmatpush1.xpose.msra.mxu0 0.0
    %1923 = vmatprep.subr.mxu0 0.0
    %1924 = vmatpush1.xpose.msra.mxu0 0.0
    %1925 = vmatprep.subr.mxu0 0.0
    %1926 = vmatpush1.xpose.msra.mxu0 0.0
    %1927 = vmatprep.subr.mxu0 0.0
    %1928 = vmatpush1.xpose.msra.mxu0 0.0
    %1929 = vmatprep.subr.mxu0 0.0
    %1930 = vmatpush1.xpose.msra.mxu0 0.0
    %1931 = vmatprep.subr.mxu0 0.0
    %1932 = vmatpush1.xpose.msra.mxu0 0.0
    %1933 = vmatprep.subr.mxu0 0.0
    %1934 = vmatpush1.xpose.msra.mxu0 0.0
    %1935 = vmatprep.subr.mxu0 0.0
    %1936 = vmatpush1.xpose.msra.mxu0 0.0
    %1937 = vmatprep.subr.mxu0 0.0
    %1938 = vmatpush1.xpose.msra.mxu0 0.0
    %1939 = vmatprep.subr.mxu0 0.0
    %1940 = vmatpush1.xpose.msra.mxu0 0.0
    %1941 = vmatprep.mubr.f32.mxu0 0.0
    %1942 = vmatmul.mubr.f32.gmra.mrb[0].mxu0 %v1869
    %v1943 = vpop.f32.mrb[0].mxu0
    %v1944 = vadd.f32 0.0, %v1943
    %v1945 = vpop.f32.mrb[0].mxu0
    %1946 = vmatprep.mubr.f32.mxu0 0.0
    %1947 = vmatmul.mubr.f32.gmra.mrb[0].mxu0 %v1871
    %v1948 = vpop.f32.mrb[0].mxu0
    %v1949 = vadd.f32 0.0, %v1948
    %v1950 = vpop.f32.mrb[0].mxu0
    %1951 = vdwg.mxu0
    %1952 = vrot.lane.b32.xlu0 %v1688, 96
    %v1953 = vpop.permute.xlu0 %1952
    %1954 = vrot.lane.b32.xlu0 %v1690, 96
    %v1955 = vpop.permute.xlu0 %1954
    %v1956 = vsel %vm109, %v1688, 0
    %v1958 = vsel %vm109, %v1690, 0
    %v1960 = vsel %vm109, %v1953, 0
    %v1962 = vsel %vm109, %v1955, 0
    %1964 = vmatprep.subr.mxu0 0.0
    %1965 = vmatpush1.xpose.msra.mxu0 %v1960
    %1966 = vmatprep.subr.mxu0 0.0
    %1967 = vmatpush1.xpose.msra.mxu0 %v1962
    %1968 = vmatprep.subr.mxu0 0.0
    %1969 = vmatpush1.xpose.msra.mxu0 0.0
    %1970 = vmatprep.subr.mxu0 0.0
    %1971 = vmatpush1.xpose.msra.mxu0 0.0
    %1972 = vmatprep.subr.mxu0 0.0
    %1973 = vmatpush1.xpose.msra.mxu0 0.0
    %1974 = vmatprep.subr.mxu0 0.0
    %1975 = vmatpush1.xpose.msra.mxu0 0.0
    %1976 = vmatprep.subr.mxu0 0.0
    %1977 = vmatpush1.xpose.msra.mxu0 0.0
    %1978 = vmatprep.subr.mxu0 0.0
    %1979 = vmatpush1.xpose.msra.mxu0 0.0
    %1980 = vmatprep.subr.mxu0 0.0
    %1981 = vmatpush1.xpose.msra.mxu0 0.0
    %1982 = vmatprep.subr.mxu0 0.0
    %1983 = vmatpush1.xpose.msra.mxu0 0.0
    %1984 = vmatprep.subr.mxu0 0.0
    %1985 = vmatpush1.xpose.msra.mxu0 0.0
    %1986 = vmatprep.subr.mxu0 0.0
    %1987 = vmatpush1.xpose.msra.mxu0 0.0
    %1988 = vmatprep.subr.mxu0 0.0
    %1989 = vmatpush1.xpose.msra.mxu0 0.0
    %1990 = vmatprep.subr.mxu0 0.0
    %1991 = vmatpush1.xpose.msra.mxu0 0.0
    %1992 = vmatprep.subr.mxu0 0.0
    %1993 = vmatpush1.xpose.msra.mxu0 0.0
    %1994 = vmatprep.subr.mxu0 0.0
    %1995 = vmatpush1.xpose.msra.mxu0 0.0
    %1996 = vmatprep.subr.mxu0 0.0
    %1997 = vmatpush1.xpose.msra.mxu0 0.0
    %1998 = vmatprep.subr.mxu0 0.0
    %1999 = vmatpush1.xpose.msra.mxu0 0.0
    %2000 = vmatprep.subr.mxu0 0.0
    %2001 = vmatpush1.xpose.msra.mxu0 0.0
    %2002 = vmatprep.subr.mxu0 0.0
    %2003 = vmatpush1.xpose.msra.mxu0 0.0
    %2004 = vmatprep.subr.mxu0 0.0
    %2005 = vmatpush1.xpose.msra.mxu0 0.0
    %2006 = vmatprep.subr.mxu0 0.0
    %2007 = vmatpush1.xpose.msra.mxu0 0.0
    %2008 = vmatprep.subr.mxu0 0.0
    %2009 = vmatpush1.xpose.msra.mxu0 0.0
    %2010 = vmatprep.subr.mxu0 0.0
    %2011 = vmatpush1.xpose.msra.mxu0 0.0
    %2012 = vmatprep.subr.mxu0 0.0
    %2013 = vmatpush1.xpose.msra.mxu0 0.0
    %2014 = vmatprep.subr.mxu0 0.0
    %2015 = vmatpush1.xpose.msra.mxu0 0.0
    %2016 = vmatprep.subr.mxu0 0.0
    %2017 = vmatpush1.xpose.msra.mxu0 0.0
    %2018 = vmatprep.subr.mxu0 0.0
    %2019 = vmatpush1.xpose.msra.mxu0 0.0
    %2020 = vmatprep.subr.mxu0 0.0
    %2021 = vmatpush1.xpose.msra.mxu0 0.0
    %2022 = vmatprep.subr.mxu0 0.0
    %2023 = vmatpush1.xpose.msra.mxu0 0.0
    %2024 = vmatprep.subr.mxu0 0.0
    %2025 = vmatpush1.xpose.msra.mxu0 0.0
    %2026 = vmatprep.subr.mxu0 0.0
    %2027 = vmatpush1.xpose.msra.mxu0 0.0
    %2028 = vmatprep.mubr.f32.mxu0 0.0
    %2029 = vmatmul.mubr.f32.gmra.mrb[0].mxu0 %v1956
    %v2030 = vpop.f32.mrb[0].mxu0
    %v2031 = vadd.f32 0.0, %v2030
    %v2032 = vpop.f32.mrb[0].mxu0
    %2033 = vmatprep.mubr.f32.mxu0 0.0
    %2034 = vmatmul.mubr.f32.gmra.mrb[0].mxu0 %v1958
    %v2035 = vpop.f32.mrb[0].mxu0
    %v2036 = vadd.f32 0.0, %v2035
    %v2037 = vpop.f32.mrb[0].mxu0
    %2038 = vdwg.mxu0
    %v2039 = vmul.f32 %v1770, 0.35355338
    %v2040 = vmul.f32 %v1775, 0.35355338
    %v2041 = vmul.f32 %v1857, 0.35355338
    %v2042 = vmul.f32 %v1862, 0.35355338
    %v2043 = vmul.f32 %v1944, 0.35355338
    %v2044 = vmul.f32 %v1949, 0.35355338
    %v2045 = vmul.f32 %v2031, 0.35355338
    %v2046 = vmul.f32 %v2036, 0.35355338
    %v2047 = vadd.f32 %v2039, %v195
    %v2048 = vadd.f32 %v2040, %v196
    %v2049 = vadd.f32 %v2041, %v195
    %v2050 = vadd.f32 %v2042, %v196
    %v2051 = vadd.f32 %v2043, %v195
    %v2052 = vadd.f32 %v2044, %v196
    %v2053 = vadd.f32 %v2045, %v195
    %v2054 = vadd.f32 %v2046, %v196
    %v2055 = vsel %vm702, %v2047, -inf
    %2056 = vmax.xlane.f32.xlu0 %v2055
    %v2057 = vpop.xlane.xlu0 %2056
    %v2058 = vsel %vm706, %v2048, -inf
    %2059 = vmax.xlane.f32.xlu0 %v2058
    %v2060 = vpop.xlane.xlu0 %2059
    %v2061 = vsel %vm702, %v2049, -inf
    %2062 = vmax.xlane.f32.xlu0 %v2061
    %v2063 = vpop.xlane.xlu0 %2062
    %v2064 = vsel %vm706, %v2050, -inf
    %2065 = vmax.xlane.f32.xlu0 %v2064
    %v2066 = vpop.xlane.xlu0 %2065
    %v2067 = vsel %vm702, %v2051, -inf
    %2068 = vmax.xlane.f32.xlu0 %v2067
    %v2069 = vpop.xlane.xlu0 %2068
    %v2070 = vsel %vm706, %v2052, -inf
    %2071 = vmax.xlane.f32.xlu0 %v2070
    %v2072 = vpop.xlane.xlu0 %2071
    %v2073 = vsel %vm702, %v2053, -inf
    %2074 = vmax.xlane.f32.xlu0 %v2073
    %v2075 = vpop.xlane.xlu0 %2074
    %v2076 = vsel %vm706, %v2054, -inf
    %2077 = vmax.xlane.f32.xlu0 %v2076
    %v2078 = vpop.xlane.xlu0 %2077
    %v2079 = vsub.f32 %v2047, %v2057
    %v2080 = vsub.f32 %v2048, %v2060
    %v2081 = vsub.f32 %v2049, %v2063
    %v2082 = vsub.f32 %v2050, %v2066
    %v2083 = vsub.f32 %v2051, %v2069
    %v2084 = vsub.f32 %v2052, %v2072
    %v2085 = vsub.f32 %v2053, %v2075
    %v2086 = vsub.f32 %v2054, %v2078
    %v2087 = vmul.f32 %v2079, 1.442695
    %v2088 = vpow.pop %v2087
    %v2089 = vmul.f32 %v2080, 1.442695
    %v2090 = vpow.pop %v2089
    %v2091 = vmul.f32 %v2081, 1.442695
    %v2092 = vpow.pop %v2091
    %v2093 = vmul.f32 %v2082, 1.442695
    %v2094 = vpow.pop %v2093
    %v2095 = vmul.f32 %v2083, 1.442695
    %v2096 = vpow.pop %v2095
    %v2097 = vmul.f32 %v2084, 1.442695
    %v2098 = vpow.pop %v2097
    %v2099 = vmul.f32 %v2085, 1.442695
    %v2100 = vpow.pop %v2099
    %v2101 = vmul.f32 %v2086, 1.442695
    %v2102 = vpow.pop %v2101
    %v2103 = vsel %vm702, %v2088, 0.0
    %2104 = vadd.xlane.f32.xlu0 %v2103
    %v2105 = vpop.xlane.xlu0 %2104
    %v2106 = vsel %vm706, %v2090, 0.0
    %2107 = vadd.xlane.f32.xlu0 %v2106
    %v2108 = vpop.xlane.xlu0 %2107
    %v2109 = vsel %vm702, %v2092, 0.0
    %2110 = vadd.xlane.f32.xlu0 %v2109
    %v2111 = vpop.xlane.xlu0 %2110
    %v2112 = vsel %vm706, %v2094, 0.0
    %2113 = vadd.xlane.f32.xlu0 %v2112
    %v2114 = vpop.xlane.xlu0 %2113
    %v2115 = vsel %vm702, %v2096, 0.0
    %2116 = vadd.xlane.f32.xlu0 %v2115
    %v2117 = vpop.xlane.xlu0 %2116
    %v2118 = vsel %vm706, %v2098, 0.0
    %2119 = vadd.xlane.f32.xlu0 %v2118
    %v2120 = vpop.xlane.xlu0 %2119
    %v2121 = vsel %vm702, %v2100, 0.0
    %2122 = vadd.xlane.f32.xlu0 %v2121
    %v2123 = vpop.xlane.xlu0 %2122
    %v2124 = vsel %vm706, %v2102, 0.0
    %2125 = vadd.xlane.f32.xlu0 %v2124
    %v2126 = vpop.xlane.xlu0 %2125
    %v2127 = vrcp.pop %v2105
    %v2128 = vrcp.pop %v2108
    %v2129 = vrcp.pop %v2111
    %v2130 = vrcp.pop %v2114
    %v2131 = vrcp.pop %v2117
    %v2132 = vrcp.pop %v2120
    %v2133 = vrcp.pop %v2123
    %v2134 = vrcp.pop %v2126
    %v2135 = vmul.f32 %v2088, %v2127
    %v2136 = vmul.f32 %v2090, %v2128
    %v2137 = vmul.f32 %v2092, %v2129
    %v2138 = vmul.f32 %v2094, %v2130
    %v2139 = vmul.f32 %v2096, %v2131
    %v2140 = vmul.f32 %v2098, %v2132
    %v2141 = vmul.f32 %v2100, %v2133
    %v2142 = vmul.f32 %v2102, %v2134
    %2143 = vrot.lane.b32.xlu0 %v1669, 64
    %v2144 = vpop.permute.xlu0 %2143
    %2145 = vrot.lane.b32.xlu0 %v1674, 64
    %v2146 = vpop.permute.xlu0 %2145
    %v2149 = vsel %vm702, %v2135, 0
    %v2152 = vsel %vm702, %v2136, 0
    %v2154 = vsel %vm803, %v2146, 0
    %2156 = vmatprep.subr.mxu0 0.0
    %2157 = vmatpush1.msra.mxu0 %v2144
    %2158 = vmatprep.subr.mxu0 0.0
    %2159 = vmatpush1.msra.mxu0 %v2154
    %2160 = vmatprep.subr.mxu0 0.0
    %2161 = vmatpush1.msra.mxu0 0.0
    %2162 = vmatprep.subr.mxu0 0.0
    %2163 = vmatpush1.msra.mxu0 0.0
    %2164 = vmatprep.subr.mxu0 0.0
    %2165 = vmatpush1.msra.mxu0 0.0
    %2166 = vmatprep.subr.mxu0 0.0
    %2167 = vmatpush1.msra.mxu0 0.0
    %2168 = vmatprep.subr.mxu0 0.0
    %2169 = vmatpush1.msra.mxu0 0.0
    %2170 = vmatprep.subr.mxu0 0.0
    %2171 = vmatpush1.msra.mxu0 0.0
    %2172 = vmatprep.subr.mxu0 0.0
    %2173 = vmatpush1.msra.mxu0 0.0
    %2174 = vmatprep.subr.mxu0 0.0
    %2175 = vmatpush1.msra.mxu0 0.0
    %2176 = vmatprep.subr.mxu0 0.0
    %2177 = vmatpush1.msra.mxu0 0.0
    %2178 = vmatprep.subr.mxu0 0.0
    %2179 = vmatpush1.msra.mxu0 0.0
    %2180 = vmatprep.subr.mxu0 0.0
    %2181 = vmatpush1.msra.mxu0 0.0
    %2182 = vmatprep.subr.mxu0 0.0
    %2183 = vmatpush1.msra.mxu0 0.0
    %2184 = vmatprep.subr.mxu0 0.0
    %2185 = vmatpush1.msra.mxu0 0.0
    %2186 = vmatprep.subr.mxu0 0.0
    %2187 = vmatpush1.msra.mxu0 0.0
    %2188 = vmatprep.subr.mxu0 0.0
    %2189 = vmatpush1.msra.mxu0 0.0
    %2190 = vmatprep.subr.mxu0 0.0
    %2191 = vmatpush1.msra.mxu0 0.0
    %2192 = vmatprep.subr.mxu0 0.0
    %2193 = vmatpush1.msra.mxu0 0.0
    %2194 = vmatprep.subr.mxu0 0.0
    %2195 = vmatpush1.msra.mxu0 0.0
    %2196 = vmatprep.subr.mxu0 0.0
    %2197 = vmatpush1.msra.mxu0 0.0
    %2198 = vmatprep.subr.mxu0 0.0
    %2199 = vmatpush1.msra.mxu0 0.0
    %2200 = vmatprep.subr.mxu0 0.0
    %2201 = vmatpush1.msra.mxu0 0.0
    %2202 = vmatprep.subr.mxu0 0.0
    %2203 = vmatpush1.msra.mxu0 0.0
    %2204 = vmatprep.subr.mxu0 0.0
    %2205 = vmatpush1.msra.mxu0 0.0
    %2206 = vmatprep.subr.mxu0 0.0
    %2207 = vmatpush1.msra.mxu0 0.0
    %2208 = vmatprep.subr.mxu0 0.0
    %2209 = vmatpush1.msra.mxu0 0.0
    %2210 = vmatprep.subr.mxu0 0.0
    %2211 = vmatpush1.msra.mxu0 0.0
    %2212 = vmatprep.subr.mxu0 0.0
    %2213 = vmatpush1.msra.mxu0 0.0
    %2214 = vmatprep.subr.mxu0 0.0
    %2215 = vmatpush1.msra.mxu0 0.0
    %2216 = vmatprep.subr.mxu0 0.0
    %2217 = vmatpush1.msra.mxu0 0.0
    %2218 = vmatprep.subr.mxu0 0.0
    %2219 = vmatpush1.msra.mxu0 0.0
    %2220 = vmatprep.mubr.f32.mxu0 0.0
    %2221 = vmatmul.mubr.f32.gmra.mrb[0].mxu0 %v2149
    %v2222 = vpop.f32.mrb[0].mxu0
    %v2223 = vadd.f32 0.0, %v2222
    %v2224 = vpop.f32.mrb[0].mxu0
    %2225 = vmatprep.mubr.f32.mxu0 0.0
    %2226 = vmatmul.mubr.f32.gmra.mrb[0].mxu0 %v2152
    %v2227 = vpop.f32.mrb[0].mxu0
    %v2228 = vadd.f32 0.0, %v2227
    %v2229 = vpop.f32.mrb[0].mxu0
    %2230 = vdwg.mxu0
    %2231 = vrot.lane.b32.xlu0 %v1680, 64
    %v2232 = vpop.permute.xlu0 %2231
    %2233 = vrot.lane.b32.xlu0 %v1682, 64
    %v2234 = vpop.permute.xlu0 %2233
    %v2237 = vsel %vm702, %v2137, 0
    %v2240 = vsel %vm702, %v2138, 0
    %v2242 = vsel %vm803, %v2234, 0
    %2244 = vmatprep.subr.mxu0 0.0
    %2245 = vmatpush1.msra.mxu0 %v2232
    %2246 = vmatprep.subr.mxu0 0.0
    %2247 = vmatpush1.msra.mxu0 %v2242
    %2248 = vmatprep.subr.mxu0 0.0
    %2249 = vmatpush1.msra.mxu0 0.0
    %2250 = vmatprep.subr.mxu0 0.0
    %2251 = vmatpush1.msra.mxu0 0.0
    %2252 = vmatprep.subr.mxu0 0.0
    %2253 = vmatpush1.msra.mxu0 0.0
    %2254 = vmatprep.subr.mxu0 0.0
    %2255 = vmatpush1.msra.mxu0 0.0
    %2256 = vmatprep.subr.mxu0 0.0
    %2257 = vmatpush1.msra.mxu0 0.0
    %2258 = vmatprep.subr.mxu0 0.0
    %2259 = vmatpush1.msra.mxu0 0.0
    %2260 = vmatprep.subr.mxu0 0.0
    %2261 = vmatpush1.msra.mxu0 0.0
    %2262 = vmatprep.subr.mxu0 0.0
    %2263 = vmatpush1.msra.mxu0 0.0
    %2264 = vmatprep.subr.mxu0 0.0
    %2265 = vmatpush1.msra.mxu0 0.0
    %2266 = vmatprep.subr.mxu0 0.0
    %2267 = vmatpush1.msra.mxu0 0.0
    %2268 = vmatprep.subr.mxu0 0.0
    %2269 = vmatpush1.msra.mxu0 0.0
    %2270 = vmatprep.subr.mxu0 0.0
    %2271 = vmatpush1.msra.mxu0 0.0
    %2272 = vmatprep.subr.mxu0 0.0
    %2273 = vmatpush1.msra.mxu0 0.0
    %2274 = vmatprep.subr.mxu0 0.0
    %2275 = vmatpush1.msra.mxu0 0.0
    %2276 = vmatprep.subr.mxu0 0.0
    %2277 = vmatpush1.msra.mxu0 0.0
    %2278 = vmatprep.subr.mxu0 0.0
    %2279 = vmatpush1.msra.mxu0 0.0
    %2280 = vmatprep.subr.mxu0 0.0
    %2281 = vmatpush1.msra.mxu0 0.0
    %2282 = vmatprep.subr.mxu0 0.0
    %2283 = vmatpush1.msra.mxu0 0.0
    %2284 = vmatprep.subr.mxu0 0.0
    %2285 = vmatpush1.msra.mxu0 0.0
    %2286 = vmatprep.subr.mxu0 0.0
    %2287 = vmatpush1.msra.mxu0 0.0
    %2288 = vmatprep.subr.mxu0 0.0
    %2289 = vmatpush1.msra.mxu0 0.0
    %2290 = vmatprep.subr.mxu0 0.0
    %2291 = vmatpush1.msra.mxu0 0.0
    %2292 = vmatprep.subr.mxu0 0.0
    %2293 = vmatpush1.msra.mxu0 0.0
    %2294 = vmatprep.subr.mxu0 0.0
    %2295 = vmatpush1.msra.mxu0 0.0
    %2296 = vmatprep.subr.mxu0 0.0
    %2297 = vmatpush1.msra.mxu0 0.0
    %2298 = vmatprep.subr.mxu0 0.0
    %2299 = vmatpush1.msra.mxu0 0.0
    %2300 = vmatprep.subr.mxu0 0.0
    %2301 = vmatpush1.msra.mxu0 0.0
    %2302 = vmatprep.subr.mxu0 0.0
    %2303 = vmatpush1.msra.mxu0 0.0
    %2304 = vmatprep.subr.mxu0 0.0
    %2305 = vmatpush1.msra.mxu0 0.0
    %2306 = vmatprep.subr.mxu0 0.0
    %2307 = vmatpush1.msra.mxu0 0.0
    %2308 = vmatprep.mubr.f32.mxu0 0.0
    %2309 = vmatmul.mubr.f32.gmra.mrb[0].mxu0 %v2237
    %v2310 = vpop.f32.mrb[0].mxu0
    %v2311 = vadd.f32 0.0, %v2310
    %v2312 = vpop.f32.mrb[0].mxu0
    %2313 = vmatprep.mubr.f32.mxu0 0.0
    %2314 = vmatmul.mubr.f32.gmra.mrb[0].mxu0 %v2240
    %v2315 = vpop.f32.mrb[0].mxu0
    %v2316 = vadd.f32 0.0, %v2315
    %v2317 = vpop.f32.mrb[0].mxu0
    %2318 = vdwg.mxu0
    %2319 = vrot.lane.b32.xlu0 %v1684, 64
    %v2320 = vpop.permute.xlu0 %2319
    %2321 = vrot.lane.b32.xlu0 %v1686, 64
    %v2322 = vpop.permute.xlu0 %2321
    %v2325 = vsel %vm702, %v2139, 0
    %v2328 = vsel %vm702, %v2140, 0
    %v2330 = vsel %vm803, %v2322, 0
    %2332 = vmatprep.subr.mxu0 0.0
    %2333 = vmatpush1.msra.mxu0 %v2320
    %2334 = vmatprep.subr.mxu0 0.0
    %2335 = vmatpush1.msra.mxu0 %v2330
    %2336 = vmatprep.subr.mxu0 0.0
    %2337 = vmatpush1.msra.mxu0 0.0
    %2338 = vmatprep.subr.mxu0 0.0
    %2339 = vmatpush1.msra.mxu0 0.0
    %2340 = vmatprep.subr.mxu0 0.0
    %2341 = vmatpush1.msra.mxu0 0.0
    %2342 = vmatprep.subr.mxu0 0.0
    %2343 = vmatpush1.msra.mxu0 0.0
    %2344 = vmatprep.subr.mxu0 0.0
    %2345 = vmatpush1.msra.mxu0 0.0
    %2346 = vmatprep.subr.mxu0 0.0
    %2347 = vmatpush1.msra.mxu0 0.0
    %2348 = vmatprep.subr.mxu0 0.0
    %2349 = vmatpush1.msra.mxu0 0.0
    %2350 = vmatprep.subr.mxu0 0.0
    %2351 = vmatpush1.msra.mxu0 0.0
    %2352 = vmatprep.subr.mxu0 0.0
    %2353 = vmatpush1.msra.mxu0 0.0
    %2354 = vmatprep.subr.mxu0 0.0
    %2355 = vmatpush1.msra.mxu0 0.0
    %2356 = vmatprep.subr.mxu0 0.0
    %2357 = vmatpush1.msra.mxu0 0.0
    %2358 = vmatprep.subr.mxu0 0.0
    %2359 = vmatpush1.msra.mxu0 0.0
    %2360 = vmatprep.subr.mxu0 0.0
    %2361 = vmatpush1.msra.mxu0 0.0
    %2362 = vmatprep.subr.mxu0 0.0
    %2363 = vmatpush1.msra.mxu0 0.0
    %2364 = vmatprep.subr.mxu0 0.0
    %2365 = vmatpush1.msra.mxu0 0.0
    %2366 = vmatprep.subr.mxu0 0.0
    %2367 = vmatpush1.msra.mxu0 0.0
    %2368 = vmatprep.subr.mxu0 0.0
    %2369 = vmatpush1.msra.mxu0 0.0
    %2370 = vmatprep.subr.mxu0 0.0
    %2371 = vmatpush1.msra.mxu0 0.0
    %2372 = vmatprep.subr.mxu0 0.0
    %2373 = vmatpush1.msra.mxu0 0.0
    %2374 = vmatprep.subr.mxu0 0.0
    %2375 = vmatpush1.msra.mxu0 0.0
    %2376 = vmatprep.subr.mxu0 0.0
    %2377 = vmatpush1.msra.mxu0 0.0
    %2378 = vmatprep.subr.mxu0 0.0
    %2379 = vmatpush1.msra.mxu0 0.0
    %2380 = vmatprep.subr.mxu0 0.0
    %2381 = vmatpush1.msra.mxu0 0.0
    %2382 = vmatprep.subr.mxu0 0.0
    %2383 = vmatpush1.msra.mxu0 0.0
    %2384 = vmatprep.subr.mxu0 0.0
    %2385 = vmatpush1.msra.mxu0 0.0
    %2386 = vmatprep.subr.mxu0 0.0
    %2387 = vmatpush1.msra.mxu0 0.0
    %2388 = vmatprep.subr.mxu0 0.0
    %2389 = vmatpush1.msra.mxu0 0.0
    %2390 = vmatprep.subr.mxu0 0.0
    %2391 = vmatpush1.msra.mxu0 0.0
    %2392 = vmatprep.subr.mxu0 0.0
    %2393 = vmatpush1.msra.mxu0 0.0
    %2394 = vmatprep.subr.mxu0 0.0
    %2395 = vmatpush1.msra.mxu0 0.0
    %2396 = vmatprep.mubr.f32.mxu0 0.0
    %2397 = vmatmul.mubr.f32.gmra.mrb[0].mxu0 %v2325
    %v2398 = vpop.f32.mrb[0].mxu0
    %v2399 = vadd.f32 0.0, %v2398
    %v2400 = vpop.f32.mrb[0].mxu0
    %2401 = vmatprep.mubr.f32.mxu0 0.0
    %2402 = vmatmul.mubr.f32.gmra.mrb[0].mxu0 %v2328
    %v2403 = vpop.f32.mrb[0].mxu0
    %v2404 = vadd.f32 0.0, %v2403
    %v2405 = vpop.f32.mrb[0].mxu0
    %2406 = vdwg.mxu0
    %2407 = vrot.lane.b32.xlu0 %v1688, 64
    %v2408 = vpop.permute.xlu0 %2407
    %2409 = vrot.lane.b32.xlu0 %v1690, 64
    %v2410 = vpop.permute.xlu0 %2409
    %v2413 = vsel %vm702, %v2141, 0
    %v2416 = vsel %vm702, %v2142, 0
    %v2418 = vsel %vm803, %v2410, 0
    %2420 = vmatprep.subr.mxu0 0.0
    %2421 = vmatpush1.msra.mxu0 %v2408
    %2422 = vmatprep.subr.mxu0 0.0
    %2423 = vmatpush1.msra.mxu0 %v2418
    %2424 = vmatprep.subr.mxu0 0.0
    %2425 = vmatpush1.msra.mxu0 0.0
    %2426 = vmatprep.subr.mxu0 0.0
    %2427 = vmatpush1.msra.mxu0 0.0
    %2428 = vmatprep.subr.mxu0 0.0
    %2429 = vmatpush1.msra.mxu0 0.0
    %2430 = vmatprep.subr.mxu0 0.0
    %2431 = vmatpush1.msra.mxu0 0.0
    %2432 = vmatprep.subr.mxu0 0.0
    %2433 = vmatpush1.msra.mxu0 0.0
    %2434 = vmatprep.subr.mxu0 0.0
    %2435 = vmatpush1.msra.mxu0 0.0
    %2436 = vmatprep.subr.mxu0 0.0
    %2437 = vmatpush1.msra.mxu0 0.0
    %2438 = vmatprep.subr.mxu0 0.0
    %2439 = vmatpush1.msra.mxu0 0.0
    %2440 = vmatprep.subr.mxu0 0.0
    %2441 = vmatpush1.msra.mxu0 0.0
    %2442 = vmatprep.subr.mxu0 0.0
    %2443 = vmatpush1.msra.mxu0 0.0
    %2444 = vmatprep.subr.mxu0 0.0
    %2445 = vmatpush1.msra.mxu0 0.0
    %2446 = vmatprep.subr.mxu0 0.0
    %2447 = vmatpush1.msra.mxu0 0.0
    %2448 = vmatprep.subr.mxu0 0.0
    %2449 = vmatpush1.msra.mxu0 0.0
    %2450 = vmatprep.subr.mxu0 0.0
    %2451 = vmatpush1.msra.mxu0 0.0
    %2452 = vmatprep.subr.mxu0 0.0
    %2453 = vmatpush1.msra.mxu0 0.0
    %2454 = vmatprep.subr.mxu0 0.0
    %2455 = vmatpush1.msra.mxu0 0.0
    %2456 = vmatprep.subr.mxu0 0.0
    %2457 = vmatpush1.msra.mxu0 0.0
    %2458 = vmatprep.subr.mxu0 0.0
    %2459 = vmatpush1.msra.mxu0 0.0
    %2460 = vmatprep.subr.mxu0 0.0
    %2461 = vmatpush1.msra.mxu0 0.0
    %2462 = vmatprep.subr.mxu0 0.0
    %2463 = vmatpush1.msra.mxu0 0.0
    %2464 = vmatprep.subr.mxu0 0.0
    %2465 = vmatpush1.msra.mxu0 0.0
    %2466 = vmatprep.subr.mxu0 0.0
    %2467 = vmatpush1.msra.mxu0 0.0
    %2468 = vmatprep.subr.mxu0 0.0
    %2469 = vmatpush1.msra.mxu0 0.0
    %2470 = vmatprep.subr.mxu0 0.0
    %2471 = vmatpush1.msra.mxu0 0.0
    %2472 = vmatprep.subr.mxu0 0.0
    %2473 = vmatpush1.msra.mxu0 0.0
    %2474 = vmatprep.subr.mxu0 0.0
    %2475 = vmatpush1.msra.mxu0 0.0
    %2476 = vmatprep.subr.mxu0 0.0
    %2477 = vmatpush1.msra.mxu0 0.0
    %2478 = vmatprep.subr.mxu0 0.0
    %2479 = vmatpush1.msra.mxu0 0.0
    %2480 = vmatprep.subr.mxu0 0.0
    %2481 = vmatpush1.msra.mxu0 0.0
    %2482 = vmatprep.subr.mxu0 0.0
    %2483 = vmatpush1.msra.mxu0 0.0
    %2484 = vmatprep.mubr.f32.mxu0 0.0
    %2485 = vmatmul.mubr.f32.gmra.mrb[0].mxu0 %v2413
    %v2486 = vpop.f32.mrb[0].mxu0
    %v2487 = vadd.f32 0.0, %v2486
    %v2488 = vpop.f32.mrb[0].mxu0
    %2489 = vmatprep.mubr.f32.mxu0 0.0
    %2490 = vmatmul.mubr.f32.gmra.mrb[0].mxu0 %v2416
    %v2491 = vpop.f32.mrb[0].mxu0
    %v2492 = vadd.f32 0.0, %v2491
    %v2493 = vpop.f32.mrb[0].mxu0
    %2494 = vdwg.mxu0
    %2497 = vrot.lane.b32.xlu0 %v2311, 8
    %v2498 = vpop.permute.xlu0 %2497
    %2499 = vrot.lane.b32.xlu0 %v2316, 8
    %v2500 = vpop.permute.xlu0 %2499
    %2505 = vrot.lane.b32.xlu0 %v2399, 16
    %v2506 = vpop.permute.xlu0 %2505
    %2507 = vrot.lane.b32.xlu0 %v2404, 16
    %v2508 = vpop.permute.xlu0 %2507
    %2513 = vrot.lane.b32.xlu0 %v2487, 24
    %v2514 = vpop.permute.xlu0 %2513
    %2515 = vrot.lane.b32.xlu0 %v2492, 24
    %v2516 = vpop.permute.xlu0 %2515
    %v2519 = vsel %vm109, %v2223, %v2498
    %v2520 = vsel %vm109, %v2228, %v2500
    %v2521 = vsel %vm1171, %v2519, %v2506
    %v2522 = vsel %vm1171, %v2520, %v2508
    %v2523 = vsel %vm1174, %v2521, %v2514
    %v2524 = vsel %vm1174, %v2522, %v2516
    %v2525 = vld [vmem:[#allocation2 + $0x1d8] sm:$0xff]
    %v2526 = vld [vmem:[#allocation2 + $0x1e0] sm:$0xff]
    %v2527 = vld [vmem:[#allocation2 + $0x1e8] sm:$0xff]
    %v2528 = vld [vmem:[#allocation2 + $0x1f0] sm:$0xff]
    %v2530 = vsel %vm31, %v2523, 0
    %v2533 = vsel %vm31, %v2524, 0
    %2535 = vmatprep.subr.mxu0 0.0
    %2536 = vmatpush1.msra.mxu0 %v2525
    %2537 = vmatprep.subr.mxu0 0.0
    %2538 = vmatpush1.msra.mxu0 %v2526
    %2539 = vmatprep.subr.mxu0 0.0
    %2540 = vmatpush1.msra.mxu0 %v2527
    %2541 = vmatprep.subr.mxu0 0.0
    %2542 = vmatpush1.msra.mxu0 %v2528
    %2543 = vmatprep.subr.mxu0 0.0
    %2544 = vmatpush1.msra.mxu0 0.0
    %2545 = vmatprep.subr.mxu0 0.0
    %2546 = vmatpush1.msra.mxu0 0.0
    %2547 = vmatprep.subr.mxu0 0.0
    %2548 = vmatpush1.msra.mxu0 0.0
    %2549 = vmatprep.subr.mxu0 0.0
    %2550 = vmatpush1.msra.mxu0 0.0
    %2551 = vmatprep.subr.mxu0 0.0
    %2552 = vmatpush1.msra.mxu0 0.0
    %2553 = vmatprep.subr.mxu0 0.0
    %2554 = vmatpush1.msra.mxu0 0.0
    %2555 = vmatprep.subr.mxu0 0.0
    %2556 = vmatpush1.msra.mxu0 0.0
    %2557 = vmatprep.subr.mxu0 0.0
    %2558 = vmatpush1.msra.mxu0 0.0
    %2559 = vmatprep.subr.mxu0 0.0
    %2560 = vmatpush1.msra.mxu0 0.0
    %2561 = vmatprep.subr.mxu0 0.0
    %2562 = vmatpush1.msra.mxu0 0.0
    %2563 = vmatprep.subr.mxu0 0.0
    %2564 = vmatpush1.msra.mxu0 0.0
    %2565 = vmatprep.subr.mxu0 0.0
    %2566 = vmatpush1.msra.mxu0 0.0
    %2567 = vmatprep.subr.mxu0 0.0
    %2568 = vmatpush1.msra.mxu0 0.0
    %2569 = vmatprep.subr.mxu0 0.0
    %2570 = vmatpush1.msra.mxu0 0.0
    %2571 = vmatprep.subr.mxu0 0.0
    %2572 = vmatpush1.msra.mxu0 0.0
    %2573 = vmatprep.subr.mxu0 0.0
    %2574 = vmatpush1.msra.mxu0 0.0
    %2575 = vmatprep.subr.mxu0 0.0
    %2576 = vmatpush1.msra.mxu0 0.0
    %2577 = vmatprep.subr.mxu0 0.0
    %2578 = vmatpush1.msra.mxu0 0.0
    %2579 = vmatprep.subr.mxu0 0.0
    %2580 = vmatpush1.msra.mxu0 0.0
    %2581 = vmatprep.subr.mxu0 0.0
    %2582 = vmatpush1.msra.mxu0 0.0
    %2583 = vmatprep.subr.mxu0 0.0
    %2584 = vmatpush1.msra.mxu0 0.0
    %2585 = vmatprep.subr.mxu0 0.0
    %2586 = vmatpush1.msra.mxu0 0.0
    %2587 = vmatprep.subr.mxu0 0.0
    %2588 = vmatpush1.msra.mxu0 0.0
    %2589 = vmatprep.subr.mxu0 0.0
    %2590 = vmatpush1.msra.mxu0 0.0
    %2591 = vmatprep.subr.mxu0 0.0
    %2592 = vmatpush1.msra.mxu0 0.0
    %2593 = vmatprep.subr.mxu0 0.0
    %2594 = vmatpush1.msra.mxu0 0.0
    %2595 = vmatprep.subr.mxu0 0.0
    %2596 = vmatpush1.msra.mxu0 0.0
    %2597 = vmatprep.subr.mxu0 0.0
    %2598 = vmatpush1.msra.mxu0 0.0
    %2599 = vmatprep.mubr.f32.mxu0 0.0
    %2600 = vmatmul.mubr.f32.gmra.mrb[0].mxu0 %v2530
    %v2601 = vpop.f32.mrb[0].mxu0
    %v2602 = vadd.f32 0.0, %v2601
    %v2603 = vpop.f32.mrb[0].mxu0
    %2604 = vmatprep.mubr.f32.mxu0 0.0
    %2605 = vmatmul.mubr.f32.gmra.mrb[0].mxu0 %v2533
    %v2606 = vpop.f32.mrb[0].mxu0
    %v2607 = vadd.f32 0.0, %v2606
    %v2608 = vpop.f32.mrb[0].mxu0
    %2609 = vdwg.mxu0
    %v2610 = vadd.f32 %v1550, %v2602
    %v2611 = vadd.f32 %v1551, %v2607
    %v2612 = vld [vmem:[#allocation2 + $0x1f8] sm:$0x1]
    %v2613 = vlaneseq
    %v2614 = vshrl.u32 %v2613, 7
    %v2615 = vsub.s32 0, %v2614
    %v2616 = vrot.slane %v2612, %v2615
    %v2617 = vadd.f32 %v2610, %v2616
    %v2618 = vadd.f32 %v2611, %v2616
    %v2619 = vld [vmem:[#allocation2 + $0x200] sm:$0x1]
    %v2620 = vld [vmem:[#allocation2 + $0x208] sm:$0x1]
    %v2621 = vsel %vm31, %v2617, 0.0
    %2622 = vadd.xlane.f32.xlu0 %v2621
    %v2623 = vpop.xlane.xlu0 %2622
    %v2624 = vsel %vm202, %v2618, 0.0
    %2625 = vadd.xlane.f32.xlu0 %v2624
    %v2626 = vpop.xlane.xlu0 %2625
    %v2627 = vmul.f32 %v2623, %v206
    %v2628 = vmul.f32 %v2626, %v206
    %v2629 = vsub.f32 %v2617, %v2627
    %v2630 = vsub.f32 %v2618, %v2628
    %v2631 = vmul.f32 %v2629, %v2629
    %v2632 = vmul.f32 %v2630, %v2630
    %v2633 = vsel %vm31, %v2631, 0.0
    %2634 = vadd.xlane.f32.xlu0 %v2633
    %v2635 = vpop.xlane.xlu0 %2634
    %v2636 = vsel %vm202, %v2632, 0.0
    %2637 = vadd.xlane.f32.xlu0 %v2636
    %v2638 = vpop.xlane.xlu0 %2637
    %v2639 = vmul.f32 %v2635, %v206
    %v2640 = vmul.f32 %v2638, %v206
    %v2641 = vadd.f32 %v2639, 1e-05
    %v2642 = vadd.f32 %v2640, 1e-05
    %v2643 = vrsqrt.pop %v2641
    %v2644 = vrsqrt.pop %v2642
    %v2645 = vmul.f32 %v2629, %v2643
    %v2646 = vmul.f32 %v2630, %v2644
    %v2647 = vlaneseq
    %v2648 = vshrl.u32 %v2647, 7
    %v2649 = vsub.s32 0, %v2648
    %v2650 = vrot.slane %v2619, %v2649
    %v2651 = vmul.f32 %v2645, %v2650
    %v2652 = vmul.f32 %v2646, %v2650
    %v2653 = vlaneseq
    %v2654 = vshrl.u32 %v2653, 7
    %v2655 = vsub.s32 0, %v2654
    %v2656 = vrot.slane %v2620, %v2655
    %v2657 = vadd.f32 %v2651, %v2656
    %v2658 = vadd.f32 %v2652, %v2656
    %v2659 = vld [vmem:[#allocation2 + $0x210] sm:$0xff]
    %v2660 = vld [vmem:[#allocation2 + $0x218] sm:$0xff]
    %v2661 = vld [vmem:[#allocation2 + $0x220] sm:$0xff]
    %v2662 = vld [vmem:[#allocation2 + $0x228] sm:$0xff]
    %v2663 = vld [vmem:[#allocation2 + $0x230] sm:$0x1]
    %v2664 = vlaneseq
    %v2665 = vshrl.u32 %v2664, 7
    %v2666 = vsub.s32 0, %v2665
    %v2667 = vrot.slane %v2663, %v2666
    %v2669 = vsel %vm31, %v2657, 0
    %v2672 = vsel %vm31, %v2658, 0
    %2674 = vmatprep.subr.mxu0 0.0
    %2675 = vmatpush1.msra.mxu0 %v2659
    %2676 = vmatprep.subr.mxu0 0.0
    %2677 = vmatpush1.msra.mxu0 %v2660
    %2678 = vmatprep.subr.mxu0 0.0
    %2679 = vmatpush1.msra.mxu0 %v2661
    %2680 = vmatprep.subr.mxu0 0.0
    %2681 = vmatpush1.msra.mxu0 %v2662
    %2682 = vmatprep.subr.mxu0 0.0
    %2683 = vmatpush1.msra.mxu0 0.0
    %2684 = vmatprep.subr.mxu0 0.0
    %2685 = vmatpush1.msra.mxu0 0.0
    %2686 = vmatprep.subr.mxu0 0.0
    %2687 = vmatpush1.msra.mxu0 0.0
    %2688 = vmatprep.subr.mxu0 0.0
    %2689 = vmatpush1.msra.mxu0 0.0
    %2690 = vmatprep.subr.mxu0 0.0
    %2691 = vmatpush1.msra.mxu0 0.0
    %2692 = vmatprep.subr.mxu0 0.0
    %2693 = vmatpush1.msra.mxu0 0.0
    %2694 = vmatprep.subr.mxu0 0.0
    %2695 = vmatpush1.msra.mxu0 0.0
    %2696 = vmatprep.subr.mxu0 0.0
    %2697 = vmatpush1.msra.mxu0 0.0
    %2698 = vmatprep.subr.mxu0 0.0
    %2699 = vmatpush1.msra.mxu0 0.0
    %2700 = vmatprep.subr.mxu0 0.0
    %2701 = vmatpush1.msra.mxu0 0.0
    %2702 = vmatprep.subr.mxu0 0.0
    %2703 = vmatpush1.msra.mxu0 0.0
    %2704 = vmatprep.subr.mxu0 0.0
    %2705 = vmatpush1.msra.mxu0 0.0
    %2706 = vmatprep.subr.mxu0 0.0
    %2707 = vmatpush1.msra.mxu0 0.0
    %2708 = vmatprep.subr.mxu0 0.0
    %2709 = vmatpush1.msra.mxu0 0.0
    %2710 = vmatprep.subr.mxu0 0.0
    %2711 = vmatpush1.msra.mxu0 0.0
    %2712 = vmatprep.subr.mxu0 0.0
    %2713 = vmatpush1.msra.mxu0 0.0
    %2714 = vmatprep.subr.mxu0 0.0
    %2715 = vmatpush1.msra.mxu0 0.0
    %2716 = vmatprep.subr.mxu0 0.0
    %2717 = vmatpush1.msra.mxu0 0.0
    %2718 = vmatprep.subr.mxu0 0.0
    %2719 = vmatpush1.msra.mxu0 0.0
    %2720 = vmatprep.subr.mxu0 0.0
    %2721 = vmatpush1.msra.mxu0 0.0
    %2722 = vmatprep.subr.mxu0 0.0
    %2723 = vmatpush1.msra.mxu0 0.0
    %2724 = vmatprep.subr.mxu0 0.0
    %2725 = vmatpush1.msra.mxu0 0.0
    %2726 = vmatprep.subr.mxu0 0.0
    %2727 = vmatpush1.msra.mxu0 0.0
    %2728 = vmatprep.subr.mxu0 0.0
    %2729 = vmatpush1.msra.mxu0 0.0
    %2730 = vmatprep.subr.mxu0 0.0
    %2731 = vmatpush1.msra.mxu0 0.0
    %2732 = vmatprep.subr.mxu0 0.0
    %2733 = vmatpush1.msra.mxu0 0.0
    %2734 = vmatprep.subr.mxu0 0.0
    %2735 = vmatpush1.msra.mxu0 0.0
    %2736 = vmatprep.subr.mxu0 0.0
    %2737 = vmatpush1.msra.mxu0 0.0
    %2738 = vmatprep.mubr.f32.mxu0 0.0
    %2739 = vmatmul.mubr.f32.gmra.mrb[0].mxu0 %v2669
    %v2740 = vpop.f32.mrb[0].mxu0
    %v2741 = vadd.f32 %v2667, %v2740
    %v2742 = vpop.f32.mrb[0].mxu0
    %2743 = vmatprep.mubr.f32.mxu0 0.0
    %2744 = vmatmul.mubr.f32.gmra.mrb[0].mxu0 %v2672
    %v2745 = vpop.f32.mrb[0].mxu0
    %v2746 = vadd.f32 %v2667, %v2745
    %v2747 = vpop.f32.mrb[0].mxu0
    %2748 = vdwg.mxu0
    %v2749 = vmul.f32 %v2741, 0.5
    %v2750 = vmul.f32 %v2746, 0.5
    %v2751 = vmul.f32 %v2741, 0.70710677
    %v2752 = vmul.f32 %v2746, 0.70710677
    %vm2753 = vcmp.ge.f32.partialorder %v2751, 0.0
    %vm2754 = vcmp.ge.f32.partialorder %v2752, 0.0
    %v2755 = vsel %vm2753, 1.0, -1.0
    %v2756 = vsel %vm2754, 1.0, -1.0
    %v2757 = vand.u32 2147483647, %v2751
    %v2758 = vand.u32 2147483647, %v2752
    %v2759 = vmul.f32 %v2757, 0.3275911
    %v2760 = vmul.f32 %v2758, 0.3275911
    %v2761 = vadd.f32 %v2759, 1.0
    %v2762 = vadd.f32 %v2760, 1.0
    %v2763 = vrcp.pop %v2761
    %v2764 = vmul.f32 1.0, %v2763
    %v2765 = vrcp.pop %v2762
    %v2766 = vmul.f32 1.0, %v2765
    %v2767 = vmul.f32 %v2764, 1.0614054
    %v2768 = vmul.f32 %v2766, 1.0614054
    %v2769 = vsub.f32 %v2767, 1.4531521
    %v2770 = vsub.f32 %v2768, 1.4531521
    %v2771 = vmul.f32 %v2769, %v2764
    %v2772 = vmul.f32 %v2770, %v2766
    %v2773 = vadd.f32 %v2771, 1.4214138
    %v2774 = vadd.f32 %v2772, 1.4214138
    %v2775 = vmul.f32 %v2773, %v2764
    %v2776 = vmul.f32 %v2774, %v2766
    %v2777 = vsub.f32 %v2775, 0.28449672
    %v2778 = vsub.f32 %v2776, 0.28449672
    %v2779 = vmul.f32 %v2777, %v2764
    %v2780 = vmul.f32 %v2778, %v2766
    %v2781 = vadd.f32 %v2779, 0.2548296
    %v2782 = vadd.f32 %v2780, 0.2548296
    %v2783 = vmul.f32 %v2781, %v2764
    %v2784 = vmul.f32 %v2782, %v2766
    %v2785 = vsub.f32 0.0, %v2757
    %v2786 = vsub.f32 0.0, %v2758
    %v2787 = vmul.f32 %v2785, %v2757
    %v2788 = vmul.f32 %v2786, %v2758
    %v2789 = vmul.f32 %v2787, 1.442695
    %v2790 = vpow.pop %v2789
    %v2791 = vmul.f32 %v2788, 1.442695
    %v2792 = vpow.pop %v2791
    %v2793 = vmul.f32 %v2783, %v2790
    %v2794 = vmul.f32 %v2784, %v2792
    %v2795 = vsub.f32 1.0, %v2793
    %v2796 = vsub.f32 1.0, %v2794
    %v2797 = vmul.f32 %v2755, %v2795
    %v2798 = vmul.f32 %v2756, %v2796
    %v2799 = vadd.f32 %v2797, 1.0
    %v2800 = vadd.f32 %v2798, 1.0
    %v2801 = vmul.f32 %v2749, %v2799
    %v2802 = vmul.f32 %v2750, %v2800
    %v2803 = vld [vmem:[#allocation2 + $0x238] sm:$0xff]
    %v2804 = vld [vmem:[#allocation2 + $0x240] sm:$0xff]
    %v2805 = vld [vmem:[#allocation2 + $0x248] sm:$0xff]
    %v2806 = vld [vmem:[#allocation2 + $0x250] sm:$0xff]
    %v2807 = vld [vmem:[#allocation2 + $0x258] sm:$0xff]
    %v2808 = vld [vmem:[#allocation2 + $0x260] sm:$0xff]
    %v2809 = vld [vmem:[#allocation2 + $0x268] sm:$0xff]
    %v2810 = vld [vmem:[#allocation2 + $0x270] sm:$0xff]
    %v2811 = vld [vmem:[#allocation2 + $0x278] sm:$0x1]
    %v2812 = vlaneseq
    %v2813 = vshrl.u32 %v2812, 7
    %v2814 = vsub.s32 0, %v2813
    %v2815 = vrot.slane %v2811, %v2814
    %v2817 = vsel %vm1468, %v2801, 0
    %v2820 = vsel %vm1468, %v2802, 0
    %2822 = vmatprep.subr.mxu0 0.0
    %2823 = vmatpush1.msra.mxu0 %v2803
    %2824 = vmatprep.subr.mxu0 0.0
    %2825 = vmatpush1.msra.mxu0 %v2804
    %2826 = vmatprep.subr.mxu0 0.0
    %2827 = vmatpush1.msra.mxu0 %v2805
    %2828 = vmatprep.subr.mxu0 0.0
    %2829 = vmatpush1.msra.mxu0 %v2806
    %2830 = vmatprep.subr.mxu0 0.0
    %2831 = vmatpush1.msra.mxu0 %v2807
    %2832 = vmatprep.subr.mxu0 0.0
    %2833 = vmatpush1.msra.mxu0 %v2808
    %2834 = vmatprep.subr.mxu0 0.0
    %2835 = vmatpush1.msra.mxu0 %v2809
    %2836 = vmatprep.subr.mxu0 0.0
    %2837 = vmatpush1.msra.mxu0 %v2810
    %2838 = vmatprep.subr.mxu0 0.0
    %2839 = vmatpush1.msra.mxu0 0.0
    %2840 = vmatprep.subr.mxu0 0.0
    %2841 = vmatpush1.msra.mxu0 0.0
    %2842 = vmatprep.subr.mxu0 0.0
    %2843 = vmatpush1.msra.mxu0 0.0
    %2844 = vmatprep.subr.mxu0 0.0
    %2845 = vmatpush1.msra.mxu0 0.0
    %2846 = vmatprep.subr.mxu0 0.0
    %2847 = vmatpush1.msra.mxu0 0.0
    %2848 = vmatprep.subr.mxu0 0.0
    %2849 = vmatpush1.msra.mxu0 0.0
    %2850 = vmatprep.subr.mxu0 0.0
    %2851 = vmatpush1.msra.mxu0 0.0
    %2852 = vmatprep.subr.mxu0 0.0
    %2853 = vmatpush1.msra.mxu0 0.0
    %2854 = vmatprep.subr.mxu0 0.0
    %2855 = vmatpush1.msra.mxu0 0.0
    %2856 = vmatprep.subr.mxu0 0.0
    %2857 = vmatpush1.msra.mxu0 0.0
    %2858 = vmatprep.subr.mxu0 0.0
    %2859 = vmatpush1.msra.mxu0 0.0
    %2860 = vmatprep.subr.mxu0 0.0
    %2861 = vmatpush1.msra.mxu0 0.0
    %2862 = vmatprep.subr.mxu0 0.0
    %2863 = vmatpush1.msra.mxu0 0.0
    %2864 = vmatprep.subr.mxu0 0.0
    %2865 = vmatpush1.msra.mxu0 0.0
    %2866 = vmatprep.subr.mxu0 0.0
    %2867 = vmatpush1.msra.mxu0 0.0
    %2868 = vmatprep.subr.mxu0 0.0
    %2869 = vmatpush1.msra.mxu0 0.0
    %2870 = vmatprep.subr.mxu0 0.0
    %2871 = vmatpush1.msra.mxu0 0.0
    %2872 = vmatprep.subr.mxu0 0.0
    %2873 = vmatpush1.msra.mxu0 0.0
    %2874 = vmatprep.subr.mxu0 0.0
    %2875 = vmatpush1.msra.mxu0 0.0
    %2876 = vmatprep.subr.mxu0 0.0
    %2877 = vmatpush1.msra.mxu0 0.0
    %2878 = vmatprep.subr.mxu0 0.0
    %2879 = vmatpush1.msra.mxu0 0.0
    %2880 = vmatprep.subr.mxu0 0.0
    %2881 = vmatpush1.msra.mxu0 0.0
    %2882 = vmatprep.subr.mxu0 0.0
    %2883 = vmatpush1.msra.mxu0 0.0
    %2884 = vmatprep.subr.mxu0 0.0
    %2885 = vmatpush1.msra.mxu0 0.0
    %2886 = vmatprep.mubr.f32.mxu0 0.0
    %2887 = vmatmul.mubr.f32.gmra.mrb[0].mxu0 %v2817
    %v2888 = vpop.f32.mrb[0].mxu0
    %v2889 = vadd.f32 %v2815, %v2888
    %v2890 = vpop.f32.mrb[0].mxu0
    %2891 = vmatprep.mubr.f32.mxu0 0.0
    %2892 = vmatmul.mubr.f32.gmra.mrb[0].mxu0 %v2820
    %v2893 = vpop.f32.mrb[0].mxu0
    %v2894 = vadd.f32 %v2815, %v2893
    %v2895 = vpop.f32.mrb[0].mxu0
    %2896 = vdwg.mxu0
    %v2897 = vadd.f32 %v2617, %v2889
    %v2898 = vadd.f32 %v2618, %v2894
    %v2899 = vsel %vm31, %v2897, 0.0
    %2900 = vadd.xlane.f32.xlu0 %v2899
    %v2901 = vpop.xlane.xlu0 %2900
    %v2902 = vsel %vm202, %v2898, 0.0
    %2903 = vadd.xlane.f32.xlu0 %v2902
    %v2904 = vpop.xlane.xlu0 %2903
    %v2906 = vsel %vm702, %v191, 0
    %v2909 = vsel %vm702, %v192, 0
    %v2912 = vsel %vm803, %v2904, 0
    %2914 = vmatprep.subr.mxu0 0.0
    %2915 = vmatpush1.msra.mxu0 %v2901
    %2916 = vmatprep.subr.mxu0 0.0
    %2917 = vmatpush1.msra.mxu0 %v2912
    %2918 = vmatprep.subr.mxu0 0.0
    %2919 = vmatpush1.msra.mxu0 0.0
    %2920 = vmatprep.subr.mxu0 0.0
    %2921 = vmatpush1.msra.mxu0 0.0
    %2922 = vmatprep.subr.mxu0 0.0
    %2923 = vmatpush1.msra.mxu0 0.0
    %2924 = vmatprep.subr.mxu0 0.0
    %2925 = vmatpush1.msra.mxu0 0.0
    %2926 = vmatprep.subr.mxu0 0.0
    %2927 = vmatpush1.msra.mxu0 0.0
    %2928 = vmatprep.subr.mxu0 0.0
    %2929 = vmatpush1.msra.mxu0 0.0
    %2930 = vmatprep.subr.mxu0 0.0
    %2931 = vmatpush1.msra.mxu0 0.0
    %2932 = vmatprep.subr.mxu0 0.0
    %2933 = vmatpush1.msra.mxu0 0.0
    %2934 = vmatprep.subr.mxu0 0.0
    %2935 = vmatpush1.msra.mxu0 0.0
    %2936 = vmatprep.subr.mxu0 0.0
    %2937 = vmatpush1.msra.mxu0 0.0
    %2938 = vmatprep.subr.mxu0 0.0
    %2939 = vmatpush1.msra.mxu0 0.0
    %2940 = vmatprep.subr.mxu0 0.0
    %2941 = vmatpush1.msra.mxu0 0.0
    %2942 = vmatprep.subr.mxu0 0.0
    %2943 = vmatpush1.msra.mxu0 0.0
    %2944 = vmatprep.subr.mxu0 0.0
    %2945 = vmatpush1.msra.mxu0 0.0
    %2946 = vmatprep.subr.mxu0 0.0
    %2947 = vmatpush1.msra.mxu0 0.0
    %2948 = vmatprep.subr.mxu0 0.0
    %2949 = vmatpush1.msra.mxu0 0.0
    %2950 = vmatprep.subr.mxu0 0.0
    %2951 = vmatpush1.msra.mxu0 0.0
    %2952 = vmatprep.subr.mxu0 0.0
    %2953 = vmatpush1.msra.mxu0 0.0
    %2954 = vmatprep.subr.mxu0 0.0
    %2955 = vmatpush1.msra.mxu0 0.0
    %2956 = vmatprep.subr.mxu0 0.0
    %2957 = vmatpush1.msra.mxu0 0.0
    %2958 = vmatprep.subr.mxu0 0.0
    %2959 = vmatpush1.msra.mxu0 0.0
    %2960 = vmatprep.subr.mxu0 0.0
    %2961 = vmatpush1.msra.mxu0 0.0
    %2962 = vmatprep.subr.mxu0 0.0
    %2963 = vmatpush1.msra.mxu0 0.0
    %2964 = vmatprep.subr.mxu0 0.0
    %2965 = vmatpush1.msra.mxu0 0.0
    %2966 = vmatprep.subr.mxu0 0.0
    %2967 = vmatpush1.msra.mxu0 0.0
    %2968 = vmatprep.subr.mxu0 0.0
    %2969 = vmatpush1.msra.mxu0 0.0
    %2970 = vmatprep.subr.mxu0 0.0
    %2971 = vmatpush1.msra.mxu0 0.0
    %2972 = vmatprep.subr.mxu0 0.0
    %2973 = vmatpush1.msra.mxu0 0.0
    %2974 = vmatprep.subr.mxu0 0.0
    %2975 = vmatpush1.msra.mxu0 0.0
    %2976 = vmatprep.subr.mxu0 0.0
    %2977 = vmatpush1.msra.mxu0 0.0
    %2978 = vmatprep.mubr.f32.mxu0 0.0
    %2979 = vmatmul.mubr.f32.gmra.mrb[0].mxu0 %v2906
    %v2980 = vpop.f32.mrb[0].mxu0
    %v2981 = vadd.f32 0.0, %v2980
    %v2982 = vpop.f32.mrb[0].mxu0
    %2983 = vmatprep.mubr.f32.mxu0 0.0
    %2984 = vmatmul.mubr.f32.gmra.mrb[0].mxu0 %v2909
    %v2985 = vpop.f32.mrb[0].mxu0
    %v2986 = vadd.f32 0.0, %v2985
    %v2987 = vpop.f32.mrb[0].mxu0
    %2988 = vdwg.mxu0
    %v2989 = vmul.f32 %v2981, 0.00625
    %v2990 = vmul.f32 %v2986, 0.00625
    %2992 = vset.pattern.permute.xlu0 0
    %2993 = vperm.xlu0 %2992, %v2989
    %v2994 = vpop.permute.xlu0 %2993
    %2997 = vset.pattern.permute.xlu0 0
    %2998 = vperm.xlu0 %2997, %v2990
    %v2999 = vpop.permute.xlu0 %2998
    %v3001 = vsub.f32 %v2897, %v2994
    %v3002 = vsub.f32 %v2898, %v2999
    %v3003 = vmul.f32 %v3001, %v3001
    %v3004 = vmul.f32 %v3002, %v3002
    %v3005 = vsel %vm31, %v3003, 0.0
    %3006 = vadd.xlane.f32.xlu0 %v3005
    %v3007 = vpop.xlane.xlu0 %3006
    %v3008 = vsel %vm202, %v3004, 0.0
    %3009 = vadd.xlane.f32.xlu0 %v3008
    %v3010 = vpop.xlane.xlu0 %3009
    %v3012 = vsel %vm803, %v3010, 0
    %3014 = vmatprep.subr.mxu0 0.0
    %3015 = vmatpush1.msra.mxu0 %v3007
    %3016 = vmatprep.subr.mxu0 0.0
    %3017 = vmatpush1.msra.mxu0 %v3012
    %3018 = vmatprep.subr.mxu0 0.0
    %3019 = vmatpush1.msra.mxu0 0.0
    %3020 = vmatprep.subr.mxu0 0.0
    %3021 = vmatpush1.msra.mxu0 0.0
    %3022 = vmatprep.subr.mxu0 0.0
    %3023 = vmatpush1.msra.mxu0 0.0
    %3024 = vmatprep.subr.mxu0 0.0
    %3025 = vmatpush1.msra.mxu0 0.0
    %3026 = vmatprep.subr.mxu0 0.0
    %3027 = vmatpush1.msra.mxu0 0.0
    %3028 = vmatprep.subr.mxu0 0.0
    %3029 = vmatpush1.msra.mxu0 0.0
    %3030 = vmatprep.subr.mxu0 0.0
    %3031 = vmatpush1.msra.mxu0 0.0
    %3032 = vmatprep.subr.mxu0 0.0
    %3033 = vmatpush1.msra.mxu0 0.0
    %3034 = vmatprep.subr.mxu0 0.0
    %3035 = vmatpush1.msra.mxu0 0.0
    %3036 = vmatprep.subr.mxu0 0.0
    %3037 = vmatpush1.msra.mxu0 0.0
    %3038 = vmatprep.subr.mxu0 0.0
    %3039 = vmatpush1.msra.mxu0 0.0
    %3040 = vmatprep.subr.mxu0 0.0
    %3041 = vmatpush1.msra.mxu0 0.0
    %3042 = vmatprep.subr.mxu0 0.0
    %3043 = vmatpush1.msra.mxu0 0.0
    %3044 = vmatprep.subr.mxu0 0.0
    %3045 = vmatpush1.msra.mxu0 0.0
    %3046 = vmatprep.subr.mxu0 0.0
    %3047 = vmatpush1.msra.mxu0 0.0
    %3048 = vmatprep.subr.mxu0 0.0
    %3049 = vmatpush1.msra.mxu0 0.0
    %3050 = vmatprep.subr.mxu0 0.0
    %3051 = vmatpush1.msra.mxu0 0.0
    %3052 = vmatprep.subr.mxu0 0.0
    %3053 = vmatpush1.msra.mxu0 0.0
    %3054 = vmatprep.subr.mxu0 0.0
    %3055 = vmatpush1.msra.mxu0 0.0
    %3056 = vmatprep.subr.mxu0 0.0
    %3057 = vmatpush1.msra.mxu0 0.0
    %3058 = vmatprep.subr.mxu0 0.0
    %3059 = vmatpush1.msra.mxu0 0.0
    %3060 = vmatprep.subr.mxu0 0.0
    %3061 = vmatpush1.msra.mxu0 0.0
    %3062 = vmatprep.subr.mxu0 0.0
    %3063 = vmatpush1.msra.mxu0 0.0
    %3064 = vmatprep.subr.mxu0 0.0
    %3065 = vmatpush1.msra.mxu0 0.0
    %3066 = vmatprep.subr.mxu0 0.0
    %3067 = vmatpush1.msra.mxu0 0.0
    %3068 = vmatprep.subr.mxu0 0.0
    %3069 = vmatpush1.msra.mxu0 0.0
    %3070 = vmatprep.subr.mxu0 0.0
    %3071 = vmatpush1.msra.mxu0 0.0
    %3072 = vmatprep.subr.mxu0 0.0
    %3073 = vmatpush1.msra.mxu0 0.0
    %3074 = vmatprep.subr.mxu0 0.0
    %3075 = vmatpush1.msra.mxu0 0.0
    %3076 = vmatprep.subr.mxu0 0.0
    %3077 = vmatpush1.msra.mxu0 0.0
    %3078 = vmatprep.mubr.f32.mxu0 0.0
    %3079 = vmatmul.mubr.f32.gmra.mrb[0].mxu0 %v2906
    %v3080 = vpop.f32.mrb[0].mxu0
    %v3081 = vadd.f32 0.0, %v3080
    %v3082 = vpop.f32.mrb[0].mxu0
    %3083 = vmatprep.mubr.f32.mxu0 0.0
    %3084 = vmatmul.mubr.f32.gmra.mrb[0].mxu0 %v2909
    %v3085 = vpop.f32.mrb[0].mxu0
    %v3086 = vadd.f32 0.0, %v3085
    %v3087 = vpop.f32.mrb[0].mxu0
    %3088 = vdwg.mxu0
    %v3089 = vmul.f32 %v3081, 0.00625
    %v3090 = vmul.f32 %v3086, 0.00625
    %v3091 = vadd.f32 %v3089, 1e-05
    %v3092 = vadd.f32 %v3090, 1e-05
    %v3093 = vrsqrt.pop %v3091
    %v3094 = vrsqrt.pop %v3092
    %3096 = vset.pattern.permute.xlu0 0
    %3097 = vperm.xlu0 %3096, %v3093
    %v3098 = vpop.permute.xlu0 %3097
    %3101 = vset.pattern.permute.xlu0 0
    %3102 = vperm.xlu0 %3101, %v3094
    %v3103 = vpop.permute.xlu0 %3102
    %v3105 = vmul.f32 %v3001, %v3098
    %v3106 = vmul.f32 %v3002, %v3103
    %v3107 = vld [vmem:[#allocation2 + $0x58] sm:$0xff]
    %v3108 = vld [vmem:[#allocation2 + $0x60] sm:$0x3]
    %v3109 = vmul.f32 %v3105, %v3107
    %v3110 = vmul.f32 %v3106, %v3108
    %v3111 = vld [vmem:[#allocation2 + $0x68] sm:$0xff]
    %v3112 = vld [vmem:[#allocation2 + $0x70] sm:$0x3]
    %v3113 = vadd.f32 %v3109, %v3111
    %v3114 = vadd.f32 %v3110, %v3112
    %v3115 = vld [vmem:[#allocation2 + $0x78] sm:$0xff]
    %v3116 = vld [vmem:[#allocation2 + $0x80] sm:$0xff]
    %v3117 = vld [vmem:[#allocation2 + $0x88] sm:$0xff]
    %v3118 = vld [vmem:[#allocation2 + $0x90] sm:$0xff]
    %v3120 = vsel %vm31, %v3113, 0
    %v3123 = vsel %vm31, %v3114, 0
    %3125 = vmatprep.subr.mxu0 0.0
    %3126 = vmatpush1.msra.mxu0 %v3115
    %3127 = vmatprep.subr.mxu0 0.0
    %3128 = vmatpush1.msra.mxu0 %v3116
    %3129 = vmatprep.subr.mxu0 0.0
    %3130 = vmatpush1.msra.mxu0 %v3117
    %3131 = vmatprep.subr.mxu0 0.0
    %3132 = vmatpush1.msra.mxu0 %v3118
    %3133 = vmatprep.subr.mxu0 0.0
    %3134 = vmatpush1.msra.mxu0 0.0
    %3135 = vmatprep.subr.mxu0 0.0
    %3136 = vmatpush1.msra.mxu0 0.0
    %3137 = vmatprep.subr.mxu0 0.0
    %3138 = vmatpush1.msra.mxu0 0.0
    %3139 = vmatprep.subr.mxu0 0.0
    %3140 = vmatpush1.msra.mxu0 0.0
    %3141 = vmatprep.subr.mxu0 0.0
    %3142 = vmatpush1.msra.mxu0 0.0
    %3143 = vmatprep.subr.mxu0 0.0
    %3144 = vmatpush1.msra.mxu0 0.0
    %3145 = vmatprep.subr.mxu0 0.0
    %3146 = vmatpush1.msra.mxu0 0.0
    %3147 = vmatprep.subr.mxu0 0.0
    %3148 = vmatpush1.msra.mxu0 0.0
    %3149 = vmatprep.subr.mxu0 0.0
    %3150 = vmatpush1.msra.mxu0 0.0
    %3151 = vmatprep.subr.mxu0 0.0
    %3152 = vmatpush1.msra.mxu0 0.0
    %3153 = vmatprep.subr.mxu0 0.0
    %3154 = vmatpush1.msra.mxu0 0.0
    %3155 = vmatprep.subr.mxu0 0.0
    %3156 = vmatpush1.msra.mxu0 0.0
    %3157 = vmatprep.subr.mxu0 0.0
    %3158 = vmatpush1.msra.mxu0 0.0
    %3159 = vmatprep.subr.mxu0 0.0
    %3160 = vmatpush1.msra.mxu0 0.0
    %3161 = vmatprep.subr.mxu0 0.0
    %3162 = vmatpush1.msra.mxu0 0.0
    %3163 = vmatprep.subr.mxu0 0.0
    %3164 = vmatpush1.msra.mxu0 0.0
    %3165 = vmatprep.subr.mxu0 0.0
    %3166 = vmatpush1.msra.mxu0 0.0
    %3167 = vmatprep.subr.mxu0 0.0
    %3168 = vmatpush1.msra.mxu0 0.0
    %3169 = vmatprep.subr.mxu0 0.0
    %3170 = vmatpush1.msra.mxu0 0.0
    %3171 = vmatprep.subr.mxu0 0.0
    %3172 = vmatpush1.msra.mxu0 0.0
    %3173 = vmatprep.subr.mxu0 0.0
    %3174 = vmatpush1.msra.mxu0 0.0
    %3175 = vmatprep.subr.mxu0 0.0
    %3176 = vmatpush1.msra.mxu0 0.0
    %3177 = vmatprep.subr.mxu0 0.0
    %3178 = vmatpush1.msra.mxu0 0.0
    %3179 = vmatprep.subr.mxu0 0.0
    %3180 = vmatpush1.msra.mxu0 0.0
    %3181 = vmatprep.subr.mxu0 0.0
    %3182 = vmatpush1.msra.mxu0 0.0
    %3183 = vmatprep.subr.mxu0 0.0
    %3184 = vmatpush1.msra.mxu0 0.0
    %3185 = vmatprep.subr.mxu0 0.0
    %3186 = vmatpush1.msra.mxu0 0.0
    %3187 = vmatprep.subr.mxu0 0.0
    %3188 = vmatpush1.msra.mxu0 0.0
    %3189 = vmatprep.mubr.f32.mxu0 0.0
    %3190 = vmatmul.mubr.f32.gmra.mrb[0].mxu0 %v3120
    %v3191 = vpop.f32.mrb[0].mxu0
    %v3192 = vadd.f32 0.0, %v3191
    %v3193 = vpop.f32.mrb[0].mxu0
    %3194 = vmatprep.mubr.f32.mxu0 0.0
    %3195 = vmatmul.mubr.f32.gmra.mrb[0].mxu0 %v3123
    %v3196 = vpop.f32.mrb[0].mxu0
    %v3197 = vadd.f32 0.0, %v3196
    %v3198 = vpop.f32.mrb[0].mxu0
    %3199 = vdwg.mxu0
    %v3200 = vld [vmem:[#allocation2 + $0x98] sm:$0xff]
    %v3201 = vld [vmem:[#allocation2 + $0xa0] sm:$0x3]
    %v3202 = vmul.f32 %v3192, %v3200
    %v3203 = vmul.f32 %v3197, %v3201
    %v3204 = vld [vmem:[#allocation2 + $0x50] sm:$0x3]
    %v3206 = vsel %vm702, %v3204, 0
    %v3209 = vsel %vm803, %v3203, 0
    %3211 = vmatprep.subr.mxu0 0.0
    %3212 = vmatpush1.msra.mxu0 %v3202
    %3213 = vmatprep.subr.mxu0 0.0
    %3214 = vmatpush1.msra.mxu0 %v3209
    %3215 = vmatprep.subr.mxu0 0.0
    %3216 = vmatpush1.msra.mxu0 0.0
    %3217 = vmatprep.subr.mxu0 0.0
    %3218 = vmatpush1.msra.mxu0 0.0
    %3219 = vmatprep.subr.mxu0 0.0
    %3220 = vmatpush1.msra.mxu0 0.0
    %3221 = vmatprep.subr.mxu0 0.0
    %3222 = vmatpush1.msra.mxu0 0.0
    %3223 = vmatprep.subr.mxu0 0.0
    %3224 = vmatpush1.msra.mxu0 0.0
    %3225 = vmatprep.subr.mxu0 0.0
    %3226 = vmatpush1.msra.mxu0 0.0
    %3227 = vmatprep.subr.mxu0 0.0
    %3228 = vmatpush1.msra.mxu0 0.0
    %3229 = vmatprep.subr.mxu0 0.0
    %3230 = vmatpush1.msra.mxu0 0.0
    %3231 = vmatprep.subr.mxu0 0.0
    %3232 = vmatpush1.msra.mxu0 0.0
    %3233 = vmatprep.subr.mxu0 0.0
    %3234 = vmatpush1.msra.mxu0 0.0
    %3235 = vmatprep.subr.mxu0 0.0
    %3236 = vmatpush1.msra.mxu0 0.0
    %3237 = vmatprep.subr.mxu0 0.0
    %3238 = vmatpush1.msra.mxu0 0.0
    %3239 = vmatprep.subr.mxu0 0.0
    %3240 = vmatpush1.msra.mxu0 0.0
    %3241 = vmatprep.subr.mxu0 0.0
    %3242 = vmatpush1.msra.mxu0 0.0
    %3243 = vmatprep.subr.mxu0 0.0
    %3244 = vmatpush1.msra.mxu0 0.0
    %3245 = vmatprep.subr.mxu0 0.0
    %3246 = vmatpush1.msra.mxu0 0.0
    %3247 = vmatprep.subr.mxu0 0.0
    %3248 = vmatpush1.msra.mxu0 0.0
    %3249 = vmatprep.subr.mxu0 0.0
    %3250 = vmatpush1.msra.mxu0 0.0
    %3251 = vmatprep.subr.mxu0 0.0
    %3252 = vmatpush1.msra.mxu0 0.0
    %3253 = vmatprep.subr.mxu0 0.0
    %3254 = vmatpush1.msra.mxu0 0.0
    %3255 = vmatprep.subr.mxu0 0.0
    %3256 = vmatpush1.msra.mxu0 0.0
    %3257 = vmatprep.subr.mxu0 0.0
    %3258 = vmatpush1.msra.mxu0 0.0
    %3259 = vmatprep.subr.mxu0 0.0
    %3260 = vmatpush1.msra.mxu0 0.0
    %3261 = vmatprep.subr.mxu0 0.0
    %3262 = vmatpush1.msra.mxu0 0.0
    %3263 = vmatprep.subr.mxu0 0.0
    %3264 = vmatpush1.msra.mxu0 0.0
    %3265 = vmatprep.subr.mxu0 0.0
    %3266 = vmatpush1.msra.mxu0 0.0
    %3267 = vmatprep.subr.mxu0 0.0
    %3268 = vmatpush1.msra.mxu0 0.0
    %3269 = vmatprep.subr.mxu0 0.0
    %3270 = vmatpush1.msra.mxu0 0.0
    %3271 = vmatprep.subr.mxu0 0.0
    %3272 = vmatpush1.msra.mxu0 0.0
    %3273 = vmatprep.subr.mxu0 0.0
    %3274 = vmatpush1.msra.mxu0 0.0
    %3275 = vmatprep.mubr.f32.mxu0 0.0
    %3276 = vmatmul.mubr.f32.gmra.mrb[0].mxu0 %v3206
    %v3277 = vpop.f32.mrb[0].mxu0
    %v3278 = vadd.f32 0.0, %v3277
    %v3279 = vpop.f32.mrb[0].mxu0
    %3280 = vdwg.mxu0
    %v3281 = vld [vmem:[#allocation2 + $0xa8] sm:$0xff]
    %v3282 = vld [vmem:[#allocation2 + $0xb0] sm:$0xff]
    %v3283 = vld [vmem:[#allocation2 + $0xb8] sm:$0xff]
    %v3284 = vld [vmem:[#allocation2 + $0xc0] sm:$0x3f]
    %v3285 = vld [vmem:[#allocation2 + $0xc8] sm:$0x1]
    %v3286 = vlaneseq
    %v3287 = vshrl.u32 %v3286, 7
    %v3288 = vsub.s32 0, %v3287
    %v3289 = vrot.slane %v3285, %v3288
    %vm3290 = vcmask 244736
    %v3292 = vsel %vm3290, %v3278, 0
    %vm3294 = vcmask 1045504
    %v3296 = vsel %vm3294, %v3284, 0
    %3298 = vmatprep.subr.mxu0 0.0
    %3299 = vmatpush1.msra.mxu0 %v3281
    %3300 = vmatprep.subr.mxu0 0.0
    %3301 = vmatpush1.msra.mxu0 %v3282
    %3302 = vmatprep.subr.mxu0 0.0
    %3303 = vmatpush1.msra.mxu0 %v3283
    %3304 = vmatprep.subr.mxu0 0.0
    %3305 = vmatpush1.msra.mxu0 %v3296
    %3306 = vmatprep.subr.mxu0 0.0
    %3307 = vmatpush1.msra.mxu0 0.0
    %3308 = vmatprep.subr.mxu0 0.0
    %3309 = vmatpush1.msra.mxu0 0.0
    %3310 = vmatprep.subr.mxu0 0.0
    %3311 = vmatpush1.msra.mxu0 0.0
    %3312 = vmatprep.subr.mxu0 0.0
    %3313 = vmatpush1.msra.mxu0 0.0
    %3314 = vmatprep.subr.mxu0 0.0
    %3315 = vmatpush1.msra.mxu0 0.0
    %3316 = vmatprep.subr.mxu0 0.0
    %3317 = vmatpush1.msra.mxu0 0.0
    %3318 = vmatprep.subr.mxu0 0.0
    %3319 = vmatpush1.msra.mxu0 0.0
    %3320 = vmatprep.subr.mxu0 0.0
    %3321 = vmatpush1.msra.mxu0 0.0
    %3322 = vmatprep.subr.mxu0 0.0
    %3323 = vmatpush1.msra.mxu0 0.0
    %3324 = vmatprep.subr.mxu0 0.0
    %3325 = vmatpush1.msra.mxu0 0.0
    %3326 = vmatprep.subr.mxu0 0.0
    %3327 = vmatpush1.msra.mxu0 0.0
    %3328 = vmatprep.subr.mxu0 0.0
    %3329 = vmatpush1.msra.mxu0 0.0
    %3330 = vmatprep.subr.mxu0 0.0
    %3331 = vmatpush1.msra.mxu0 0.0
    %3332 = vmatprep.subr.mxu0 0.0
    %3333 = vmatpush1.msra.mxu0 0.0
    %3334 = vmatprep.subr.mxu0 0.0
    %3335 = vmatpush1.msra.mxu0 0.0
    %3336 = vmatprep.subr.mxu0 0.0
    %3337 = vmatpush1.msra.mxu0 0.0
    %3338 = vmatprep.subr.mxu0 0.0
    %3339 = vmatpush1.msra.mxu0 0.0
    %3340 = vmatprep.subr.mxu0 0.0
    %3341 = vmatpush1.msra.mxu0 0.0
    %3342 = vmatprep.subr.mxu0 0.0
    %3343 = vmatpush1.msra.mxu0 0.0
    %3344 = vmatprep.subr.mxu0 0.0
    %3345 = vmatpush1.msra.mxu0 0.0
    %3346 = vmatprep.subr.mxu0 0.0
    %3347 = vmatpush1.msra.mxu0 0.0
    %3348 = vmatprep.subr.mxu0 0.0
    %3349 = vmatpush1.msra.mxu0 0.0
    %3350 = vmatprep.subr.mxu0 0.0
    %3351 = vmatpush1.msra.mxu0 0.0
    %3352 = vmatprep.subr.mxu0 0.0
    %3353 = vmatpush1.msra.mxu0 0.0
    %3354 = vmatprep.subr.mxu0 0.0
    %3355 = vmatpush1.msra.mxu0 0.0
    %3356 = vmatprep.subr.mxu0 0.0
    %3357 = vmatpush1.msra.mxu0 0.0
    %3358 = vmatprep.subr.mxu0 0.0
    %3359 = vmatpush1.msra.mxu0 0.0
    %3360 = vmatprep.subr.mxu0 0.0
    %3361 = vmatpush1.msra.mxu0 0.0
    %3362 = vmatprep.mubr.f32.mxu0 0.0
    %3363 = vmatmul.mubr.f32.gmra.mrb[0].mxu0 %v3292
    %v3364 = vpop.f32.mrb[0].mxu0
    %v3365 = vadd.f32 %v3289, %v3364
    %v3366 = vpop.f32.mrb[0].mxu0
    %3367 = vdwg.mxu0
    %v3370 = vunpack.c.l.s4 1966171168
    %v3371 = vunpack.c.0.s8 %v3370
    %v3372 = vlaneseq
    %v3373 = vshrl.u32 %v3372, 7
    %v3374 = vsub.s32 %v3371, %v3373
    %v3375 = vrot.slane %v3365, %v3374
    %v3376 = vcombine.high %v3375, %v3375
    %v3378 = vunpack.c.l.s4 1966171168
    %v3379 = vunpack.c.0.s8 %v3378
    %v3380 = vlaneseq
    %v3381 = vshrl.u32 %v3380, 7
    %v3382 = vsub.s32 %v3379, %v3381
    %v3383 = vrot.slane %v3375, %v3382
    %v3385 = vunpack.c.l.s4 1966171168
    %v3386 = vunpack.c.0.s8 %v3385
    %v3387 = vlaneseq
    %v3388 = vshrl.u32 %v3387, 7
    %v3389 = vsub.s32 %v3386, %v3388
    %v3390 = vrot.slane %v3376, %v3389
    %vm3393 = vcmask 40960
    %3394 = vst.msk [vmem:[#allocation5] sm:$0x1] %vm3393, %v3383
    %3395 = vst.msk [vmem:[#allocation5 + $0x1] sm:$0x1] %vm3393, %v3390
    // Predicated region
    $region14: #{wrt_forward.1} parent=1 // pred_check
      _
    $region15: #{wrt_forward.1} parent=1 // pred_check_branch
      %3397 = sbr.rel (0) target = $region17
    $region16: #{wrt_forward.1} parent=1 // pred_region
      %s3399 = ssub.s32 32, 32
      %3400 = vsyncadd [#allocation4], %s3399
      %s3401 = sshll.u32 [#allocation5], 4
      %s3402 = int_to_ptr.vmem [resolvable:$true] %s3401
      %3407 = dma.vmem_to_hbm [thread:$0]  %s3402, 32, %s2, [#allocation4], 16, 16, 1
    $region17: #{wrt_forward.1} parent=1 // pred_fallthru
      _
    // Predicated region
    $region18: #{wrt_forward.1} parent=1 // pred_check
      _
    $region19: #{wrt_forward.1} parent=1 // pred_check_branch
      %3409 = sbr.rel (0) target = $region21
    $region20: #{wrt_forward.1} parent=1 // pred_region
      %3410 = dma.done [#allocation4], 32
    $region21: #{wrt_forward.1} parent=1 // pred_fallthru
      _
    %3411 = vsyncpa [#allocation3], 1
    %3412 = vsyncpa [#allocation4], 1

</llo_original>
